<compile_context>
chip_gen: v7x
topology: tpu7x:2x2x1
jax: 0.10.0
libtpu: 0.0.40
codegen_flags: <defaults>
</compile_context>

<pallas_src>
import functools

import jax
import jax.numpy as jnp
from jax import lax
from jax.experimental import pallas as pl
from jax.experimental.pallas import tpu as pltpu

_BN_EPS = 1e-5


# ---------------------------------------------------------------------------
# Hardware-aware knobs
# ---------------------------------------------------------------------------
@functools.lru_cache(maxsize=None)
def _vmem_limit_bytes():
    cap = 64 * 1024 * 1024
    try:
        info = pltpu.get_tpu_info()
        cap = int(getattr(info, "vmem_capacity_bytes", cap) or cap)
    except Exception:
        pass
    # ~25% headroom under the physical VMEM: 48 MiB on v7x (64 MiB phys),
    # 96 MiB on v5e/v6e (128 MiB phys), capped at 112 MiB.
    return int(min(max(cap * 3 // 4, 32 * 1024 * 1024), 112 * 1024 * 1024))


def _cparams(dim_sems):
    return pltpu.CompilerParams(dimension_semantics=dim_sems,
                                vmem_limit_bytes=_vmem_limit_bytes())


def _pad_cout(cout):
    """Lane-dense output channels: pad to a multiple of 128 only when cheap
    (real ResNet stages, cout >= 64); tiny channel counts stay unpadded."""
    if cout % 128 == 0 or cout < 64:
        return cout
    return ((cout + 127) // 128) * 128


def _pick_row_tile(Ho, Wo, m_target=1024, m_min=32):
    """Output rows per grid step: largest divisor of Ho whose M-tile fits the
    target, preferring >= 2 row blocks so megacore / the DMA pipeline always
    has parallel grid steps."""
    divs = [d for d in range(1, Ho + 1) if Ho % d == 0]
    fit = [d for d in divs if d * Wo <= m_target] or [1]
    th = max(fit)
    if Ho // th < 2:
        multi = [d for d in fit if Ho // d >= 2 and d * Wo >= m_min]
        if multi:
            th = max(multi)
    return th


# ---------------------------------------------------------------------------
# Pallas kernel
# ---------------------------------------------------------------------------
def _make_conv_kernel(s, th, Wo, cin, rpp, relu, mode):
    """Fused 3x3 conv + BN (+ fused 1x1 downsample | + residual) (+ ReLU).

    One grid step = (one image, one block of `th` output rows).
    Refs:
      x_ref  : (s*s*rpp, Ws, cin)  bf16  space-to-depth'd rows incl. halo
      w_ref  : (9*cin, coutp)      bf16  conv weights with BN scale folded in
      b_ref  : (1, coutp)          f32   folded BN bias (incl. downsample BN)
      mode == "downsample": xs_ref (th*Wo, cds) bf16, wds_ref (cds, coutp) bf16
      mode == "residual"  : r_ref  (th*Wo, coutp) bf16
      o_ref  : (th*Wo, coutp)      bf16
    """
    taps = []
    for i in range(3):
        for j in range(3):
            ph = (i % s) * s + (j % s)             # space-to-depth phase
            taps.append((ph * rpp + i // s, j // s))

    def body(x_ref, w_ref, b_ref, e1_ref, e2_ref, o_ref):
        # Build the big-K operand: one bf16 concat, one MXU pass (K = 9*cin).
        slabs = [x_ref[pl.ds(r0, th), pl.ds(c0, Wo), :] for r0, c0 in taps]
        a = jnp.concatenate(slabs, axis=-1)            # (th, Wo, 9*cin)
        a = a.reshape(th * Wo, 9 * cin)
        acc = jnp.dot(a, w_ref[...], preferred_element_type=jnp.float32)
        acc = acc + b_ref[...]
        if mode == "downsample":        # skip = conv1x1(stride) + BN, fused
            acc = acc + jnp.dot(e1_ref[...], e2_ref[...],
                                preferred_element_type=jnp.float32)
        elif mode == "residual":        # identity skip
            acc = acc + e1_ref[...].astype(jnp.float32)
        if relu:
            acc = jnp.maximum(acc, 0.0)
        o_ref[...] = acc.astype(o_ref.dtype)           # single store

    if mode == "downsample":
        def kernel(x_ref, w_ref, b_ref, xs_ref, wds_ref, o_ref):
            body(x_ref, w_ref, b_ref, xs_ref, wds_ref, o_ref)
    elif mode == "residual":
        def kernel(x_ref, w_ref, b_ref, r_ref, o_ref):
            body(x_ref, w_ref, b_ref, r_ref, None, o_ref)
    else:
        def kernel(x_ref, w_ref, b_ref, o_ref):
            body(x_ref, w_ref, b_ref, None, None, o_ref)
    return kernel


# ---------------------------------------------------------------------------
# Conv wrapper (layout plumbing in plain JAX, all compute in Pallas)
# ---------------------------------------------------------------------------
def _fold_bn(w_mat, bn, cout, coutp):
    """Fold inference BN into (K, cout) weights; zero-pad cout -> coutp."""
    gamma, beta, mean, var = bn
    scale = gamma * lax.rsqrt(var + _BN_EPS)
    bias = (beta - mean * scale).reshape(1, cout).astype(jnp.float32)
    wf = (w_mat * scale).astype(jnp.bfloat16)
    if coutp != cout:
        wf = jnp.pad(wf, ((0, 0), (0, coutp - cout)))
        bias = jnp.pad(bias, ((0, 0), (0, coutp - cout)))
    return wf, bias


def conv3x3_bn_act(x, w, bn, stride, *, relu=True, residual=None,
                   downsample=None):
    """3x3 conv (pad=1, no bias) + folded BN (+ fused downsample skip or
    identity residual) (+ ReLU).

    x: (N, H, W, cin) NHWC;  w: (3, 3, cin, cout) f32.
    residual:   (N, Ho, Wo, cout) tensor added before the ReLU.
    downsample: dict(x=block input, w=(1,1,cds,cout), bn=..., stride=s) whose
                conv1x1(stride)+BN skip is computed inside the kernel.
    Returns (N, Ho, Wo, coutp) bf16 with coutp >= cout (zero-padded channels).
    """
    x = x.astype(jnp.bfloat16)
    N, H, W, cin = x.shape
    cout = w.shape[-1]
    s = int(stride)
    Ho = (H - 1) // s + 1
    Wo = (W - 1) // s + 1
    coutp = _pad_cout(cout)

    # Fold BN scale into bf16 weights; bias stays f32 for the epilogue.
    wk, bias = _fold_bn(w.reshape(9 * cin, cout), bn, cout, coutp)

    # pad=1 plus bottom/right rounding so the padded map divides by s, then a
    # one-pass space-to-depth so every tap is a unit-stride window read.
    Hp = -(-(H + 2) // s) * s
    Wp = -(-(W + 2) // s) * s
    xpad = jnp.pad(x, ((0, 0), (1, Hp - H - 1), (1, Wp - W - 1), (0, 0)))
    Hs, Ws = Hp // s, Wp // s
    xp = xpad.reshape(N, Hs, s, Ws, s, cin)
    xp = jnp.transpose(xp, (0, 2, 4, 1, 3, 5)).reshape(N, s * s, Hs, Ws, cin)

    # Output-row tiling: the 1-pixel halo (2//s rows per phase) is gathered by
    # the same wrapper pass as the pad/space-to-depth above.
    th = _pick_row_tile(Ho, Wo)
    nrb = Ho // th
    halo = 2 // s
    rpp = th + halo
    xb = jnp.stack([xp[:, :, r * th: r * th + rpp] for r in range(nrb)],
                   axis=1)
    xb = xb.reshape(N, nrb, s * s * rpp, Ws, cin)

    in_specs = [
        pl.BlockSpec((None, None, s * s * rpp, Ws, cin),
                     lambda n, r: (n, r, 0, 0, 0)),
        pl.BlockSpec((9 * cin, coutp), lambda n, r: (0, 0)),
        pl.BlockSpec((1, coutp), lambda n, r: (0, 0)),
    ]
    extra_specs, extra_args = [], []
    mode = "plain"

    if downsample is not None:
        mode = "downsample"
        ds_s = int(downsample["stride"])
        xs = downsample["x"].astype(jnp.bfloat16)[:, ::ds_s, ::ds_s, :]
        assert xs.shape[1] == Ho and xs.shape[2] == Wo
        cds = xs.shape[-1]
        wds, bds = _fold_bn(downsample["w"].reshape(cds, cout),
                            downsample["bn"], cout, coutp)
        bias = bias + bds                       # one bias add in the epilogue
        xs = xs.reshape(N, nrb, th * Wo, cds)
        extra_specs = [
            pl.BlockSpec((None, None, th * Wo, cds), lambda n, r: (n, r, 0, 0)),
            pl.BlockSpec((cds, coutp), lambda n, r: (0, 0)),
        ]
        extra_args = [xs, wds]
    elif residual is not None:
        mode = "residual"
        res = residual.astype(jnp.bfloat16)
        if res.shape[-1] != coutp:
            res = jnp.pad(res, ((0, 0), (0, 0), (0, 0),
                                (0, coutp - res.shape[-1])))
        res = res.reshape(N, nrb, th * Wo, coutp)
        extra_specs = [pl.BlockSpec((None, None, th * Wo, coutp),
                                    lambda n, r: (n, r, 0, 0))]
        extra_args = [res]

    kernel = _make_conv_kernel(s, th, Wo, cin, rpp, relu, mode)
    out = pl.pallas_call(
        kernel,
        out_shape=jax.ShapeDtypeStruct((N, nrb, th * Wo, coutp), jnp.bfloat16),
        grid=(N, nrb),
        in_specs=in_specs + extra_specs,
        out_specs=pl.BlockSpec((None, None, th * Wo, coutp),
                               lambda n, r: (n, r, 0, 0)),
        compiler_params=_cparams(("parallel", "parallel")),
    )(xb, wk, bias, *extra_args)
    return out.reshape(N, Ho, Wo, coutp)


# ---------------------------------------------------------------------------
# BasicBlock forward (NCHW in / NCHW out, like the PyTorch module)
# ---------------------------------------------------------------------------
def basic_block_forward(x_nchw, params):
    x = jnp.transpose(x_nchw, (0, 2, 3, 1)).astype(jnp.bfloat16)     # NHWC
    stride = params["stride"]
    cout = params["w2"].shape[-1]

    out1 = conv3x3_bn_act(x, params["w1"], params["bn1"], stride, relu=True)

    # conv2 consumes conv1's (possibly lane-padded) channels via zero weight
    # rows, so no intermediate channel-slice pass is needed.
    w2 = params["w2"]
    if out1.shape[-1] != w2.shape[2]:
        w2 = jnp.pad(w2, ((0, 0), (0, 0),
                          (0, out1.shape[-1] - w2.shape[2]), (0, 0)))

    if params["downsample"] is not None:
        # TODO(synk): the spec allows an arbitrary nn.Module; the standard
        # ResNet downsample (conv1x1(stride) + BN) is implemented here and
        # fused into the second conv kernel as an extra K segment.
        ds = params["downsample"]
        out = conv3x3_bn_act(out1, w2, params["bn2"], 1, relu=True,
                             downsample={"x": x, "w": ds["w"],
                                         "bn": ds["bn"], "stride": stride})
    else:
        out = conv3x3_bn_act(out1, w2, params["bn2"], 1, relu=True,
                             residual=x)

    out = out[..., :cout]
    return jnp.transpose(out, (0, 3, 1, 2)).astype(jnp.float32)      # NCHW


def init_basic_block(key, in_channels, out_channels, stride):
    k1, k2, k3 = jax.random.split(key, 3)

    def conv_w(k, kh, kw, cin, cout):
        fan_out = kh * kw * cout                 # kaiming_normal_, fan_out
        std = (2.0 / fan_out) ** 0.5
        return jax.random.normal(k, (kh, kw, cin, cout), jnp.float32) * std

    def bn(c):
        # (gamma, beta, running_mean, running_var) — PyTorch defaults.
        return (jnp.ones((c,), jnp.float32), jnp.zeros((c,), jnp.float32),
                jnp.zeros((c,), jnp.float32), jnp.ones((c,), jnp.float32))

    params = {
        "stride": int(stride),
        "w1": conv_w(k1, 3, 3, in_channels, out_channels),
        "bn1": bn(out_channels),
        "w2": conv_w(k2, 3, 3, out_channels, out_channels),
        "bn2": bn(out_channels),
    }
    if stride != 1 or in_channels != out_channels:
        params["downsample"] = {
            "w": conv_w(k3, 1, 1, in_channels, out_channels),
            "bn": bn(out_channels)}
    else:
        params["downsample"] = None
    return params


# ---------------------------------------------------------------------------
# Pure-JAX reference (f32) for a correctness sanity check
# ---------------------------------------------------------------------------
def _ref_conv_bn(x, w, bn, stride, padding, relu, residual=None):
    gamma, beta, mean, var = bn
    scale = gamma / jnp.sqrt(var + _BN_EPS)
    bias = beta - mean * scale
    y = lax.conv_general_dilated(
        x, w, window_strides=(stride, stride),
        padding=((padding, padding), (padding, padding)),
        dimension_numbers=("NHWC", "HWIO", "NHWC"))
    y = y * scale + bias
    if residual is not None:
        y = y + residual
    if relu:
        y = jnp.maximum(y, 0.0)
    return y


def ref_basic_block(x_nchw, params):
    x = jnp.transpose(x_nchw, (0, 2, 3, 1)).astype(jnp.float32)
    stride = params["stride"]
    if params["downsample"] is not None:
        ds = params["downsample"]
        skip = _ref_conv_bn(x, ds["w"], ds["bn"], stride, 0, relu=False)
    else:
        skip = x
    out = _ref_conv_bn(x, params["w1"], params["bn1"], stride, 1, relu=True)
    out = _ref_conv_bn(out, params["w2"], params["bn2"], 1, 1, relu=True,
                       residual=skip)
    return jnp.transpose(out, (0, 3, 1, 2))


if __name__ == "__main__":
    key = jax.random.PRNGKey(0)
    kb1, kb2, kx = jax.random.split(key, 3)

    in_channels, out_channels = 4, 16
    # One block with stride-2 downsample, one identity-skip block.
    blk_down = init_basic_block(kb1, in_channels, out_channels, stride=2)
    blk_id = init_basic_block(kb2, out_channels, out_channels, stride=1)

    x = jax.random.normal(kx, (2, in_channels, 16, 16), jnp.float32)

    fwd = jax.jit(
        lambda v: basic_block_forward(basic_block_forward(v, blk_down), blk_id))
    out = jax.block_until_ready(fwd(x))

    assert out.shape == (2, out_channels, 8, 8), out.shape
    assert bool(jnp.all(jnp.isfinite(out)))

    ref = ref_basic_block(ref_basic_block(x, blk_down), blk_id)
    max_err = float(jnp.max(jnp.abs(out - ref)))
    assert max_err < 0.25, f"max abs err vs f32 reference: {max_err}"

    print("KERNEL_OK")
</pallas_src>

<mosaic_0001>
module attributes {stable_mosaic.version = 11 : i64} {
  func.func @kernel(%arg0: i32, %arg1: i32, %arg2: memref<1x1x20x9x4xbf16, #tpu.memory_space<vmem>>, %arg3: memref<36x16xbf16, #tpu.memory_space<vmem>>, %arg4: memref<1x16xf32, #tpu.memory_space<vmem>>, %arg5: memref<1x1x32x16xbf16, #tpu.memory_space<vmem>>) attributes {dimension_semantics = [#tpu.dimension_semantics<parallel>, #tpu.dimension_semantics<parallel>], iteration_bounds = array<i64: 2, 2>, scalar_prefetch = 0 : i64, scratch_operands = 0 : i64, tpu.core_type = #tpu.core_type<tc>, window_params = [{transform_indices = @transform_0, window_bounds = array<i64: 1, 1, 20, 9, 4>}, {pipeline_mode = #tpu.pipeline_mode<synchronous>, transform_indices = @transform_1, window_bounds = array<i64: 36, 16>}, {pipeline_mode = #tpu.pipeline_mode<synchronous>, transform_indices = @transform_2, window_bounds = array<i64: 1, 16>}, {transform_indices = @transform_3, window_bounds = array<i64: 1, 1, 32, 16>}]} {
    %c0 = arith.constant 0 : index
    %c0_0 = arith.constant 0 : index
    %c0_1 = arith.constant 0 : index
    %c0_2 = arith.constant 0 : index
    %c0_3 = arith.constant 0 : index
    %0 = vector.load %arg2[%c0, %c0_0, %c0_1, %c0_2, %c0_3] : memref<1x1x20x9x4xbf16, #tpu.memory_space<vmem>>, vector<1x1x4x8x4xbf16>
    %1 = vector.shape_cast %0 : vector<1x1x4x8x4xbf16> to vector<4x8x4xbf16>
    %c0_4 = arith.constant 0 : index
    %c0_5 = arith.constant 0 : index
    %c5 = arith.constant 5 : index
    %c0_6 = arith.constant 0 : index
    %c0_7 = arith.constant 0 : index
    %2 = vector.load %arg2[%c0_4, %c0_5, %c5, %c0_6, %c0_7] : memref<1x1x20x9x4xbf16, #tpu.memory_space<vmem>>, vector<1x1x4x8x4xbf16>
    %3 = vector.shape_cast %2 : vector<1x1x4x8x4xbf16> to vector<4x8x4xbf16>
    %c0_8 = arith.constant 0 : index
    %c0_9 = arith.constant 0 : index
    %c0_10 = arith.constant 0 : index
    %c1 = arith.constant 1 : index
    %c0_11 = arith.constant 0 : index
    %4 = vector.load %arg2[%c0_8, %c0_9, %c0_10, %c1, %c0_11] : memref<1x1x20x9x4xbf16, #tpu.memory_space<vmem>>, vector<1x1x4x8x4xbf16>
    %5 = vector.shape_cast %4 : vector<1x1x4x8x4xbf16> to vector<4x8x4xbf16>
    %c0_12 = arith.constant 0 : index
    %c0_13 = arith.constant 0 : index
    %c10 = arith.constant 10 : index
    %c0_14 = arith.constant 0 : index
    %c0_15 = arith.constant 0 : index
    %6 = vector.load %arg2[%c0_12, %c0_13, %c10, %c0_14, %c0_15] : memref<1x1x20x9x4xbf16, #tpu.memory_space<vmem>>, vector<1x1x4x8x4xbf16>
    %7 = vector.shape_cast %6 : vector<1x1x4x8x4xbf16> to vector<4x8x4xbf16>
    %c0_16 = arith.constant 0 : index
    %c0_17 = arith.constant 0 : index
    %c15 = arith.constant 15 : index
    %c0_18 = arith.constant 0 : index
    %c0_19 = arith.constant 0 : index
    %8 = vector.load %arg2[%c0_16, %c0_17, %c15, %c0_18, %c0_19] : memref<1x1x20x9x4xbf16, #tpu.memory_space<vmem>>, vector<1x1x4x8x4xbf16>
    %9 = vector.shape_cast %8 : vector<1x1x4x8x4xbf16> to vector<4x8x4xbf16>
    %c0_20 = arith.constant 0 : index
    %c0_21 = arith.constant 0 : index
    %c10_22 = arith.constant 10 : index
    %c1_23 = arith.constant 1 : index
    %c0_24 = arith.constant 0 : index
    %10 = vector.load %arg2[%c0_20, %c0_21, %c10_22, %c1_23, %c0_24] : memref<1x1x20x9x4xbf16, #tpu.memory_space<vmem>>, vector<1x1x4x8x4xbf16>
    %11 = vector.shape_cast %10 : vector<1x1x4x8x4xbf16> to vector<4x8x4xbf16>
    %c0_25 = arith.constant 0 : index
    %c0_26 = arith.constant 0 : index
    %c1_27 = arith.constant 1 : index
    %c0_28 = arith.constant 0 : index
    %c0_29 = arith.constant 0 : index
    %12 = vector.load %arg2[%c0_25, %c0_26, %c1_27, %c0_28, %c0_29] : memref<1x1x20x9x4xbf16, #tpu.memory_space<vmem>>, vector<1x1x4x8x4xbf16>
    %13 = vector.shape_cast %12 : vector<1x1x4x8x4xbf16> to vector<4x8x4xbf16>
    %c0_30 = arith.constant 0 : index
    %c0_31 = arith.constant 0 : index
    %c6 = arith.constant 6 : index
    %c0_32 = arith.constant 0 : index
    %c0_33 = arith.constant 0 : index
    %14 = vector.load %arg2[%c0_30, %c0_31, %c6, %c0_32, %c0_33] : memref<1x1x20x9x4xbf16, #tpu.memory_space<vmem>>, vector<1x1x4x8x4xbf16>
    %15 = vector.shape_cast %14 : vector<1x1x4x8x4xbf16> to vector<4x8x4xbf16>
    %c0_34 = arith.constant 0 : index
    %c0_35 = arith.constant 0 : index
    %c1_36 = arith.constant 1 : index
    %c1_37 = arith.constant 1 : index
    %c0_38 = arith.constant 0 : index
    %16 = vector.load %arg2[%c0_34, %c0_35, %c1_36, %c1_37, %c0_38] : memref<1x1x20x9x4xbf16, #tpu.memory_space<vmem>>, vector<1x1x4x8x4xbf16>
    %17 = vector.shape_cast %16 : vector<1x1x4x8x4xbf16> to vector<4x8x4xbf16>
    %18 = tpu.concatenate %1, %3, %5, %7, %9, %11, %13, %15, %17 in 2 : vector<4x8x4xbf16>, vector<4x8x4xbf16>, vector<4x8x4xbf16>, vector<4x8x4xbf16>, vector<4x8x4xbf16>, vector<4x8x4xbf16>, vector<4x8x4xbf16>, vector<4x8x4xbf16>, vector<4x8x4xbf16> -> vector<4x8x36xbf16>
    %19 = vector.shape_cast %18 : vector<4x8x36xbf16> to vector<32x36xbf16>
    %c0_39 = arith.constant 0 : index
    %c0_40 = arith.constant 0 : index
    %20 = vector.load %arg3[%c0_39, %c0_40] : memref<36x16xbf16, #tpu.memory_space<vmem>>, vector<36x16xbf16>
    %cst = arith.constant dense<0.000000e+00> : vector<32x16xf32>
    %21 = tpu.matmul %19, %20, %cst {dimension_numbers = #tpu.dot_dimension_numbers<[1], [0], [0], [1], [0, 0, 1, 1], [], []>} : vector<32x36xbf16>, vector<36x16xbf16>, vector<32x16xf32> -> vector<32x16xf32>
    %c0_41 = arith.constant 0 : index
    %c0_42 = arith.constant 0 : index
    %22 = vector.load %arg4[%c0_41, %c0_42] : memref<1x16xf32, #tpu.memory_space<vmem>>, vector<1x16xf32>
    %23 = vector.broadcast %22 : vector<1x16xf32> to vector<32x16xf32>
    %24 = arith.addf %21, %23 : vector<32x16xf32>
    %cst_43 = arith.constant 0.000000e+00 : f32
    %25 = vector.broadcast %cst_43 : f32 to vector<32x16xf32>
    %26 = arith.maximumf %24, %25 : vector<32x16xf32>
    %27 = arith.truncf %26 : vector<32x16xf32> to vector<32x16xbf16>
    %c0_44 = arith.constant 0 : index
    %c0_45 = arith.constant 0 : index
    %c0_46 = arith.constant 0 : index
    %c0_47 = arith.constant 0 : index
    %28 = vector.load %arg5[%c0_44, %c0_45, %c0_46, %c0_47] : memref<1x1x32x16xbf16, #tpu.memory_space<vmem>>, vector<1x1x32x16xbf16>
    %29 = vector.shape_cast %28 : vector<1x1x32x16xbf16> to vector<32x16xbf16>
    %30 = vector.shape_cast %27 : vector<32x16xbf16> to vector<1x1x32x16xbf16>
    tpu.vector_store %arg5[%c0_44, %c0_45, %c0_46, %c0_47], %30 {strides = array<i32>} : memref<1x1x32x16xbf16, #tpu.memory_space<vmem>>, vector<1x1x32x16xbf16>,
    return
  }
  func.func @transform_0(%arg0: i32, %arg1: i32) -> (i32, i32, i32, i32, i32) {
    %c0_i32 = arith.constant 0 : i32
    %c0_i32_0 = arith.constant 0 : i32
    %c0_i32_1 = arith.constant 0 : i32
    %c0_i32_2 = arith.constant 0 : i32
    return %arg0, %arg1, %c0_i32, %c0_i32_0, %c0_i32_1 : i32, i32, i32, i32, i32
  }
  func.func @transform_1(%arg0: i32, %arg1: i32) -> (i32, i32) {
    %c0_i32 = arith.constant 0 : i32
    %c0_i32_0 = arith.constant 0 : i32
    %c0_i32_1 = arith.constant 0 : i32
    return %c0_i32, %c0_i32_0 : i32, i32
  }
  func.func @transform_2(%arg0: i32, %arg1: i32) -> (i32, i32) {
    %c0_i32 = arith.constant 0 : i32
    %c0_i32_0 = arith.constant 0 : i32
    %c0_i32_1 = arith.constant 0 : i32
    return %c0_i32, %c0_i32_0 : i32, i32
  }
  func.func @transform_3(%arg0: i32, %arg1: i32) -> (i32, i32, i32, i32) {
    %c0_i32 = arith.constant 0 : i32
    %c0_i32_0 = arith.constant 0 : i32
    %c0_i32_1 = arith.constant 0 : i32
    return %arg0, %arg1, %c0_i32, %c0_i32_0 : i32, i32, i32, i32
  }
}

module attributes {stable_mosaic.version = 11 : i64} {
  func.func @kernel(%arg0: i32, %arg1: i32, %arg2: memref<1x1x6x10x16xbf16, #tpu.memory_space<vmem>>, %arg3: memref<144x16xbf16, #tpu.memory_space<vmem>>, %arg4: memref<1x16xf32, #tpu.memory_space<vmem>>, %arg5: memref<1x1x32x16xbf16, #tpu.memory_space<vmem>>, %arg6: memref<1x1x32x16xbf16, #tpu.memory_space<vmem>>) attributes {dimension_semantics = [#tpu.dimension_semantics<parallel>, #tpu.dimension_semantics<parallel>], iteration_bounds = array<i64: 2, 2>, scalar_prefetch = 0 : i64, scratch_operands = 0 : i64, tpu.core_type = #tpu.core_type<tc>, window_params = [{transform_indices = @transform_0, window_bounds = array<i64: 1, 1, 6, 10, 16>}, {pipeline_mode = #tpu.pipeline_mode<synchronous>, transform_indices = @transform_1, window_bounds = array<i64: 144, 16>}, {pipeline_mode = #tpu.pipeline_mode<synchronous>, transform_indices = @transform_2, window_bounds = array<i64: 1, 16>}, {transform_indices = @transform_3, window_bounds = array<i64: 1, 1, 32, 16>}, {transform_indices = @transform_4, window_bounds = array<i64: 1, 1, 32, 16>}]} {
    %c0 = arith.constant 0 : index
    %c0_0 = arith.constant 0 : index
    %c0_1 = arith.constant 0 : index
    %c0_2 = arith.constant 0 : index
    %c0_3 = arith.constant 0 : index
    %0 = vector.load %arg2[%c0, %c0_0, %c0_1, %c0_2, %c0_3] : memref<1x1x6x10x16xbf16, #tpu.memory_space<vmem>>, vector<1x1x4x8x16xbf16>
    %1 = vector.shape_cast %0 : vector<1x1x4x8x16xbf16> to vector<4x8x16xbf16>
    %c0_4 = arith.constant 0 : index
    %c0_5 = arith.constant 0 : index
    %c0_6 = arith.constant 0 : index
    %c1 = arith.constant 1 : index
    %c0_7 = arith.constant 0 : index
    %2 = vector.load %arg2[%c0_4, %c0_5, %c0_6, %c1, %c0_7] : memref<1x1x6x10x16xbf16, #tpu.memory_space<vmem>>, vector<1x1x4x8x16xbf16>
    %3 = vector.shape_cast %2 : vector<1x1x4x8x16xbf16> to vector<4x8x16xbf16>
    %c0_8 = arith.constant 0 : index
    %c0_9 = arith.constant 0 : index
    %c0_10 = arith.constant 0 : index
    %c2 = arith.constant 2 : index
    %c0_11 = arith.constant 0 : index
    %4 = vector.load %arg2[%c0_8, %c0_9, %c0_10, %c2, %c0_11] : memref<1x1x6x10x16xbf16, #tpu.memory_space<vmem>>, vector<1x1x4x8x16xbf16>
    %5 = vector.shape_cast %4 : vector<1x1x4x8x16xbf16> to vector<4x8x16xbf16>
    %c0_12 = arith.constant 0 : index
    %c0_13 = arith.constant 0 : index
    %c1_14 = arith.constant 1 : index
    %c0_15 = arith.constant 0 : index
    %c0_16 = arith.constant 0 : index
    %6 = vector.load %arg2[%c0_12, %c0_13, %c1_14, %c0_15, %c0_16] : memref<1x1x6x10x16xbf16, #tpu.memory_space<vmem>>, vector<1x1x4x8x16xbf16>
    %7 = vector.shape_cast %6 : vector<1x1x4x8x16xbf16> to vector<4x8x16xbf16>
    %c0_17 = arith.constant 0 : index
    %c0_18 = arith.constant 0 : index
    %c1_19 = arith.constant 1 : index
    %c1_20 = arith.constant 1 : index
    %c0_21 = arith.constant 0 : index
    %8 = vector.load %arg2[%c0_17, %c0_18, %c1_19, %c1_20, %c0_21] : memref<1x1x6x10x16xbf16, #tpu.memory_space<vmem>>, vector<1x1x4x8x16xbf16>
    %9 = vector.shape_cast %8 : vector<1x1x4x8x16xbf16> to vector<4x8x16xbf16>
    %c0_22 = arith.constant 0 : index
    %c0_23 = arith.constant 0 : index
    %c1_24 = arith.constant 1 : index
    %c2_25 = arith.constant 2 : index
    %c0_26 = arith.constant 0 : index
    %10 = vector.load %arg2[%c0_22, %c0_23, %c1_24, %c2_25, %c0_26] : memref<1x1x6x10x16xbf16, #tpu.memory_space<vmem>>, vector<1x1x4x8x16xbf16>
    %11 = vector.shape_cast %10 : vector<1x1x4x8x16xbf16> to vector<4x8x16xbf16>
    %c0_27 = arith.constant 0 : index
    %c0_28 = arith.constant 0 : index
    %c2_29 = arith.constant 2 : index
    %c0_30 = arith.constant 0 : index
    %c0_31 = arith.constant 0 : index
    %12 = vector.load %arg2[%c0_27, %c0_28, %c2_29, %c0_30, %c0_31] : memref<1x1x6x10x16xbf16, #tpu.memory_space<vmem>>, vector<1x1x4x8x16xbf16>
    %13 = vector.shape_cast %12 : vector<1x1x4x8x16xbf16> to vector<4x8x16xbf16>
    %c0_32 = arith.constant 0 : index
    %c0_33 = arith.constant 0 : index
    %c2_34 = arith.constant 2 : index
    %c1_35 = arith.constant 1 : index
    %c0_36 = arith.constant 0 : index
    %14 = vector.load %arg2[%c0_32, %c0_33, %c2_34, %c1_35, %c0_36] : memref<1x1x6x10x16xbf16, #tpu.memory_space<vmem>>, vector<1x1x4x8x16xbf16>
    %15 = vector.shape_cast %14 : vector<1x1x4x8x16xbf16> to vector<4x8x16xbf16>
    %c0_37 = arith.constant 0 : index
    %c0_38 = arith.constant 0 : index
    %c2_39 = arith.constant 2 : index
    %c2_40 = arith.constant 2 : index
    %c0_41 = arith.constant 0 : index
    %16 = vector.load %arg2[%c0_37, %c0_38, %c2_39, %c2_40, %c0_41] : memref<1x1x6x10x16xbf16, #tpu.memory_space<vmem>>, vector<1x1x4x8x16xbf16>
    %17 = vector.shape_cast %16 : vector<1x1x4x8x16xbf16> to vector<4x8x16xbf16>
    %18 = tpu.concatenate %1, %3, %5, %7, %9, %11, %13, %15, %17 in 2 : vector<4x8x16xbf16>, vector<4x8x16xbf16>, vector<4x8x16xbf16>, vector<4x8x16xbf16>, vector<4x8x16xbf16>, vector<4x8x16xbf16>, vector<4x8x16xbf16>, vector<4x8x16xbf16>, vector<4x8x16xbf16> -> vector<4x8x144xbf16>
    %19 = vector.shape_cast %18 : vector<4x8x144xbf16> to vector<32x144xbf16>
    %c0_42 = arith.constant 0 : index
    %c0_43 = arith.constant 0 : index
    %20 = vector.load %arg3[%c0_42, %c0_43] : memref<144x16xbf16, #tpu.memory_space<vmem>>, vector<144x16xbf16>
    %cst = arith.constant dense<0.000000e+00> : vector<32x16xf32>
    %21 = tpu.matmul %19, %20, %cst {dimension_numbers = #tpu.dot_dimension_numbers<[1], [0], [0], [1], [0, 0, 1, 1], [], []>} : vector<32x144xbf16>, vector<144x16xbf16>, vector<32x16xf32> -> vector<32x16xf32>
    %c0_44 = arith.constant 0 : index
    %c0_45 = arith.constant 0 : index
    %22 = vector.load %arg4[%c0_44, %c0_45] : memref<1x16xf32, #tpu.memory_space<vmem>>, vector<1x16xf32>
    %23 = vector.broadcast %22 : vector<1x16xf32> to vector<32x16xf32>
    %24 = arith.addf %21, %23 : vector<32x16xf32>
    %c0_46 = arith.constant 0 : index
    %c0_47 = arith.constant 0 : index
    %c0_48 = arith.constant 0 : index
    %c0_49 = arith.constant 0 : index
    %25 = vector.load %arg5[%c0_46, %c0_47, %c0_48, %c0_49] : memref<1x1x32x16xbf16, #tpu.memory_space<vmem>>, vector<1x1x32x16xbf16>
    %26 = vector.shape_cast %25 : vector<1x1x32x16xbf16> to vector<32x16xbf16>
    %27 = arith.extf %26 : vector<32x16xbf16> to vector<32x16xf32>
    %28 = arith.addf %24, %27 : vector<32x16xf32>
    %cst_50 = arith.constant 0.000000e+00 : f32
    %29 = vector.broadcast %cst_50 : f32 to vector<32x16xf32>
    %30 = arith.maximumf %28, %29 : vector<32x16xf32>
    %31 = arith.truncf %30 : vector<32x16xf32> to vector<32x16xbf16>
    %c0_51 = arith.constant 0 : index
    %c0_52 = arith.constant 0 : index
    %c0_53 = arith.constant 0 : index
    %c0_54 = arith.constant 0 : index
    %32 = vector.load %arg6[%c0_51, %c0_52, %c0_53, %c0_54] : memref<1x1x32x16xbf16, #tpu.memory_space<vmem>>, vector<1x1x32x16xbf16>
    %33 = vector.shape_cast %32 : vector<1x1x32x16xbf16> to vector<32x16xbf16>
    %34 = vector.shape_cast %31 : vector<32x16xbf16> to vector<1x1x32x16xbf16>
    tpu.vector_store %arg6[%c0_51, %c0_52, %c0_53, %c0_54], %34 {strides = array<i32>} : memref<1x1x32x16xbf16, #tpu.memory_space<vmem>>, vector<1x1x32x16xbf16>,
    return
  }
  func.func @transform_0(%arg0: i32, %arg1: i32) -> (i32, i32, i32, i32, i32) {
    %c0_i32 = arith.constant 0 : i32
    %c0_i32_0 = arith.constant 0 : i32
    %c0_i32_1 = arith.constant 0 : i32
    %c0_i32_2 = arith.constant 0 : i32
    return %arg0, %arg1, %c0_i32, %c0_i32_0, %c0_i32_1 : i32, i32, i32, i32, i32
  }
  func.func @transform_1(%arg0: i32, %arg1: i32) -> (i32, i32) {
    %c0_i32 = arith.constant 0 : i32
    %c0_i32_0 = arith.constant 0 : i32
    %c0_i32_1 = arith.constant 0 : i32
    return %c0_i32, %c0_i32_0 : i32, i32
  }
  func.func @transform_2(%arg0: i32, %arg1: i32) -> (i32, i32) {
    %c0_i32 = arith.constant 0 : i32
    %c0_i32_0 = arith.constant 0 : i32
    %c0_i32_1 = arith.constant 0 : i32
    return %c0_i32, %c0_i32_0 : i32, i32
  }
  func.func @transform_3(%arg0: i32, %arg1: i32) -> (i32, i32, i32, i32) {
    %c0_i32 = arith.constant 0 : i32
    %c0_i32_0 = arith.constant 0 : i32
    %c0_i32_1 = arith.constant 0 : i32
    return %arg0, %arg1, %c0_i32, %c0_i32_0 : i32, i32, i32, i32
  }
  func.func @transform_4(%arg0: i32, %arg1: i32) -> (i32, i32, i32, i32) {
    %c0_i32 = arith.constant 0 : i32
    %c0_i32_0 = arith.constant 0 : i32
    %c0_i32_1 = arith.constant 0 : i32
    return %arg0, %arg1, %c0_i32, %c0_i32_0 : i32, i32, i32, i32
  }
}

module attributes {stable_mosaic.version = 11 : i64} {
  func.func @kernel(%arg0: i32, %arg1: i32, %arg2: memref<1x1x6x10x16xbf16, #tpu.memory_space<vmem>>, %arg3: memref<144x16xbf16, #tpu.memory_space<vmem>>, %arg4: memref<1x16xf32, #tpu.memory_space<vmem>>, %arg5: memref<1x1x32x16xbf16, #tpu.memory_space<vmem>>) attributes {dimension_semantics = [#tpu.dimension_semantics<parallel>, #tpu.dimension_semantics<parallel>], iteration_bounds = array<i64: 2, 2>, scalar_prefetch = 0 : i64, scratch_operands = 0 : i64, tpu.core_type = #tpu.core_type<tc>, window_params = [{transform_indices = @transform_0, window_bounds = array<i64: 1, 1, 6, 10, 16>}, {pipeline_mode = #tpu.pipeline_mode<synchronous>, transform_indices = @transform_1, window_bounds = array<i64: 144, 16>}, {pipeline_mode = #tpu.pipeline_mode<synchronous>, transform_indices = @transform_2, window_bounds = array<i64: 1, 16>}, {transform_indices = @transform_3, window_bounds = array<i64: 1, 1, 32, 16>}]} {
    %c0 = arith.constant 0 : index
    %c0_0 = arith.constant 0 : index
    %c0_1 = arith.constant 0 : index
    %c0_2 = arith.constant 0 : index
    %c0_3 = arith.constant 0 : index
    %0 = vector.load %arg2[%c0, %c0_0, %c0_1, %c0_2, %c0_3] : memref<1x1x6x10x16xbf16, #tpu.memory_space<vmem>>, vector<1x1x4x8x16xbf16>
    %1 = vector.shape_cast %0 : vector<1x1x4x8x16xbf16> to vector<4x8x16xbf16>
    %c0_4 = arith.constant 0 : index
    %c0_5 = arith.constant 0 : index
    %c0_6 = arith.constant 0 : index
    %c1 = arith.constant 1 : index
    %c0_7 = arith.constant 0 : index
    %2 = vector.load %arg2[%c0_4, %c0_5, %c0_6, %c1, %c0_7] : memref<1x1x6x10x16xbf16, #tpu.memory_space<vmem>>, vector<1x1x4x8x16xbf16>
    %3 = vector.shape_cast %2 : vector<1x1x4x8x16xbf16> to vector<4x8x16xbf16>
    %c0_8 = arith.constant 0 : index
    %c0_9 = arith.constant 0 : index
    %c0_10 = arith.constant 0 : index
    %c2 = arith.constant 2 : index
    %c0_11 = arith.constant 0 : index
    %4 = vector.load %arg2[%c0_8, %c0_9, %c0_10, %c2, %c0_11] : memref<1x1x6x10x16xbf16, #tpu.memory_space<vmem>>, vector<1x1x4x8x16xbf16>
    %5 = vector.shape_cast %4 : vector<1x1x4x8x16xbf16> to vector<4x8x16xbf16>
    %c0_12 = arith.constant 0 : index
    %c0_13 = arith.constant 0 : index
    %c1_14 = arith.constant 1 : index
    %c0_15 = arith.constant 0 : index
    %c0_16 = arith.constant 0 : index
    %6 = vector.load %arg2[%c0_12, %c0_13, %c1_14, %c0_15, %c0_16] : memref<1x1x6x10x16xbf16, #tpu.memory_space<vmem>>, vector<1x1x4x8x16xbf16>
    %7 = vector.shape_cast %6 : vector<1x1x4x8x16xbf16> to vector<4x8x16xbf16>
    %c0_17 = arith.constant 0 : index
    %c0_18 = arith.constant 0 : index
    %c1_19 = arith.constant 1 : index
    %c1_20 = arith.constant 1 : index
    %c0_21 = arith.constant 0 : index
    %8 = vector.load %arg2[%c0_17, %c0_18, %c1_19, %c1_20, %c0_21] : memref<1x1x6x10x16xbf16, #tpu.memory_space<vmem>>, vector<1x1x4x8x16xbf16>
    %9 = vector.shape_cast %8 : vector<1x1x4x8x16xbf16> to vector<4x8x16xbf16>
    %c0_22 = arith.constant 0 : index
    %c0_23 = arith.constant 0 : index
    %c1_24 = arith.constant 1 : index
    %c2_25 = arith.constant 2 : index
    %c0_26 = arith.constant 0 : index
    %10 = vector.load %arg2[%c0_22, %c0_23, %c1_24, %c2_25, %c0_26] : memref<1x1x6x10x16xbf16, #tpu.memory_space<vmem>>, vector<1x1x4x8x16xbf16>
    %11 = vector.shape_cast %10 : vector<1x1x4x8x16xbf16> to vector<4x8x16xbf16>
    %c0_27 = arith.constant 0 : index
    %c0_28 = arith.constant 0 : index
    %c2_29 = arith.constant 2 : index
    %c0_30 = arith.constant 0 : index
    %c0_31 = arith.constant 0 : index
    %12 = vector.load %arg2[%c0_27, %c0_28, %c2_29, %c0_30, %c0_31] : memref<1x1x6x10x16xbf16, #tpu.memory_space<vmem>>, vector<1x1x4x8x16xbf16>
    %13 = vector.shape_cast %12 : vector<1x1x4x8x16xbf16> to vector<4x8x16xbf16>
    %c0_32 = arith.constant 0 : index
    %c0_33 = arith.constant 0 : index
    %c2_34 = arith.constant 2 : index
    %c1_35 = arith.constant 1 : index
    %c0_36 = arith.constant 0 : index
    %14 = vector.load %arg2[%c0_32, %c0_33, %c2_34, %c1_35, %c0_36] : memref<1x1x6x10x16xbf16, #tpu.memory_space<vmem>>, vector<1x1x4x8x16xbf16>
    %15 = vector.shape_cast %14 : vector<1x1x4x8x16xbf16> to vector<4x8x16xbf16>
    %c0_37 = arith.constant 0 : index
    %c0_38 = arith.constant 0 : index
    %c2_39 = arith.constant 2 : index
    %c2_40 = arith.constant 2 : index
    %c0_41 = arith.constant 0 : index
    %16 = vector.load %arg2[%c0_37, %c0_38, %c2_39, %c2_40, %c0_41] : memref<1x1x6x10x16xbf16, #tpu.memory_space<vmem>>, vector<1x1x4x8x16xbf16>
    %17 = vector.shape_cast %16 : vector<1x1x4x8x16xbf16> to vector<4x8x16xbf16>
    %18 = tpu.concatenate %1, %3, %5, %7, %9, %11, %13, %15, %17 in 2 : vector<4x8x16xbf16>, vector<4x8x16xbf16>, vector<4x8x16xbf16>, vector<4x8x16xbf16>, vector<4x8x16xbf16>, vector<4x8x16xbf16>, vector<4x8x16xbf16>, vector<4x8x16xbf16>, vector<4x8x16xbf16> -> vector<4x8x144xbf16>
    %19 = vector.shape_cast %18 : vector<4x8x144xbf16> to vector<32x144xbf16>
    %c0_42 = arith.constant 0 : index
    %c0_43 = arith.constant 0 : index
    %20 = vector.load %arg3[%c0_42, %c0_43] : memref<144x16xbf16, #tpu.memory_space<vmem>>, vector<144x16xbf16>
    %cst = arith.constant dense<0.000000e+00> : vector<32x16xf32>
    %21 = tpu.matmul %19, %20, %cst {dimension_numbers = #tpu.dot_dimension_numbers<[1], [0], [0], [1], [0, 0, 1, 1], [], []>} : vector<32x144xbf16>, vector<144x16xbf16>, vector<32x16xf32> -> vector<32x16xf32>
    %c0_44 = arith.constant 0 : index
    %c0_45 = arith.constant 0 : index
    %22 = vector.load %arg4[%c0_44, %c0_45] : memref<1x16xf32, #tpu.memory_space<vmem>>, vector<1x16xf32>
    %23 = vector.broadcast %22 : vector<1x16xf32> to vector<32x16xf32>
    %24 = arith.addf %21, %23 : vector<32x16xf32>
    %cst_46 = arith.constant 0.000000e+00 : f32
    %25 = vector.broadcast %cst_46 : f32 to vector<32x16xf32>
    %26 = arith.maximumf %24, %25 : vector<32x16xf32>
    %27 = arith.truncf %26 : vector<32x16xf32> to vector<32x16xbf16>
    %c0_47 = arith.constant 0 : index
    %c0_48 = arith.constant 0 : index
    %c0_49 = arith.constant 0 : index
    %c0_50 = arith.constant 0 : index
    %28 = vector.load %arg5[%c0_47, %c0_48, %c0_49, %c0_50] : memref<1x1x32x16xbf16, #tpu.memory_space<vmem>>, vector<1x1x32x16xbf16>
    %29 = vector.shape_cast %28 : vector<1x1x32x16xbf16> to vector<32x16xbf16>
    %30 = vector.shape_cast %27 : vector<32x16xbf16> to vector<1x1x32x16xbf16>
    tpu.vector_store %arg5[%c0_47, %c0_48, %c0_49, %c0_50], %30 {strides = array<i32>} : memref<1x1x32x16xbf16, #tpu.memory_space<vmem>>, vector<1x1x32x16xbf16>,
    return
  }
  func.func @transform_0(%arg0: i32, %arg1: i32) -> (i32, i32, i32, i32, i32) {
    %c0_i32 = arith.constant 0 : i32
    %c0_i32_0 = arith.constant 0 : i32
    %c0_i32_1 = arith.constant 0 : i32
    %c0_i32_2 = arith.constant 0 : i32
    return %arg0, %arg1, %c0_i32, %c0_i32_0, %c0_i32_1 : i32, i32, i32, i32, i32
  }
  func.func @transform_1(%arg0: i32, %arg1: i32) -> (i32, i32) {
    %c0_i32 = arith.constant 0 : i32
    %c0_i32_0 = arith.constant 0 : i32
    %c0_i32_1 = arith.constant 0 : i32
    return %c0_i32, %c0_i32_0 : i32, i32
  }
  func.func @transform_2(%arg0: i32, %arg1: i32) -> (i32, i32) {
    %c0_i32 = arith.constant 0 : i32
    %c0_i32_0 = arith.constant 0 : i32
    %c0_i32_1 = arith.constant 0 : i32
    return %c0_i32, %c0_i32_0 : i32, i32
  }
  func.func @transform_3(%arg0: i32, %arg1: i32) -> (i32, i32, i32, i32) {
    %c0_i32 = arith.constant 0 : i32
    %c0_i32_0 = arith.constant 0 : i32
    %c0_i32_1 = arith.constant 0 : i32
    return %arg0, %arg1, %c0_i32, %c0_i32_0 : i32, i32, i32, i32
  }
}

module attributes {stable_mosaic.version = 11 : i64} {
  func.func @kernel(%arg0: i32, %arg1: i32, %arg2: memref<1x1x6x10x16xbf16, #tpu.memory_space<vmem>>, %arg3: memref<144x16xbf16, #tpu.memory_space<vmem>>, %arg4: memref<1x16xf32, #tpu.memory_space<vmem>>, %arg5: memref<1x1x32x4xbf16, #tpu.memory_space<vmem>>, %arg6: memref<4x16xbf16, #tpu.memory_space<vmem>>, %arg7: memref<1x1x32x16xbf16, #tpu.memory_space<vmem>>) attributes {dimension_semantics = [#tpu.dimension_semantics<parallel>, #tpu.dimension_semantics<parallel>], iteration_bounds = array<i64: 2, 2>, scalar_prefetch = 0 : i64, scratch_operands = 0 : i64, tpu.core_type = #tpu.core_type<tc>, window_params = [{transform_indices = @transform_0, window_bounds = array<i64: 1, 1, 6, 10, 16>}, {pipeline_mode = #tpu.pipeline_mode<synchronous>, transform_indices = @transform_1, window_bounds = array<i64: 144, 16>}, {pipeline_mode = #tpu.pipeline_mode<synchronous>, transform_indices = @transform_2, window_bounds = array<i64: 1, 16>}, {transform_indices = @transform_3, window_bounds = array<i64: 1, 1, 32, 4>}, {pipeline_mode = #tpu.pipeline_mode<synchronous>, transform_indices = @transform_4, window_bounds = array<i64: 4, 16>}, {transform_indices = @transform_5, window_bounds = array<i64: 1, 1, 32, 16>}]} {
    %c0 = arith.constant 0 : index
    %c0_0 = arith.constant 0 : index
    %c0_1 = arith.constant 0 : index
    %c0_2 = arith.constant 0 : index
    %c0_3 = arith.constant 0 : index
    %0 = vector.load %arg2[%c0, %c0_0, %c0_1, %c0_2, %c0_3] : memref<1x1x6x10x16xbf16, #tpu.memory_space<vmem>>, vector<1x1x4x8x16xbf16>
    %1 = vector.shape_cast %0 : vector<1x1x4x8x16xbf16> to vector<4x8x16xbf16>
    %c0_4 = arith.constant 0 : index
    %c0_5 = arith.constant 0 : index
    %c0_6 = arith.constant 0 : index
    %c1 = arith.constant 1 : index
    %c0_7 = arith.constant 0 : index
    %2 = vector.load %arg2[%c0_4, %c0_5, %c0_6, %c1, %c0_7] : memref<1x1x6x10x16xbf16, #tpu.memory_space<vmem>>, vector<1x1x4x8x16xbf16>
    %3 = vector.shape_cast %2 : vector<1x1x4x8x16xbf16> to vector<4x8x16xbf16>
    %c0_8 = arith.constant 0 : index
    %c0_9 = arith.constant 0 : index
    %c0_10 = arith.constant 0 : index
    %c2 = arith.constant 2 : index
    %c0_11 = arith.constant 0 : index
    %4 = vector.load %arg2[%c0_8, %c0_9, %c0_10, %c2, %c0_11] : memref<1x1x6x10x16xbf16, #tpu.memory_space<vmem>>, vector<1x1x4x8x16xbf16>
    %5 = vector.shape_cast %4 : vector<1x1x4x8x16xbf16> to vector<4x8x16xbf16>
    %c0_12 = arith.constant 0 : index
    %c0_13 = arith.constant 0 : index
    %c1_14 = arith.constant 1 : index
    %c0_15 = arith.constant 0 : index
    %c0_16 = arith.constant 0 : index
    %6 = vector.load %arg2[%c0_12, %c0_13, %c1_14, %c0_15, %c0_16] : memref<1x1x6x10x16xbf16, #tpu.memory_space<vmem>>, vector<1x1x4x8x16xbf16>
    %7 = vector.shape_cast %6 : vector<1x1x4x8x16xbf16> to vector<4x8x16xbf16>
    %c0_17 = arith.constant 0 : index
    %c0_18 = arith.constant 0 : index
    %c1_19 = arith.constant 1 : index
    %c1_20 = arith.constant 1 : index
    %c0_21 = arith.constant 0 : index
    %8 = vector.load %arg2[%c0_17, %c0_18, %c1_19, %c1_20, %c0_21] : memref<1x1x6x10x16xbf16, #tpu.memory_space<vmem>>, vector<1x1x4x8x16xbf16>
    %9 = vector.shape_cast %8 : vector<1x1x4x8x16xbf16> to vector<4x8x16xbf16>
    %c0_22 = arith.constant 0 : index
    %c0_23 = arith.constant 0 : index
    %c1_24 = arith.constant 1 : index
    %c2_25 = arith.constant 2 : index
    %c0_26 = arith.constant 0 : index
    %10 = vector.load %arg2[%c0_22, %c0_23, %c1_24, %c2_25, %c0_26] : memref<1x1x6x10x16xbf16, #tpu.memory_space<vmem>>, vector<1x1x4x8x16xbf16>
    %11 = vector.shape_cast %10 : vector<1x1x4x8x16xbf16> to vector<4x8x16xbf16>
    %c0_27 = arith.constant 0 : index
    %c0_28 = arith.constant 0 : index
    %c2_29 = arith.constant 2 : index
    %c0_30 = arith.constant 0 : index
    %c0_31 = arith.constant 0 : index
    %12 = vector.load %arg2[%c0_27, %c0_28, %c2_29, %c0_30, %c0_31] : memref<1x1x6x10x16xbf16, #tpu.memory_space<vmem>>, vector<1x1x4x8x16xbf16>
    %13 = vector.shape_cast %12 : vector<1x1x4x8x16xbf16> to vector<4x8x16xbf16>
    %c0_32 = arith.constant 0 : index
    %c0_33 = arith.constant 0 : index
    %c2_34 = arith.constant 2 : index
    %c1_35 = arith.constant 1 : index
    %c0_36 = arith.constant 0 : index
    %14 = vector.load %arg2[%c0_32, %c0_33, %c2_34, %c1_35, %c0_36] : memref<1x1x6x10x16xbf16, #tpu.memory_space<vmem>>, vector<1x1x4x8x16xbf16>
    %15 = vector.shape_cast %14 : vector<1x1x4x8x16xbf16> to vector<4x8x16xbf16>
    %c0_37 = arith.constant 0 : index
    %c0_38 = arith.constant 0 : index
    %c2_39 = arith.constant 2 : index
    %c2_40 = arith.constant 2 : index
    %c0_41 = arith.constant 0 : index
    %16 = vector.load %arg2[%c0_37, %c0_38, %c2_39, %c2_40, %c0_41] : memref<1x1x6x10x16xbf16, #tpu.memory_space<vmem>>, vector<1x1x4x8x16xbf16>
    %17 = vector.shape_cast %16 : vector<1x1x4x8x16xbf16> to vector<4x8x16xbf16>
    %18 = tpu.concatenate %1, %3, %5, %7, %9, %11, %13, %15, %17 in 2 : vector<4x8x16xbf16>, vector<4x8x16xbf16>, vector<4x8x16xbf16>, vector<4x8x16xbf16>, vector<4x8x16xbf16>, vector<4x8x16xbf16>, vector<4x8x16xbf16>, vector<4x8x16xbf16>, vector<4x8x16xbf16> -> vector<4x8x144xbf16>
    %19 = vector.shape_cast %18 : vector<4x8x144xbf16> to vector<32x144xbf16>
    %c0_42 = arith.constant 0 : index
    %c0_43 = arith.constant 0 : index
    %20 = vector.load %arg3[%c0_42, %c0_43] : memref<144x16xbf16, #tpu.memory_space<vmem>>, vector<144x16xbf16>
    %cst = arith.constant dense<0.000000e+00> : vector<32x16xf32>
    %21 = tpu.matmul %19, %20, %cst {dimension_numbers = #tpu.dot_dimension_numbers<[1], [0], [0], [1], [0, 0, 1, 1], [], []>} : vector<32x144xbf16>, vector<144x16xbf16>, vector<32x16xf32> -> vector<32x16xf32>
    %c0_44 = arith.constant 0 : index
    %c0_45 = arith.constant 0 : index
    %22 = vector.load %arg4[%c0_44, %c0_45] : memref<1x16xf32, #tpu.memory_space<vmem>>, vector<1x16xf32>
    %23 = vector.broadcast %22 : vector<1x16xf32> to vector<32x16xf32>
    %24 = arith.addf %21, %23 : vector<32x16xf32>
    %c0_46 = arith.constant 0 : index
    %c0_47 = arith.constant 0 : index
    %c0_48 = arith.constant 0 : index
    %c0_49 = arith.constant 0 : index
    %25 = vector.load %arg5[%c0_46, %c0_47, %c0_48, %c0_49] : memref<1x1x32x4xbf16, #tpu.memory_space<vmem>>, vector<1x1x32x4xbf16>
    %26 = vector.shape_cast %25 : vector<1x1x32x4xbf16> to vector<32x4xbf16>
    %c0_50 = arith.constant 0 : index
    %c0_51 = arith.constant 0 : index
    %27 = vector.load %arg6[%c0_50, %c0_51] : memref<4x16xbf16, #tpu.memory_space<vmem>>, vector<4x16xbf16>
    %cst_52 = arith.constant dense<0.000000e+00> : vector<32x16xf32>
    %28 = tpu.matmul %26, %27, %cst_52 {dimension_numbers = #tpu.dot_dimension_numbers<[1], [0], [0], [1], [0, 0, 1, 1], [], []>} : vector<32x4xbf16>, vector<4x16xbf16>, vector<32x16xf32> -> vector<32x16xf32>
    %29 = arith.addf %24, %28 : vector<32x16xf32>
    %cst_53 = arith.constant 0.000000e+00 : f32
    %30 = vector.broadcast %cst_53 : f32 to vector<32x16xf32>
    %31 = arith.maximumf %29, %30 : vector<32x16xf32>
    %32 = arith.truncf %31 : vector<32x16xf32> to vector<32x16xbf16>
    %c0_54 = arith.constant 0 : index
    %c0_55 = arith.constant 0 : index
    %c0_56 = arith.constant 0 : index
    %c0_57 = arith.constant 0 : index
    %33 = vector.load %arg7[%c0_54, %c0_55, %c0_56, %c0_57] : memref<1x1x32x16xbf16, #tpu.memory_space<vmem>>, vector<1x1x32x16xbf16>
    %34 = vector.shape_cast %33 : vector<1x1x32x16xbf16> to vector<32x16xbf16>
    %35 = vector.shape_cast %32 : vector<32x16xbf16> to vector<1x1x32x16xbf16>
    tpu.vector_store %arg7[%c0_54, %c0_55, %c0_56, %c0_57], %35 {strides = array<i32>} : memref<1x1x32x16xbf16, #tpu.memory_space<vmem>>, vector<1x1x32x16xbf16>,
    return
  }
  func.func @transform_0(%arg0: i32, %arg1: i32) -> (i32, i32, i32, i32, i32) {
    %c0_i32 = arith.constant 0 : i32
    %c0_i32_0 = arith.constant 0 : i32
    %c0_i32_1 = arith.constant 0 : i32
    %c0_i32_2 = arith.constant 0 : i32
    return %arg0, %arg1, %c0_i32, %c0_i32_0, %c0_i32_1 : i32, i32, i32, i32, i32
  }
  func.func @transform_1(%arg0: i32, %arg1: i32) -> (i32, i32) {
    %c0_i32 = arith.constant 0 : i32
    %c0_i32_0 = arith.constant 0 : i32
    %c0_i32_1 = arith.constant 0 : i32
    return %c0_i32, %c0_i32_0 : i32, i32
  }
  func.func @transform_2(%arg0: i32, %arg1: i32) -> (i32, i32) {
    %c0_i32 = arith.constant 0 : i32
    %c0_i32_0 = arith.constant 0 : i32
    %c0_i32_1 = arith.constant 0 : i32
    return %c0_i32, %c0_i32_0 : i32, i32
  }
  func.func @transform_3(%arg0: i32, %arg1: i32) -> (i32, i32, i32, i32) {
    %c0_i32 = arith.constant 0 : i32
    %c0_i32_0 = arith.constant 0 : i32
    %c0_i32_1 = arith.constant 0 : i32
    return %arg0, %arg1, %c0_i32, %c0_i32_0 : i32, i32, i32, i32
  }
  func.func @transform_4(%arg0: i32, %arg1: i32) -> (i32, i32) {
    %c0_i32 = arith.constant 0 : i32
    %c0_i32_0 = arith.constant 0 : i32
    %c0_i32_1 = arith.constant 0 : i32
    return %c0_i32, %c0_i32_0 : i32, i32
  }
  func.func @transform_5(%arg0: i32, %arg1: i32) -> (i32, i32, i32, i32) {
    %c0_i32 = arith.constant 0 : i32
    %c0_i32_0 = arith.constant 0 : i32
    %c0_i32_1 = arith.constant 0 : i32
    return %arg0, %arg1, %c0_i32, %c0_i32_0 : i32, i32, i32, i32
  }
}

</mosaic_0001>

<llo_original>
// kernel: _lambda_.4
$region0: #{_lambda_.4}
  #allocation0 [shape = 'u32[]', space=smem, size = 0x4, offset = 0x4, fixed_abs, tag = 'smem constant byte address 0x4 - core index']
  #allocation1 [shape = 'u32[144,128]{1,0:T(1,128)}', space=vmem, size = 0x12000, scoped, tag = 'internal scratch']
  %s0 = inlined_call_operand.vmem [shape: bf16[2,2,20,9,4], index: 0, kind: input, shape index: {}]
  %s1 = inlined_call_operand.vmem [shape: bf16[36,16], index: 1, kind: input, shape index: {}]
  %s2 = inlined_call_operand.vmem [shape: f32[1,16], index: 2, kind: input, shape index: {}]
  %s3 = inlined_call_operand.vmem [shape: bf16[2,2,32,16], index: 3, kind: output, shape index: {}]
  %s4 = sld [smem:[#allocation0]]
  $region45: #{_lambda_.4} parent=0
    _
  %s6 = ssub.s32 1, %s4
  %s7 = scalar_select 0, %s6, %s4
  loop: start=0, step=1, limit=6
  $region2: #{_lambda_.4} parent=0 // loop_pre_header
    _
  $region3: #{_lambda_.4} parent=0 // loop_header
    %s9 = sphi 0, %s13
    %p10 = scmp.ge.s32.totalorder %s9, 6
    %s16 = sphi 0, %s28
    %s17 = sphi 0, %s24
    %s18 = sphi 0, %s16
    %s19 = sphi 0, %s17
    %s20 = sphi 0, %s18
    %s21 = sphi 0, %s19
    %s33 = sphi 0, %s35
    %s36 = sphi 0, %s33
    %s37 = sphi 0, %s36
    %s53 = sphi 0, %s37
    %s57 = sphi 0, %s57
    %s59 = sphi 0, %s57
    %s60 = sphi 0, %s59
    %s74 = sphi 0, %s60
    %s78 = sphi 0, %s78
    %s80 = sphi 0, %s78
    %s81 = sphi 0, %s80
    %s95 = sphi 0, %s81
    %s103 = sphi 0, %s105
    %s106 = sphi 0, %s103
    %s107 = sphi 0, %s106
    %s123 = sphi 0, %s107
  $region4: #{_lambda_.4} parent=0 // loop_header_branch
    %12 = sbr.rel (%p10) target = $region8
  $region5: #{_lambda_.4} parent=0 // loop_body
    %s14 = ssub.s32 %s9, 1
    %s15 = ssub.s32 %s9, 2
    %s22 = sadd.s32 1, %s17
    %p23 = scmp.ge.s32.totalorder %s22, 2
    %s24 = scalar_select %p23, 0, %s22
    %s25 = sadd.s32 1, %s16
    %s26 = scalar_select %p23, %s25, %s16
    %p27 = scmp.ge.s32.totalorder %s26, 2
    %s28 = scalar_select %p27, 0, %s26
    %s29 = ssub.s32 %s16, %s28
    %s30 = ssub.s32 %s17, %s24
    %s31 = sor.u32 %s29, %s30
    %p32 = scmp.eq.s32.totalorder %s31, 0
    %s34 = sadd.s32 %s33, 1
    %s35 = scalar_select %p32, %s33, %s34
    %p38 = pneg %p32
    %p39 = scmp.eq.s32.totalorder %s9, 3
    %p40 = por %p38, %p39
    %p41 = scmp.ne.s32.totalorder %s33, %s36
    %p42 = scmp.eq.s32.totalorder %s9, 0
    %p43 = por %p41, %p42
    %p44 = scmp.ne.s32.totalorder %s33, %s36
    %p45 = scmp.eq.s32.totalorder %s14, 3
    %p46 = por %p44, %p45
    %p47 = scmp.ne.s32.totalorder %s36, %s37
    %p48 = scmp.eq.s32.totalorder %s14, 0
    %p49 = por %p47, %p48
    %p50 = scmp.ne.s32.totalorder %s36, %s37
    %p51 = scmp.eq.s32.totalorder %s15, 3
    %p52 = por %p50, %p51
    %p54 = scmp.ne.s32.totalorder %s37, %s53
    %p55 = scmp.eq.s32.totalorder %s15, 0
    %p56 = por %p54, %p55
    %s58 = sadd.s32 %s57, 1
    %p61 = scmp.eq.s32.totalorder %s9, 3
    %p62 = scmp.ne.s32.totalorder %s57, %s59
    %p63 = scmp.eq.s32.totalorder %s9, 0
    %p64 = por %p62, %p63
    %p65 = scmp.ne.s32.totalorder %s57, %s59
    %p66 = scmp.eq.s32.totalorder %s14, 3
    %p67 = por %p65, %p66
    %p68 = scmp.ne.s32.totalorder %s59, %s60
    %p69 = scmp.eq.s32.totalorder %s14, 0
    %p70 = por %p68, %p69
    %p71 = scmp.ne.s32.totalorder %s59, %s60
    %p72 = scmp.eq.s32.totalorder %s15, 3
    %p73 = por %p71, %p72
    %p75 = scmp.ne.s32.totalorder %s60, %s74
    %p76 = scmp.eq.s32.totalorder %s15, 0
    %p77 = por %p75, %p76
    %s79 = sadd.s32 %s78, 1
    %p82 = scmp.eq.s32.totalorder %s9, 3
    %p83 = scmp.ne.s32.totalorder %s78, %s80
    %p84 = scmp.eq.s32.totalorder %s9, 0
    %p85 = por %p83, %p84
    %p86 = scmp.ne.s32.totalorder %s78, %s80
    %p87 = scmp.eq.s32.totalorder %s14, 3
    %p88 = por %p86, %p87
    %p89 = scmp.ne.s32.totalorder %s80, %s81
    %p90 = scmp.eq.s32.totalorder %s14, 0
    %p91 = por %p89, %p90
    %p92 = scmp.ne.s32.totalorder %s80, %s81
    %p93 = scmp.eq.s32.totalorder %s15, 3
    %p94 = por %p92, %p93
    %p96 = scmp.ne.s32.totalorder %s81, %s95
    %p97 = scmp.eq.s32.totalorder %s15, 0
    %p98 = por %p96, %p97
    %s99 = ssub.s32 %s16, %s28
    %s100 = ssub.s32 %s17, %s24
    %s101 = sor.u32 %s99, %s100
    %p102 = scmp.eq.s32.totalorder %s101, 0
    %s104 = sadd.s32 %s103, 1
    %s105 = scalar_select %p102, %s103, %s104
    %p108 = pneg %p102
    %p109 = scmp.eq.s32.totalorder %s9, 3
    %p110 = por %p108, %p109
    %p111 = scmp.ne.s32.totalorder %s103, %s106
    %p112 = scmp.eq.s32.totalorder %s9, 0
    %p113 = por %p111, %p112
    %p114 = scmp.ne.s32.totalorder %s103, %s106
    %p115 = scmp.eq.s32.totalorder %s14, 3
    %p116 = por %p114, %p115
    %p117 = scmp.ne.s32.totalorder %s106, %s107
    %p118 = scmp.eq.s32.totalorder %s14, 0
    %p119 = por %p117, %p118
    %p120 = scmp.ne.s32.totalorder %s106, %s107
    %p121 = scmp.eq.s32.totalorder %s15, 3
    %p122 = por %p120, %p121
    %p124 = scmp.ne.s32.totalorder %s107, %s123
    %p125 = scmp.eq.s32.totalorder %s15, 0
    %p126 = por %p124, %p125
    %p127 = scmp.le.s32.totalorder 1, %s9
    %p128 = scmp.lt.s32.totalorder %s9, 5
    %p129 = pnand %p127, %p128
    %p130 = pneg %p129
    // Predicated region
    $region9: #{_lambda_.4} parent=5 // pred_check
      _
    $region10: #{_lambda_.4} parent=5 // pred_check_branch
      %132 = sbr.rel (%p129) target = $region12
    $region11: #{_lambda_.4} parent=5 // pred_region
      %s133 = ssub.s32 %s9, 1
      // Predicated region
      $region13: #{_lambda_.4} parent=11 // pred_check
        %p134 = pneg %p70
      $region14: #{_lambda_.4} parent=11 // pred_check_branch
        %136 = sbr.rel (%p134) target = $region16
      $region15: #{_lambda_.4} parent=11 // pred_region
        _
      $region16: #{_lambda_.4} parent=11 // pred_fallthru
        _
      // Predicated region
      $region17: #{_lambda_.4} parent=11 // pred_check
        %p137 = pneg %p91
      $region18: #{_lambda_.4} parent=11 // pred_check_branch
        %139 = sbr.rel (%p137) target = $region20
      $region19: #{_lambda_.4} parent=11 // pred_region
        _
      $region20: #{_lambda_.4} parent=11 // pred_fallthru
        _
    $region12: #{_lambda_.4} parent=5 // pred_fallthru
      _
    %p140 = scmp.lt.s32.totalorder %s9, 4
    // Predicated region
    $region21: #{_lambda_.4} parent=5 // pred_check
      %p141 = pneg %p140
    $region22: #{_lambda_.4} parent=5 // pred_check_branch
      %143 = sbr.rel (%p141) target = $region24
    $region23: #{_lambda_.4} parent=5 // pred_region
      // Predicated region
      $region25: #{_lambda_.4} parent=23 // pred_check
        %p144 = pneg %p43
      $region26: #{_lambda_.4} parent=23 // pred_check_branch
        %146 = sbr.rel (%p144) target = $region28
      $region27: #{_lambda_.4} parent=23 // pred_region
        %p147 = scmp.lt.s32.totalorder %s16, 1
        %s148 = scalar_select %p147, %s16, 1
        %p149 = scmp.lt.s32.totalorder %s17, 1
        %s150 = scalar_select %p149, %s17, 1
        %s151 = smul.addr %s150, 40
        %s152 = smul.addr %s148, 80
        %s153 = sadd.s32 %s151, %s152
        %s154 = smul.addr %s153, 4
        %s155 = scalar_lea.vmem %s0, %s154
      $region28: #{_lambda_.4} parent=23 // pred_fallthru
        _
    $region24: #{_lambda_.4} parent=5 // pred_fallthru
      _
    %p156 = scmp.le.s32.totalorder 1, %s9
    %p157 = scmp.lt.s32.totalorder %s9, 5
    %p158 = pnand %p156, %p157
    %p159 = pneg %p158
    // Predicated region
    $region29: #{_lambda_.4} parent=5 // pred_check
      _
    $region30: #{_lambda_.4} parent=5 // pred_check_branch
      %161 = sbr.rel (%p158) target = $region32
    $region31: #{_lambda_.4} parent=5 // pred_region
      %s162 = ssub.s32 %s9, 1
      %p163 = scmp.lt.s32.totalorder %s18, 1
      %s164 = scalar_select %p163, %s18, 1
      %p165 = scmp.lt.s32.totalorder %s19, 1
      %s166 = scalar_select %p165, %s19, 1
      %s167 = smul.addr %s166, 40
      %s168 = smul.addr %s164, 80
      %s169 = sadd.s32 %s167, %s168
      %s170 = smul.addr %s169, 4
      %s171 = scalar_lea.vmem %s0, %s170
      %p172 = pneg %p49
      %p173 = pneg %p46
      %p174 = pneg %p70
      %p175 = pneg %p67
      %p176 = pneg %p91
      %p177 = pneg %p88
      %p178 = pneg %p119
      %p179 = pneg %p116
      %p180 = scmp.lt.s32.totalorder %s18, 1
      %s181 = scalar_select %p180, %s18, 1
      %p182 = scmp.lt.s32.totalorder %s19, 1
      %s183 = scalar_select %p182, %s19, 1
      %s184 = smul.addr %s183, 4
      %s185 = smul.addr %s181, 8
      %s186 = sadd.s32 %s184, %s185
      %s187 = smul.addr %s186, 4
      %s188 = scalar_lea.vmem %s3, %s187
      %p189 = scmp.lt.s32.totalorder %s18, 1
      %s190 = scalar_select %p189, %s18, 1
      %p191 = scmp.lt.s32.totalorder %s19, 1
      %s192 = scalar_select %p191, %s19, 1
      %s193 = smul.addr %s192, 40
      %s194 = smul.addr %s190, 80
      %s195 = sadd.s32 %s193, %s194
      %s196 = smul.addr %s195, 4
      %s197 = scalar_lea.vmem %s0, %s196
      %p198 = scmp.lt.s32.totalorder %s18, 1
      %s199 = scalar_select %p198, %s18, 1
      %p200 = scmp.lt.s32.totalorder %s19, 1
      %s201 = scalar_select %p200, %s19, 1
      %s202 = smul.addr %s201, 4
      %s203 = smul.addr %s199, 8
      %s204 = sadd.s32 %s202, %s203
      %s205 = smul.addr %s204, 4
      %s206 = scalar_lea.vmem %s3, %s205
      %v208 = vld [vmem:[%s197] sm:$0xf]
      %v209 = vld [vmem:[%s197 + $0x8] sm:$0xf]
      %v210 = vld [vmem:[%s197 + $0x10] sm:$0xf]
      %v211 = vld [vmem:[%s197 + $0x18] sm:$0xf]
      %s212 = scalar_lea.vmem %s197, 40
      %v213 = vld [vmem:[%s212] sm:$0xf]
      %v214 = vld [vmem:[%s212 + $0x8] sm:$0xf]
      %v215 = vld [vmem:[%s212 + $0x10] sm:$0xf]
      %v216 = vld [vmem:[%s212 + $0x18] sm:$0xf]
      %v217 = vld [vmem:[%s197 + $0x4] sm:$0x1]
      %v218 = vld [vmem:[%s197 + $0xc] sm:$0x1]
      %v219 = vld [vmem:[%s197 + $0x14] sm:$0x1]
      %v220 = vld [vmem:[%s197 + $0x1c] sm:$0x1]
      %s221 = scalar_lea.vmem %s197, 80
      %v222 = vld [vmem:[%s221] sm:$0xf]
      %v223 = vld [vmem:[%s221 + $0x8] sm:$0xf]
      %v224 = vld [vmem:[%s221 + $0x10] sm:$0xf]
      %v225 = vld [vmem:[%s221 + $0x18] sm:$0xf]
      %s226 = scalar_lea.vmem %s197, 120
      %v227 = vld [vmem:[%s226] sm:$0xf]
      %v228 = vld [vmem:[%s226 + $0x8] sm:$0xf]
      %v229 = vld [vmem:[%s226 + $0x10] sm:$0xf]
      %v230 = vld [vmem:[%s226 + $0x18] sm:$0xf]
      %v231 = vld [vmem:[%s221 + $0x4] sm:$0x1]
      %v232 = vld [vmem:[%s221 + $0xc] sm:$0x1]
      %v233 = vld [vmem:[%s221 + $0x14] sm:$0x1]
      %v234 = vld [vmem:[%s221 + $0x1c] sm:$0x1]
      %s235 = scalar_lea.vmem %s197, 8
      %v236 = vld [vmem:[%s235] sm:$0xf]
      %v237 = vld [vmem:[%s235 + $0x8] sm:$0xf]
      %v238 = vld [vmem:[%s235 + $0x10] sm:$0xf]
      %v239 = vld [vmem:[%s235 + $0x18] sm:$0xf]
      %s240 = scalar_lea.vmem %s197, 48
      %v241 = vld [vmem:[%s240] sm:$0xf]
      %v242 = vld [vmem:[%s240 + $0x8] sm:$0xf]
      %v243 = vld [vmem:[%s240 + $0x10] sm:$0xf]
      %v244 = vld [vmem:[%s240 + $0x18] sm:$0xf]
      %v245 = vld [vmem:[%s235 + $0x4] sm:$0x1]
      %v246 = vld [vmem:[%s235 + $0xc] sm:$0x1]
      %v247 = vld [vmem:[%s235 + $0x14] sm:$0x1]
      %v248 = vld [vmem:[%s235 + $0x1c] sm:$0x1]
      %v253 = vunpack.c.l.b16 %v213
      %v254 = vunpack.c.l.b16 %v214
      %v255 = vunpack.c.l.b16 %v215
      %v256 = vunpack.c.l.b16 %v216
      %v257 = vpack.c.b16 %v253, %v253
      %v258 = vpack.c.b16 %v254, %v254
      %v259 = vpack.c.b16 %v255, %v255
      %v260 = vpack.c.b16 %v256, %v256
      %261 = vrot.lane.b32.xlu0 %v257, 4
      %v262 = vpop.permute.xlu0 %261
      %263 = vrot.lane.b32.xlu0 %v258, 4
      %v264 = vpop.permute.xlu0 %263
      %265 = vrot.lane.b32.xlu0 %v259, 4
      %v266 = vpop.permute.xlu0 %265
      %267 = vrot.lane.b32.xlu0 %v260, 4
      %v268 = vpop.permute.xlu0 %267
      %v277 = vunpack.c.l.b16 %v208
      %v278 = vunpack.c.l.b16 %v217
      %v279 = vunpack.c.l.b16 %v209
      %v280 = vunpack.c.l.b16 %v218
      %v281 = vunpack.c.l.b16 %v210
      %v282 = vunpack.c.l.b16 %v219
      %v283 = vunpack.c.l.b16 %v211
      %v284 = vunpack.c.l.b16 %v220
      %v285 = vpack.c.b16 %v278, %v277
      %v286 = vpack.c.b16 %v280, %v279
      %v287 = vpack.c.b16 %v282, %v281
      %v288 = vpack.c.b16 %v284, %v283
      %v290 = vshrl.u32 %v285, 16
      %v292 = vshll.u32 %v285, 16
      %v294 = vrot.slane %v292, 1
      %v295 = vor.u32 %v290, %v294
      %v297 = vshrl.u32 %v286, 16
      %v299 = vshll.u32 %v286, 16
      %v301 = vrot.slane %v299, 1
      %v302 = vor.u32 %v297, %v301
      %v304 = vshrl.u32 %v287, 16
      %v306 = vshll.u32 %v287, 16
      %v308 = vrot.slane %v306, 1
      %v309 = vor.u32 %v304, %v308
      %v311 = vshrl.u32 %v288, 16
      %v313 = vshll.u32 %v288, 16
      %v315 = vrot.slane %v313, 1
      %v316 = vor.u32 %v311, %v315
      %317 = vrot.lane.b32.xlu0 %v295, 8
      %v318 = vpop.permute.xlu0 %317
      %319 = vrot.lane.b32.xlu0 %v302, 8
      %v320 = vpop.permute.xlu0 %319
      %321 = vrot.lane.b32.xlu0 %v309, 8
      %v322 = vpop.permute.xlu0 %321
      %323 = vrot.lane.b32.xlu0 %v316, 8
      %v324 = vpop.permute.xlu0 %323
      %v329 = vunpack.c.l.b16 %v222
      %v330 = vunpack.c.l.b16 %v223
      %v331 = vunpack.c.l.b16 %v224
      %v332 = vunpack.c.l.b16 %v225
      %v333 = vpack.c.b16 %v329, %v329
      %v334 = vpack.c.b16 %v330, %v330
      %v335 = vpack.c.b16 %v331, %v331
      %v336 = vpack.c.b16 %v332, %v332
      %337 = vrot.lane.b32.xlu0 %v333, 12
      %v338 = vpop.permute.xlu0 %337
      %339 = vrot.lane.b32.xlu0 %v334, 12
      %v340 = vpop.permute.xlu0 %339
      %341 = vrot.lane.b32.xlu0 %v335, 12
      %v342 = vpop.permute.xlu0 %341
      %343 = vrot.lane.b32.xlu0 %v336, 12
      %v344 = vpop.permute.xlu0 %343
      %v349 = vunpack.c.l.b16 %v227
      %v350 = vunpack.c.l.b16 %v228
      %v351 = vunpack.c.l.b16 %v229
      %v352 = vunpack.c.l.b16 %v230
      %v353 = vpack.c.b16 %v349, %v349
      %v354 = vpack.c.b16 %v350, %v350
      %v355 = vpack.c.b16 %v351, %v351
      %v356 = vpack.c.b16 %v352, %v352
      %357 = vrot.lane.b32.xlu0 %v353, 16
      %v358 = vpop.permute.xlu0 %357
      %359 = vrot.lane.b32.xlu0 %v354, 16
      %v360 = vpop.permute.xlu0 %359
      %361 = vrot.lane.b32.xlu0 %v355, 16
      %v362 = vpop.permute.xlu0 %361
      %363 = vrot.lane.b32.xlu0 %v356, 16
      %v364 = vpop.permute.xlu0 %363
      %v369 = vunpack.c.l.b16 %v231
      %v370 = vunpack.c.l.b16 %v232
      %v371 = vunpack.c.l.b16 %v233
      %v372 = vunpack.c.l.b16 %v234
      %v373 = vpack.c.b16 %v369, %v329
      %v374 = vpack.c.b16 %v370, %v330
      %v375 = vpack.c.b16 %v371, %v331
      %v376 = vpack.c.b16 %v372, %v332
      %v378 = vshrl.u32 %v373, 16
      %v380 = vshll.u32 %v373, 16
      %v382 = vrot.slane %v380, 1
      %v383 = vor.u32 %v378, %v382
      %v385 = vshrl.u32 %v374, 16
      %v387 = vshll.u32 %v374, 16
      %v389 = vrot.slane %v387, 1
      %v390 = vor.u32 %v385, %v389
      %v392 = vshrl.u32 %v375, 16
      %v394 = vshll.u32 %v375, 16
      %v396 = vrot.slane %v394, 1
      %v397 = vor.u32 %v392, %v396
      %v399 = vshrl.u32 %v376, 16
      %v401 = vshll.u32 %v376, 16
      %v403 = vrot.slane %v401, 1
      %v404 = vor.u32 %v399, %v403
      %405 = vrot.lane.b32.xlu0 %v383, 20
      %v406 = vpop.permute.xlu0 %405
      %407 = vrot.lane.b32.xlu0 %v390, 20
      %v408 = vpop.permute.xlu0 %407
      %409 = vrot.lane.b32.xlu0 %v397, 20
      %v410 = vpop.permute.xlu0 %409
      %411 = vrot.lane.b32.xlu0 %v404, 20
      %v412 = vpop.permute.xlu0 %411
      %v417 = vunpack.c.l.b16 %v236
      %v418 = vunpack.c.l.b16 %v237
      %v419 = vunpack.c.l.b16 %v238
      %v420 = vunpack.c.l.b16 %v239
      %v421 = vpack.c.b16 %v417, %v417
      %v422 = vpack.c.b16 %v418, %v418
      %v423 = vpack.c.b16 %v419, %v419
      %v424 = vpack.c.b16 %v420, %v420
      %425 = vrot.lane.b32.xlu0 %v421, 24
      %v426 = vpop.permute.xlu0 %425
      %427 = vrot.lane.b32.xlu0 %v422, 24
      %v428 = vpop.permute.xlu0 %427
      %429 = vrot.lane.b32.xlu0 %v423, 24
      %v430 = vpop.permute.xlu0 %429
      %431 = vrot.lane.b32.xlu0 %v424, 24
      %v432 = vpop.permute.xlu0 %431
      %v437 = vunpack.c.l.b16 %v241
      %v438 = vunpack.c.l.b16 %v242
      %v439 = vunpack.c.l.b16 %v243
      %v440 = vunpack.c.l.b16 %v244
      %v441 = vpack.c.b16 %v437, %v437
      %v442 = vpack.c.b16 %v438, %v438
      %v443 = vpack.c.b16 %v439, %v439
      %v444 = vpack.c.b16 %v440, %v440
      %445 = vrot.lane.b32.xlu0 %v441, 28
      %v446 = vpop.permute.xlu0 %445
      %447 = vrot.lane.b32.xlu0 %v442, 28
      %v448 = vpop.permute.xlu0 %447
      %449 = vrot.lane.b32.xlu0 %v443, 28
      %v450 = vpop.permute.xlu0 %449
      %451 = vrot.lane.b32.xlu0 %v444, 28
      %v452 = vpop.permute.xlu0 %451
      %v457 = vunpack.c.l.b16 %v245
      %v458 = vunpack.c.l.b16 %v246
      %v459 = vunpack.c.l.b16 %v247
      %v460 = vunpack.c.l.b16 %v248
      %v461 = vpack.c.b16 %v457, %v417
      %v462 = vpack.c.b16 %v458, %v418
      %v463 = vpack.c.b16 %v459, %v419
      %v464 = vpack.c.b16 %v460, %v420
      %v466 = vshrl.u32 %v461, 16
      %v468 = vshll.u32 %v461, 16
      %v470 = vrot.slane %v468, 1
      %v471 = vor.u32 %v466, %v470
      %v473 = vshrl.u32 %v462, 16
      %v475 = vshll.u32 %v462, 16
      %v477 = vrot.slane %v475, 1
      %v478 = vor.u32 %v473, %v477
      %v480 = vshrl.u32 %v463, 16
      %v482 = vshll.u32 %v463, 16
      %v484 = vrot.slane %v482, 1
      %v485 = vor.u32 %v480, %v484
      %v487 = vshrl.u32 %v464, 16
      %v489 = vshll.u32 %v464, 16
      %v491 = vrot.slane %v489, 1
      %v492 = vor.u32 %v487, %v491
      %493 = vrot.lane.b32.xlu0 %v471, 32
      %v494 = vpop.permute.xlu0 %493
      %495 = vrot.lane.b32.xlu0 %v478, 32
      %v496 = vpop.permute.xlu0 %495
      %497 = vrot.lane.b32.xlu0 %v485, 32
      %v498 = vpop.permute.xlu0 %497
      %499 = vrot.lane.b32.xlu0 %v492, 32
      %v500 = vpop.permute.xlu0 %499
      %vm501 = vcmask 31744
      %v504 = vsel %vm501, %v208, %v262
      %v507 = vsel %vm501, %v209, %v264
      %v510 = vsel %vm501, %v210, %v266
      %v513 = vsel %vm501, %v211, %v268
      %vm514 = vcmask 64512
      %v516 = vsel %vm514, %v504, %v318
      %v518 = vsel %vm514, %v507, %v320
      %v520 = vsel %vm514, %v510, %v322
      %v522 = vsel %vm514, %v513, %v324
      %vm523 = vcmask 97280
      %v525 = vsel %vm523, %v516, %v338
      %v527 = vsel %vm523, %v518, %v340
      %v529 = vsel %vm523, %v520, %v342
      %v531 = vsel %vm523, %v522, %v344
      %vm532 = vcmask 130048
      %v534 = vsel %vm532, %v525, %v358
      %v536 = vsel %vm532, %v527, %v360
      %v538 = vsel %vm532, %v529, %v362
      %v540 = vsel %vm532, %v531, %v364
      %vm541 = vcmask 162816
      %v543 = vsel %vm541, %v534, %v406
      %v545 = vsel %vm541, %v536, %v408
      %v547 = vsel %vm541, %v538, %v410
      %v549 = vsel %vm541, %v540, %v412
      %vm550 = vcmask 195584
      %v552 = vsel %vm550, %v543, %v426
      %v554 = vsel %vm550, %v545, %v428
      %v556 = vsel %vm550, %v547, %v430
      %v558 = vsel %vm550, %v549, %v432
      %vm559 = vcmask 228352
      %v561 = vsel %vm559, %v552, %v446
      %v563 = vsel %vm559, %v554, %v448
      %v565 = vsel %vm559, %v556, %v450
      %v567 = vsel %vm559, %v558, %v452
      %vm568 = vcmask 261120
      %v570 = vsel %vm568, %v561, %v494
      %v572 = vsel %vm568, %v563, %v496
      %v574 = vsel %vm568, %v565, %v498
      %v576 = vsel %vm568, %v567, %v500
      %v577 = vld [vmem:[%s1] sm:$0xf]
      %v578 = vld [vmem:[%s1 + $0x4] sm:$0xf]
      %v579 = vld [vmem:[%s1 + $0x8] sm:$0xf]
      %v580 = vld [vmem:[%s1 + $0xc] sm:$0xf]
      %v581 = vld [vmem:[%s1 + $0x10] sm:$0x3]
      %v582 = vld [vmem:[%s2] sm:$0x1]
      %v584 = vlaneseq
      %v585 = vshrl.u32 %v584, 7
      %v586 = vsub.s32 0, %v585
      %v587 = vrot.slane %v582, %v586
      %v593 = vunpack.c.l.b16 %v570
      %v594 = vunpack.c.l.b16 %v572
      %v595 = vunpack.c.l.b16 %v574
      %v596 = vunpack.c.l.b16 %v576
      %v597 = vpack.c.b16 %v594, %v593
      %v598 = vpack.c.b16 %v596, %v595
      %v604 = vunpack.c.l.b16 %v577
      %v605 = vunpack.c.l.b16 %v578
      %v606 = vunpack.c.l.b16 %v579
      %v607 = vunpack.c.l.b16 %v580
      %v608 = vunpack.c.l.b16 %v581
      %v609 = vpack.c.b16 %v605, %v604
      %v610 = vpack.c.b16 %v607, %v606
      %v611 = vpack.c.b16 %v608, %v608
      %vm614 = vcmask 293888
      %v616 = vsel %vm614, %v597, 0
      %v619 = vsel %vm614, %v598, 0
      %vm621 = vcmask 1041408
      %v623 = vsel %vm621, %v611, 0
      %625 = vmatprep.subr.bf16.mxu0 0
      %626 = vmatpush1.bf16.msra.mxu0 %v609
      %627 = vmatprep.subr.bf16.mxu0 0
      %628 = vmatpush1.bf16.msra.mxu0 %v610
      %629 = vmatprep.subr.bf16.mxu0 0
      %630 = vmatpush1.bf16.msra.mxu0 %v623
      %631 = vmatprep.subr.bf16.mxu0 0
      %632 = vmatpush1.bf16.msra.mxu0 0
      %633 = vmatprep.subr.bf16.mxu0 0
      %634 = vmatpush1.bf16.msra.mxu0 0
      %635 = vmatprep.subr.bf16.mxu0 0
      %636 = vmatpush1.bf16.msra.mxu0 0
      %637 = vmatprep.subr.bf16.mxu0 0
      %638 = vmatpush1.bf16.msra.mxu0 0
      %639 = vmatprep.subr.bf16.mxu0 0
      %640 = vmatpush1.bf16.msra.mxu0 0
      %641 = vmatprep.subr.bf16.mxu0 0
      %642 = vmatpush1.bf16.msra.mxu0 0
      %643 = vmatprep.subr.bf16.mxu0 0
      %644 = vmatpush1.bf16.msra.mxu0 0
      %645 = vmatprep.subr.bf16.mxu0 0
      %646 = vmatpush1.bf16.msra.mxu0 0
      %647 = vmatprep.subr.bf16.mxu0 0
      %648 = vmatpush1.bf16.msra.mxu0 0
      %649 = vmatprep.subr.bf16.mxu0 0
      %650 = vmatpush1.bf16.msra.mxu0 0
      %651 = vmatprep.subr.bf16.mxu0 0
      %652 = vmatpush1.bf16.msra.mxu0 0
      %653 = vmatprep.subr.bf16.mxu0 0
      %654 = vmatpush1.bf16.msra.mxu0 0
      %655 = vmatprep.subr.bf16.mxu0 0
      %656 = vmatpush1.bf16.msra.mxu0 0
      %657 = vmatprep.mubr.bf16.mxu0 0
      %658 = vmatmul.mubr.bf16.gmra.mrb[0].mxu0 %v616
      %v659 = vpop.f32.mrb[0].mxu0
      %v660 = vadd.f32 %v587, %v659
      %v661 = vpop.f32.mrb[0].mxu0
      %v662 = vpop.f32.mrb[0].mxu0
      %v663 = vadd.f32 %v587, %v662
      %v664 = vpop.f32.mrb[0].mxu0
      %665 = vmatprep.mubr.bf16.mxu0 0
      %666 = vmatmul.mubr.bf16.gmra.mrb[0].mxu0 %v619
      %v667 = vpop.f32.mrb[0].mxu0
      %v668 = vadd.f32 %v587, %v667
      %v669 = vpop.f32.mrb[0].mxu0
      %v670 = vpop.f32.mrb[0].mxu0
      %v671 = vadd.f32 %v587, %v670
      %v672 = vpop.f32.mrb[0].mxu0
      %673 = vdwg.mxu0
      %v674 = vmax.f32 %v660, 0.0
      %v675 = vmax.f32 %v663, 0.0
      %v676 = vmax.f32 %v668, 0.0
      %v677 = vmax.f32 %v671, 0.0
      %v678 = vpack.c.bf16 %v675, %v674
      %v679 = vpack.c.bf16 %v677, %v676
      %v682 = vunpack.c.l.b16 %v678
      %v683 = vunpack.c.h.b16 %v678
      %v684 = vunpack.c.l.b16 %v679
      %v685 = vunpack.c.h.b16 %v679
      %v686 = vpack.c.b16 %v682, %v682
      %v687 = vpack.c.b16 %v683, %v683
      %v688 = vpack.c.b16 %v684, %v684
      %v689 = vpack.c.b16 %v685, %v685
      %vm694 = vcmask 125952
      %695 = vst.msk [vmem:[%s206] sm:$0xf] %vm694, %v686
      %696 = vst.msk [vmem:[%s206 + $0x4] sm:$0xf] %vm694, %v687
      %697 = vst.msk [vmem:[%s206 + $0x8] sm:$0xf] %vm694, %v688
      %698 = vst.msk [vmem:[%s206 + $0xc] sm:$0xf] %vm694, %v689
      %p699 = scmp.lt.s32.totalorder %s18, 1
      %s700 = scalar_select %p699, %s18, 1
      %p701 = scmp.lt.s32.totalorder %s19, 1
      %s702 = scalar_select %p701, %s19, 1
      %s703 = smul.addr %s702, 4
      %s704 = smul.addr %s700, 8
      %s705 = sadd.s32 %s703, %s704
      %s706 = smul.addr %s705, 4
      %s707 = scalar_lea.vmem %s3, %s706
      // Predicated region
      $region33: #{_lambda_.4} parent=31 // pred_check
        %p708 = pneg %p116
      $region34: #{_lambda_.4} parent=31 // pred_check_branch
        %710 = sbr.rel (%p708) target = $region36
      $region35: #{_lambda_.4} parent=31 // pred_region
        _
      $region36: #{_lambda_.4} parent=31 // pred_fallthru
        _
    $region32: #{_lambda_.4} parent=5 // pred_fallthru
      _
    %p711 = scmp.le.s32.totalorder 2, %s9
    // Predicated region
    $region37: #{_lambda_.4} parent=5 // pred_check
      %p712 = pneg %p711
    $region38: #{_lambda_.4} parent=5 // pred_check_branch
      %714 = sbr.rel (%p712) target = $region40
    $region39: #{_lambda_.4} parent=5 // pred_region
      %s715 = ssub.s32 %s9, 2
      // Predicated region
      $region41: #{_lambda_.4} parent=39 // pred_check
        %p716 = pneg %p122
      $region42: #{_lambda_.4} parent=39 // pred_check_branch
        %718 = sbr.rel (%p716) target = $region44
      $region43: #{_lambda_.4} parent=39 // pred_region
        %p719 = scmp.lt.s32.totalorder %s20, 1
        %s720 = scalar_select %p719, %s20, 1
        %p721 = scmp.lt.s32.totalorder %s21, 1
        %s722 = scalar_select %p721, %s21, 1
        %s723 = smul.addr %s722, 4
        %s724 = smul.addr %s720, 8
        %s725 = sadd.s32 %s723, %s724
        %s726 = smul.addr %s725, 4
        %s727 = scalar_lea.vmem %s3, %s726
      $region44: #{_lambda_.4} parent=39 // pred_fallthru
        _
    $region40: #{_lambda_.4} parent=5 // pred_fallthru
      _
  $region6: #{_lambda_.4} parent=0 // loop_footer
    %s13 = sadd.s32 1, %s9
  $region7: #{_lambda_.4} parent=0 // loop_footer_branch
    %8 = sbr.rel target = $region3
  $region8: #{_lambda_.4} parent=0 // loop_exit
    _

// kernel: _lambda_.7
$region0: #{_lambda_.7}
  #allocation0 [shape = 'u32[]', space=smem, size = 0x4, offset = 0x4, fixed_abs, tag = 'smem constant byte address 0x4 - core index']
  #allocation1 [shape = 'u32[144,128]{1,0:T(1,128)}', space=vmem, size = 0x12000, scoped, tag = 'internal scratch']
  %s0 = inlined_call_operand.vmem [shape: bf16[2,2,6,10,16], index: 0, kind: input, shape index: {}]
  %s1 = inlined_call_operand.vmem [shape: bf16[144,16], index: 1, kind: input, shape index: {}]
  %s2 = inlined_call_operand.vmem [shape: f32[1,16], index: 2, kind: input, shape index: {}]
  %s3 = inlined_call_operand.vmem [shape: bf16[2,2,32,16], index: 3, kind: input, shape index: {}]
  %s4 = inlined_call_operand.vmem [shape: bf16[2,2,32,16], index: 4, kind: output, shape index: {}]
  %s5 = sld [smem:[#allocation0]]
  $region49: #{_lambda_.7} parent=0
    _
  %s7 = ssub.s32 1, %s5
  %s8 = scalar_select 0, %s7, %s5
  loop: start=0, step=1, limit=6
  $region2: #{_lambda_.7} parent=0 // loop_pre_header
    _
  $region3: #{_lambda_.7} parent=0 // loop_header
    %s10 = sphi 0, %s14
    %p11 = scmp.ge.s32.totalorder %s10, 6
    %s17 = sphi 0, %s29
    %s18 = sphi 0, %s25
    %s19 = sphi 0, %s17
    %s20 = sphi 0, %s18
    %s21 = sphi 0, %s19
    %s22 = sphi 0, %s20
    %s34 = sphi 0, %s36
    %s37 = sphi 0, %s34
    %s38 = sphi 0, %s37
    %s54 = sphi 0, %s38
    %s58 = sphi 0, %s58
    %s60 = sphi 0, %s58
    %s61 = sphi 0, %s60
    %s75 = sphi 0, %s61
    %s79 = sphi 0, %s79
    %s81 = sphi 0, %s79
    %s82 = sphi 0, %s81
    %s96 = sphi 0, %s82
    %s104 = sphi 0, %s106
    %s107 = sphi 0, %s104
    %s108 = sphi 0, %s107
    %s124 = sphi 0, %s108
    %s132 = sphi 0, %s134
    %s135 = sphi 0, %s132
    %s136 = sphi 0, %s135
    %s152 = sphi 0, %s136
  $region4: #{_lambda_.7} parent=0 // loop_header_branch
    %13 = sbr.rel (%p11) target = $region8
  $region5: #{_lambda_.7} parent=0 // loop_body
    %s15 = ssub.s32 %s10, 1
    %s16 = ssub.s32 %s10, 2
    %s23 = sadd.s32 1, %s18
    %p24 = scmp.ge.s32.totalorder %s23, 2
    %s25 = scalar_select %p24, 0, %s23
    %s26 = sadd.s32 1, %s17
    %s27 = scalar_select %p24, %s26, %s17
    %p28 = scmp.ge.s32.totalorder %s27, 2
    %s29 = scalar_select %p28, 0, %s27
    %s30 = ssub.s32 %s17, %s29
    %s31 = ssub.s32 %s18, %s25
    %s32 = sor.u32 %s30, %s31
    %p33 = scmp.eq.s32.totalorder %s32, 0
    %s35 = sadd.s32 %s34, 1
    %s36 = scalar_select %p33, %s34, %s35
    %p39 = pneg %p33
    %p40 = scmp.eq.s32.totalorder %s10, 3
    %p41 = por %p39, %p40
    %p42 = scmp.ne.s32.totalorder %s34, %s37
    %p43 = scmp.eq.s32.totalorder %s10, 0
    %p44 = por %p42, %p43
    %p45 = scmp.ne.s32.totalorder %s34, %s37
    %p46 = scmp.eq.s32.totalorder %s15, 3
    %p47 = por %p45, %p46
    %p48 = scmp.ne.s32.totalorder %s37, %s38
    %p49 = scmp.eq.s32.totalorder %s15, 0
    %p50 = por %p48, %p49
    %p51 = scmp.ne.s32.totalorder %s37, %s38
    %p52 = scmp.eq.s32.totalorder %s16, 3
    %p53 = por %p51, %p52
    %p55 = scmp.ne.s32.totalorder %s38, %s54
    %p56 = scmp.eq.s32.totalorder %s16, 0
    %p57 = por %p55, %p56
    %s59 = sadd.s32 %s58, 1
    %p62 = scmp.eq.s32.totalorder %s10, 3
    %p63 = scmp.ne.s32.totalorder %s58, %s60
    %p64 = scmp.eq.s32.totalorder %s10, 0
    %p65 = por %p63, %p64
    %p66 = scmp.ne.s32.totalorder %s58, %s60
    %p67 = scmp.eq.s32.totalorder %s15, 3
    %p68 = por %p66, %p67
    %p69 = scmp.ne.s32.totalorder %s60, %s61
    %p70 = scmp.eq.s32.totalorder %s15, 0
    %p71 = por %p69, %p70
    %p72 = scmp.ne.s32.totalorder %s60, %s61
    %p73 = scmp.eq.s32.totalorder %s16, 3
    %p74 = por %p72, %p73
    %p76 = scmp.ne.s32.totalorder %s61, %s75
    %p77 = scmp.eq.s32.totalorder %s16, 0
    %p78 = por %p76, %p77
    %s80 = sadd.s32 %s79, 1
    %p83 = scmp.eq.s32.totalorder %s10, 3
    %p84 = scmp.ne.s32.totalorder %s79, %s81
    %p85 = scmp.eq.s32.totalorder %s10, 0
    %p86 = por %p84, %p85
    %p87 = scmp.ne.s32.totalorder %s79, %s81
    %p88 = scmp.eq.s32.totalorder %s15, 3
    %p89 = por %p87, %p88
    %p90 = scmp.ne.s32.totalorder %s81, %s82
    %p91 = scmp.eq.s32.totalorder %s15, 0
    %p92 = por %p90, %p91
    %p93 = scmp.ne.s32.totalorder %s81, %s82
    %p94 = scmp.eq.s32.totalorder %s16, 3
    %p95 = por %p93, %p94
    %p97 = scmp.ne.s32.totalorder %s82, %s96
    %p98 = scmp.eq.s32.totalorder %s16, 0
    %p99 = por %p97, %p98
    %s100 = ssub.s32 %s17, %s29
    %s101 = ssub.s32 %s18, %s25
    %s102 = sor.u32 %s100, %s101
    %p103 = scmp.eq.s32.totalorder %s102, 0
    %s105 = sadd.s32 %s104, 1
    %s106 = scalar_select %p103, %s104, %s105
    %p109 = pneg %p103
    %p110 = scmp.eq.s32.totalorder %s10, 3
    %p111 = por %p109, %p110
    %p112 = scmp.ne.s32.totalorder %s104, %s107
    %p113 = scmp.eq.s32.totalorder %s10, 0
    %p114 = por %p112, %p113
    %p115 = scmp.ne.s32.totalorder %s104, %s107
    %p116 = scmp.eq.s32.totalorder %s15, 3
    %p117 = por %p115, %p116
    %p118 = scmp.ne.s32.totalorder %s107, %s108
    %p119 = scmp.eq.s32.totalorder %s15, 0
    %p120 = por %p118, %p119
    %p121 = scmp.ne.s32.totalorder %s107, %s108
    %p122 = scmp.eq.s32.totalorder %s16, 3
    %p123 = por %p121, %p122
    %p125 = scmp.ne.s32.totalorder %s108, %s124
    %p126 = scmp.eq.s32.totalorder %s16, 0
    %p127 = por %p125, %p126
    %s128 = ssub.s32 %s17, %s29
    %s129 = ssub.s32 %s18, %s25
    %s130 = sor.u32 %s128, %s129
    %p131 = scmp.eq.s32.totalorder %s130, 0
    %s133 = sadd.s32 %s132, 1
    %s134 = scalar_select %p131, %s132, %s133
    %p137 = pneg %p131
    %p138 = scmp.eq.s32.totalorder %s10, 3
    %p139 = por %p137, %p138
    %p140 = scmp.ne.s32.totalorder %s132, %s135
    %p141 = scmp.eq.s32.totalorder %s10, 0
    %p142 = por %p140, %p141
    %p143 = scmp.ne.s32.totalorder %s132, %s135
    %p144 = scmp.eq.s32.totalorder %s15, 3
    %p145 = por %p143, %p144
    %p146 = scmp.ne.s32.totalorder %s135, %s136
    %p147 = scmp.eq.s32.totalorder %s15, 0
    %p148 = por %p146, %p147
    %p149 = scmp.ne.s32.totalorder %s135, %s136
    %p150 = scmp.eq.s32.totalorder %s16, 3
    %p151 = por %p149, %p150
    %p153 = scmp.ne.s32.totalorder %s136, %s152
    %p154 = scmp.eq.s32.totalorder %s16, 0
    %p155 = por %p153, %p154
    %p156 = scmp.le.s32.totalorder 1, %s10
    %p157 = scmp.lt.s32.totalorder %s10, 5
    %p158 = pnand %p156, %p157
    %p159 = pneg %p158
    // Predicated region
    $region9: #{_lambda_.7} parent=5 // pred_check
      _
    $region10: #{_lambda_.7} parent=5 // pred_check_branch
      %161 = sbr.rel (%p158) target = $region12
    $region11: #{_lambda_.7} parent=5 // pred_region
      %s162 = ssub.s32 %s10, 1
      // Predicated region
      $region13: #{_lambda_.7} parent=11 // pred_check
        %p163 = pneg %p71
      $region14: #{_lambda_.7} parent=11 // pred_check_branch
        %165 = sbr.rel (%p163) target = $region16
      $region15: #{_lambda_.7} parent=11 // pred_region
        _
      $region16: #{_lambda_.7} parent=11 // pred_fallthru
        _
      // Predicated region
      $region17: #{_lambda_.7} parent=11 // pred_check
        %p166 = pneg %p92
      $region18: #{_lambda_.7} parent=11 // pred_check_branch
        %168 = sbr.rel (%p166) target = $region20
      $region19: #{_lambda_.7} parent=11 // pred_region
        _
      $region20: #{_lambda_.7} parent=11 // pred_fallthru
        _
    $region12: #{_lambda_.7} parent=5 // pred_fallthru
      _
    %p169 = scmp.lt.s32.totalorder %s10, 4
    // Predicated region
    $region21: #{_lambda_.7} parent=5 // pred_check
      %p170 = pneg %p169
    $region22: #{_lambda_.7} parent=5 // pred_check_branch
      %172 = sbr.rel (%p170) target = $region24
    $region23: #{_lambda_.7} parent=5 // pred_region
      // Predicated region
      $region25: #{_lambda_.7} parent=23 // pred_check
        %p173 = pneg %p44
      $region26: #{_lambda_.7} parent=23 // pred_check_branch
        %175 = sbr.rel (%p173) target = $region28
      $region27: #{_lambda_.7} parent=23 // pred_region
        %p176 = scmp.lt.s32.totalorder %s17, 1
        %s177 = scalar_select %p176, %s17, 1
        %p178 = scmp.lt.s32.totalorder %s18, 1
        %s179 = scalar_select %p178, %s18, 1
        %s180 = smul.addr %s179, 12
        %s181 = smul.addr %s177, 24
        %s182 = sadd.s32 %s180, %s181
        %s183 = smul.addr %s182, 4
        %s184 = scalar_lea.vmem %s0, %s183
      $region28: #{_lambda_.7} parent=23 // pred_fallthru
        _
      // Predicated region
      $region29: #{_lambda_.7} parent=23 // pred_check
        %p185 = pneg %p114
      $region30: #{_lambda_.7} parent=23 // pred_check_branch
        %187 = sbr.rel (%p185) target = $region32
      $region31: #{_lambda_.7} parent=23 // pred_region
        %p188 = scmp.lt.s32.totalorder %s17, 1
        %s189 = scalar_select %p188, %s17, 1
        %p190 = scmp.lt.s32.totalorder %s18, 1
        %s191 = scalar_select %p190, %s18, 1
        %s192 = smul.addr %s191, 4
        %s193 = smul.addr %s189, 8
        %s194 = sadd.s32 %s192, %s193
        %s195 = smul.addr %s194, 4
        %s196 = scalar_lea.vmem %s3, %s195
      $region32: #{_lambda_.7} parent=23 // pred_fallthru
        _
    $region24: #{_lambda_.7} parent=5 // pred_fallthru
      _
    %p197 = scmp.le.s32.totalorder 1, %s10
    %p198 = scmp.lt.s32.totalorder %s10, 5
    %p199 = pnand %p197, %p198
    %p200 = pneg %p199
    // Predicated region
    $region33: #{_lambda_.7} parent=5 // pred_check
      _
    $region34: #{_lambda_.7} parent=5 // pred_check_branch
      %202 = sbr.rel (%p199) target = $region36
    $region35: #{_lambda_.7} parent=5 // pred_region
      %s203 = ssub.s32 %s10, 1
      %p204 = scmp.lt.s32.totalorder %s19, 1
      %s205 = scalar_select %p204, %s19, 1
      %p206 = scmp.lt.s32.totalorder %s20, 1
      %s207 = scalar_select %p206, %s20, 1
      %s208 = smul.addr %s207, 12
      %s209 = smul.addr %s205, 24
      %s210 = sadd.s32 %s208, %s209
      %s211 = smul.addr %s210, 4
      %s212 = scalar_lea.vmem %s0, %s211
      %p213 = pneg %p50
      %p214 = pneg %p47
      %p215 = pneg %p71
      %p216 = pneg %p68
      %p217 = pneg %p92
      %p218 = pneg %p89
      %p219 = scmp.lt.s32.totalorder %s19, 1
      %s220 = scalar_select %p219, %s19, 1
      %p221 = scmp.lt.s32.totalorder %s20, 1
      %s222 = scalar_select %p221, %s20, 1
      %s223 = smul.addr %s222, 4
      %s224 = smul.addr %s220, 8
      %s225 = sadd.s32 %s223, %s224
      %s226 = smul.addr %s225, 4
      %s227 = scalar_lea.vmem %s3, %s226
      %p228 = pneg %p120
      %p229 = pneg %p117
      %p230 = pneg %p148
      %p231 = pneg %p145
      %p232 = scmp.lt.s32.totalorder %s19, 1
      %s233 = scalar_select %p232, %s19, 1
      %p234 = scmp.lt.s32.totalorder %s20, 1
      %s235 = scalar_select %p234, %s20, 1
      %s236 = smul.addr %s235, 4
      %s237 = smul.addr %s233, 8
      %s238 = sadd.s32 %s236, %s237
      %s239 = smul.addr %s238, 4
      %s240 = scalar_lea.vmem %s4, %s239
      %p241 = scmp.lt.s32.totalorder %s19, 1
      %s242 = scalar_select %p241, %s19, 1
      %p243 = scmp.lt.s32.totalorder %s20, 1
      %s244 = scalar_select %p243, %s20, 1
      %s245 = smul.addr %s244, 12
      %s246 = smul.addr %s242, 24
      %s247 = sadd.s32 %s245, %s246
      %s248 = smul.addr %s247, 4
      %s249 = scalar_lea.vmem %s0, %s248
      %p250 = scmp.lt.s32.totalorder %s19, 1
      %s251 = scalar_select %p250, %s19, 1
      %p252 = scmp.lt.s32.totalorder %s20, 1
      %s253 = scalar_select %p252, %s20, 1
      %s254 = smul.addr %s253, 4
      %s255 = smul.addr %s251, 8
      %s256 = sadd.s32 %s254, %s255
      %s257 = smul.addr %s256, 4
      %s258 = scalar_lea.vmem %s3, %s257
      %p259 = scmp.lt.s32.totalorder %s19, 1
      %s260 = scalar_select %p259, %s19, 1
      %p261 = scmp.lt.s32.totalorder %s20, 1
      %s262 = scalar_select %p261, %s20, 1
      %s263 = smul.addr %s262, 4
      %s264 = smul.addr %s260, 8
      %s265 = sadd.s32 %s263, %s264
      %s266 = smul.addr %s265, 4
      %s267 = scalar_lea.vmem %s4, %s266
      %v269 = vld [vmem:[%s249] sm:$0xf]
      %v270 = vld [vmem:[%s249 + $0x8] sm:$0xf]
      %v271 = vld [vmem:[%s249 + $0x10] sm:$0xf]
      %v272 = vld [vmem:[%s249 + $0x18] sm:$0xf]
      %v273 = vld [vmem:[%s249 + $0x4] sm:$0x1]
      %v274 = vld [vmem:[%s249 + $0xc] sm:$0x1]
      %v275 = vld [vmem:[%s249 + $0x14] sm:$0x1]
      %v276 = vld [vmem:[%s249 + $0x1c] sm:$0x1]
      %v277 = vld [vmem:[%s249] sm:$0xe]
      %v278 = vld [vmem:[%s249 + $0x8] sm:$0xe]
      %v279 = vld [vmem:[%s249 + $0x10] sm:$0xe]
      %v280 = vld [vmem:[%s249 + $0x18] sm:$0xe]
      %s281 = scalar_lea.vmem %s249, 8
      %v282 = vld [vmem:[%s281] sm:$0xf]
      %v283 = vld [vmem:[%s281 + $0x8] sm:$0xf]
      %v284 = vld [vmem:[%s281 + $0x10] sm:$0xf]
      %v285 = vld [vmem:[%s281 + $0x18] sm:$0xf]
      %v286 = vld [vmem:[%s281 + $0x4] sm:$0x1]
      %v287 = vld [vmem:[%s281 + $0xc] sm:$0x1]
      %v288 = vld [vmem:[%s281 + $0x14] sm:$0x1]
      %v289 = vld [vmem:[%s281 + $0x1c] sm:$0x1]
      %v290 = vld [vmem:[%s281] sm:$0xe]
      %v291 = vld [vmem:[%s281 + $0x8] sm:$0xe]
      %v292 = vld [vmem:[%s281 + $0x10] sm:$0xe]
      %v293 = vld [vmem:[%s281 + $0x18] sm:$0xe]
      %s294 = scalar_lea.vmem %s249, 16
      %v295 = vld [vmem:[%s294] sm:$0xf]
      %v296 = vld [vmem:[%s294 + $0x8] sm:$0xf]
      %v297 = vld [vmem:[%s294 + $0x10] sm:$0xf]
      %v298 = vld [vmem:[%s294 + $0x18] sm:$0xf]
      %v299 = vld [vmem:[%s294 + $0x4] sm:$0x1]
      %v300 = vld [vmem:[%s294 + $0xc] sm:$0x1]
      %v301 = vld [vmem:[%s294 + $0x14] sm:$0x1]
      %v302 = vld [vmem:[%s294 + $0x1c] sm:$0x1]
      %v303 = vld [vmem:[%s294] sm:$0xe]
      %v304 = vld [vmem:[%s294 + $0x8] sm:$0xe]
      %v305 = vld [vmem:[%s294 + $0x10] sm:$0xe]
      %v306 = vld [vmem:[%s294 + $0x18] sm:$0xe]
      %v315 = vunpack.c.l.b16 %v269
      %v316 = vunpack.c.l.b16 %v273
      %v317 = vunpack.c.l.b16 %v270
      %v318 = vunpack.c.l.b16 %v274
      %v319 = vunpack.c.l.b16 %v271
      %v320 = vunpack.c.l.b16 %v275
      %v321 = vunpack.c.l.b16 %v272
      %v322 = vunpack.c.l.b16 %v276
      %v323 = vpack.c.b16 %v316, %v315
      %v324 = vpack.c.b16 %v318, %v317
      %v325 = vpack.c.b16 %v320, %v319
      %v326 = vpack.c.b16 %v322, %v321
      %v328 = vshrl.u32 %v323, 16
      %v330 = vshll.u32 %v323, 16
      %v332 = vrot.slane %v330, 1
      %v333 = vor.u32 %v328, %v332
      %v335 = vshrl.u32 %v324, 16
      %v337 = vshll.u32 %v324, 16
      %v339 = vrot.slane %v337, 1
      %v340 = vor.u32 %v335, %v339
      %v342 = vshrl.u32 %v325, 16
      %v344 = vshll.u32 %v325, 16
      %v346 = vrot.slane %v344, 1
      %v347 = vor.u32 %v342, %v346
      %v349 = vshrl.u32 %v326, 16
      %v351 = vshll.u32 %v326, 16
      %v353 = vrot.slane %v351, 1
      %v354 = vor.u32 %v349, %v353
      %355 = vrot.lane.b32.xlu0 %v333, 16
      %v356 = vpop.permute.xlu0 %355
      %357 = vrot.lane.b32.xlu0 %v340, 16
      %v358 = vpop.permute.xlu0 %357
      %359 = vrot.lane.b32.xlu0 %v347, 16
      %v360 = vpop.permute.xlu0 %359
      %361 = vrot.lane.b32.xlu0 %v354, 16
      %v362 = vpop.permute.xlu0 %361
      %v367 = vunpack.c.l.b16 %v277
      %v368 = vunpack.c.l.b16 %v278
      %v369 = vunpack.c.l.b16 %v279
      %v370 = vunpack.c.l.b16 %v280
      %v371 = vpack.c.b16 %v316, %v367
      %v372 = vpack.c.b16 %v318, %v368
      %v373 = vpack.c.b16 %v320, %v369
      %v374 = vpack.c.b16 %v322, %v370
      %v375 = vrot.slane %v371, 1
      %v376 = vrot.slane %v372, 1
      %v377 = vrot.slane %v373, 1
      %v378 = vrot.slane %v374, 1
      %379 = vrot.lane.b32.xlu0 %v375, 32
      %v380 = vpop.permute.xlu0 %379
      %381 = vrot.lane.b32.xlu0 %v376, 32
      %v382 = vpop.permute.xlu0 %381
      %383 = vrot.lane.b32.xlu0 %v377, 32
      %v384 = vpop.permute.xlu0 %383
      %385 = vrot.lane.b32.xlu0 %v378, 32
      %v386 = vpop.permute.xlu0 %385
      %v391 = vunpack.c.l.b16 %v282
      %v392 = vunpack.c.l.b16 %v283
      %v393 = vunpack.c.l.b16 %v284
      %v394 = vunpack.c.l.b16 %v285
      %v395 = vpack.c.b16 %v391, %v391
      %v396 = vpack.c.b16 %v392, %v392
      %v397 = vpack.c.b16 %v393, %v393
      %v398 = vpack.c.b16 %v394, %v394
      %399 = vrot.lane.b32.xlu0 %v395, 48
      %v400 = vpop.permute.xlu0 %399
      %401 = vrot.lane.b32.xlu0 %v396, 48
      %v402 = vpop.permute.xlu0 %401
      %403 = vrot.lane.b32.xlu0 %v397, 48
      %v404 = vpop.permute.xlu0 %403
      %405 = vrot.lane.b32.xlu0 %v398, 48
      %v406 = vpop.permute.xlu0 %405
      %v411 = vunpack.c.l.b16 %v286
      %v412 = vunpack.c.l.b16 %v287
      %v413 = vunpack.c.l.b16 %v288
      %v414 = vunpack.c.l.b16 %v289
      %v415 = vpack.c.b16 %v411, %v391
      %v416 = vpack.c.b16 %v412, %v392
      %v417 = vpack.c.b16 %v413, %v393
      %v418 = vpack.c.b16 %v414, %v394
      %v420 = vshrl.u32 %v415, 16
      %v422 = vshll.u32 %v415, 16
      %v424 = vrot.slane %v422, 1
      %v425 = vor.u32 %v420, %v424
      %v427 = vshrl.u32 %v416, 16
      %v429 = vshll.u32 %v416, 16
      %v431 = vrot.slane %v429, 1
      %v432 = vor.u32 %v427, %v431
      %v434 = vshrl.u32 %v417, 16
      %v436 = vshll.u32 %v417, 16
      %v438 = vrot.slane %v436, 1
      %v439 = vor.u32 %v434, %v438
      %v441 = vshrl.u32 %v418, 16
      %v443 = vshll.u32 %v418, 16
      %v445 = vrot.slane %v443, 1
      %v446 = vor.u32 %v441, %v445
      %447 = vrot.lane.b32.xlu0 %v425, 64
      %v448 = vpop.permute.xlu0 %447
      %449 = vrot.lane.b32.xlu0 %v432, 64
      %v450 = vpop.permute.xlu0 %449
      %451 = vrot.lane.b32.xlu0 %v439, 64
      %v452 = vpop.permute.xlu0 %451
      %453 = vrot.lane.b32.xlu0 %v446, 64
      %v454 = vpop.permute.xlu0 %453
      %v459 = vunpack.c.l.b16 %v290
      %v460 = vunpack.c.l.b16 %v291
      %v461 = vunpack.c.l.b16 %v292
      %v462 = vunpack.c.l.b16 %v293
      %v463 = vpack.c.b16 %v411, %v459
      %v464 = vpack.c.b16 %v412, %v460
      %v465 = vpack.c.b16 %v413, %v461
      %v466 = vpack.c.b16 %v414, %v462
      %v467 = vrot.slane %v463, 1
      %v468 = vrot.slane %v464, 1
      %v469 = vrot.slane %v465, 1
      %v470 = vrot.slane %v466, 1
      %471 = vrot.lane.b32.xlu0 %v467, 80
      %v472 = vpop.permute.xlu0 %471
      %473 = vrot.lane.b32.xlu0 %v468, 80
      %v474 = vpop.permute.xlu0 %473
      %475 = vrot.lane.b32.xlu0 %v469, 80
      %v476 = vpop.permute.xlu0 %475
      %477 = vrot.lane.b32.xlu0 %v470, 80
      %v478 = vpop.permute.xlu0 %477
      %v483 = vunpack.c.l.b16 %v295
      %v484 = vunpack.c.l.b16 %v296
      %v485 = vunpack.c.l.b16 %v297
      %v486 = vunpack.c.l.b16 %v298
      %v487 = vpack.c.b16 %v483, %v483
      %v488 = vpack.c.b16 %v484, %v484
      %v489 = vpack.c.b16 %v485, %v485
      %v490 = vpack.c.b16 %v486, %v486
      %491 = vrot.lane.b32.xlu0 %v487, 96
      %v492 = vpop.permute.xlu0 %491
      %493 = vrot.lane.b32.xlu0 %v488, 96
      %v494 = vpop.permute.xlu0 %493
      %495 = vrot.lane.b32.xlu0 %v489, 96
      %v496 = vpop.permute.xlu0 %495
      %497 = vrot.lane.b32.xlu0 %v490, 96
      %v498 = vpop.permute.xlu0 %497
      %v503 = vunpack.c.l.b16 %v299
      %v504 = vunpack.c.l.b16 %v300
      %v505 = vunpack.c.l.b16 %v301
      %v506 = vunpack.c.l.b16 %v302
      %v507 = vpack.c.b16 %v503, %v483
      %v508 = vpack.c.b16 %v504, %v484
      %v509 = vpack.c.b16 %v505, %v485
      %v510 = vpack.c.b16 %v506, %v486
      %v512 = vshrl.u32 %v507, 16
      %v514 = vshll.u32 %v507, 16
      %v516 = vrot.slane %v514, 1
      %v517 = vor.u32 %v512, %v516
      %v519 = vshrl.u32 %v508, 16
      %v521 = vshll.u32 %v508, 16
      %v523 = vrot.slane %v521, 1
      %v524 = vor.u32 %v519, %v523
      %v526 = vshrl.u32 %v509, 16
      %v528 = vshll.u32 %v509, 16
      %v530 = vrot.slane %v528, 1
      %v531 = vor.u32 %v526, %v530
      %v533 = vshrl.u32 %v510, 16
      %v535 = vshll.u32 %v510, 16
      %v537 = vrot.slane %v535, 1
      %v538 = vor.u32 %v533, %v537
      %539 = vrot.lane.b32.xlu0 %v517, 112
      %v540 = vpop.permute.xlu0 %539
      %541 = vrot.lane.b32.xlu0 %v524, 112
      %v542 = vpop.permute.xlu0 %541
      %543 = vrot.lane.b32.xlu0 %v531, 112
      %v544 = vpop.permute.xlu0 %543
      %545 = vrot.lane.b32.xlu0 %v538, 112
      %v546 = vpop.permute.xlu0 %545
      %v551 = vunpack.c.l.b16 %v303
      %v552 = vunpack.c.l.b16 %v304
      %v553 = vunpack.c.l.b16 %v305
      %v554 = vunpack.c.l.b16 %v306
      %v555 = vpack.c.b16 %v503, %v551
      %v556 = vpack.c.b16 %v504, %v552
      %v557 = vpack.c.b16 %v505, %v553
      %v558 = vpack.c.b16 %v506, %v554
      %v559 = vrot.slane %v555, 1
      %v560 = vrot.slane %v556, 1
      %v561 = vrot.slane %v557, 1
      %v562 = vrot.slane %v558, 1
      %vm563 = vcmask 130048
      %v566 = vsel %vm563, %v269, %v356
      %v569 = vsel %vm563, %v270, %v358
      %v572 = vsel %vm563, %v271, %v360
      %v575 = vsel %vm563, %v272, %v362
      %vm576 = vcmask 261120
      %v578 = vsel %vm576, %v566, %v380
      %v580 = vsel %vm576, %v569, %v382
      %v582 = vsel %vm576, %v572, %v384
      %v584 = vsel %vm576, %v575, %v386
      %vm585 = vcmask 392192
      %v587 = vsel %vm585, %v578, %v400
      %v589 = vsel %vm585, %v580, %v402
      %v591 = vsel %vm585, %v582, %v404
      %v593 = vsel %vm585, %v584, %v406
      %vm594 = vcmask 523264
      %v596 = vsel %vm594, %v587, %v448
      %v598 = vsel %vm594, %v589, %v450
      %v600 = vsel %vm594, %v591, %v452
      %v602 = vsel %vm594, %v593, %v454
      %vm603 = vcmask 654336
      %v605 = vsel %vm603, %v596, %v472
      %v607 = vsel %vm603, %v598, %v474
      %v609 = vsel %vm603, %v600, %v476
      %v611 = vsel %vm603, %v602, %v478
      %vm612 = vcmask 785408
      %v614 = vsel %vm612, %v605, %v492
      %v616 = vsel %vm612, %v607, %v494
      %v618 = vsel %vm612, %v609, %v496
      %v620 = vsel %vm612, %v611, %v498
      %vm621 = vcmask 916480
      %v623 = vsel %vm621, %v614, %v540
      %v625 = vsel %vm621, %v616, %v542
      %v627 = vsel %vm621, %v618, %v544
      %v629 = vsel %vm621, %v620, %v546
      %v634 = vunpack.c.l.b16 %v623
      %v635 = vunpack.c.l.b16 %v559
      %v636 = vunpack.c.l.b16 %v625
      %v637 = vunpack.c.l.b16 %v560
      %v638 = vunpack.c.l.b16 %v627
      %v639 = vunpack.c.l.b16 %v561
      %v640 = vunpack.c.l.b16 %v629
      %v641 = vunpack.c.l.b16 %v562
      %v642 = vld [vmem:[%s1] sm:$0xf]
      %v643 = vld [vmem:[%s1 + $0x4] sm:$0xf]
      %v644 = vld [vmem:[%s1 + $0x8] sm:$0xf]
      %v645 = vld [vmem:[%s1 + $0xc] sm:$0xf]
      %v646 = vld [vmem:[%s1 + $0x10] sm:$0xf]
      %v647 = vld [vmem:[%s1 + $0x14] sm:$0xf]
      %v648 = vld [vmem:[%s1 + $0x18] sm:$0xf]
      %v649 = vld [vmem:[%s1 + $0x1c] sm:$0xf]
      %v650 = vld [vmem:[%s1 + $0x20] sm:$0xf]
      %v651 = vld [vmem:[%s1 + $0x24] sm:$0xf]
      %v652 = vld [vmem:[%s1 + $0x28] sm:$0xf]
      %v653 = vld [vmem:[%s1 + $0x2c] sm:$0xf]
      %v654 = vld [vmem:[%s1 + $0x30] sm:$0xf]
      %v655 = vld [vmem:[%s1 + $0x34] sm:$0xf]
      %v656 = vld [vmem:[%s1 + $0x38] sm:$0xf]
      %v657 = vld [vmem:[%s1 + $0x3c] sm:$0xf]
      %v658 = vld [vmem:[%s1 + $0x40] sm:$0xf]
      %v659 = vld [vmem:[%s1 + $0x44] sm:$0xf]
      %v660 = vld [vmem:[%s2] sm:$0x1]
      %v662 = vlaneseq
      %v663 = vshrl.u32 %v662, 7
      %v664 = vsub.s32 0, %v663
      %v665 = vrot.slane %v660, %v664
      %v667 = vpack.c.b16 %v636, %v634
      %v668 = vpack.c.b16 %v637, %v635
      %v669 = vpack.c.b16 %v640, %v638
      %v670 = vpack.c.b16 %v641, %v639
      %v691 = vunpack.c.l.b16 %v642
      %v692 = vunpack.c.l.b16 %v643
      %v693 = vunpack.c.l.b16 %v644
      %v694 = vunpack.c.l.b16 %v645
      %v695 = vunpack.c.l.b16 %v646
      %v696 = vunpack.c.l.b16 %v647
      %v697 = vunpack.c.l.b16 %v648
      %v698 = vunpack.c.l.b16 %v649
      %v699 = vunpack.c.l.b16 %v650
      %v700 = vunpack.c.l.b16 %v651
      %v701 = vunpack.c.l.b16 %v652
      %v702 = vunpack.c.l.b16 %v653
      %v703 = vunpack.c.l.b16 %v654
      %v704 = vunpack.c.l.b16 %v655
      %v705 = vunpack.c.l.b16 %v656
      %v706 = vunpack.c.l.b16 %v657
      %v707 = vunpack.c.l.b16 %v658
      %v708 = vunpack.c.l.b16 %v659
      %v709 = vpack.c.b16 %v692, %v691
      %v710 = vpack.c.b16 %v694, %v693
      %v711 = vpack.c.b16 %v696, %v695
      %v712 = vpack.c.b16 %v698, %v697
      %v713 = vpack.c.b16 %v700, %v699
      %v714 = vpack.c.b16 %v702, %v701
      %v715 = vpack.c.b16 %v704, %v703
      %v716 = vpack.c.b16 %v706, %v705
      %v717 = vpack.c.b16 %v708, %v707
      %v728 = vsel %vm563, %v668, 0
      %v731 = vsel %vm563, %v670, 0
      %733 = vmatprep.subr.bf16.mxu0 0
      %734 = vmatpush1.bf16.msra.mxu0 %v709
      %735 = vmatprep.subr.bf16.mxu0 0
      %736 = vmatpush1.bf16.msra.mxu0 %v710
      %737 = vmatprep.subr.bf16.mxu0 0
      %738 = vmatpush1.bf16.msra.mxu0 %v711
      %739 = vmatprep.subr.bf16.mxu0 0
      %740 = vmatpush1.bf16.msra.mxu0 %v712
      %741 = vmatprep.subr.bf16.mxu0 0
      %742 = vmatpush1.bf16.msra.mxu0 %v713
      %743 = vmatprep.subr.bf16.mxu0 0
      %744 = vmatpush1.bf16.msra.mxu0 %v714
      %745 = vmatprep.subr.bf16.mxu0 0
      %746 = vmatpush1.bf16.msra.mxu0 %v715
      %747 = vmatprep.subr.bf16.mxu0 0
      %748 = vmatpush1.bf16.msra.mxu0 %v716
      %749 = vmatprep.subr.bf16.mxu0 0
      %750 = vmatpush1.bf16.msra.mxu0 %v717
      %751 = vmatprep.subr.bf16.mxu0 0
      %752 = vmatpush1.bf16.msra.mxu0 0
      %753 = vmatprep.subr.bf16.mxu0 0
      %754 = vmatpush1.bf16.msra.mxu0 0
      %755 = vmatprep.subr.bf16.mxu0 0
      %756 = vmatpush1.bf16.msra.mxu0 0
      %757 = vmatprep.subr.bf16.mxu0 0
      %758 = vmatpush1.bf16.msra.mxu0 0
      %759 = vmatprep.subr.bf16.mxu0 0
      %760 = vmatpush1.bf16.msra.mxu0 0
      %761 = vmatprep.subr.bf16.mxu0 0
      %762 = vmatpush1.bf16.msra.mxu0 0
      %763 = vmatprep.subr.bf16.mxu0 0
      %764 = vmatpush1.bf16.msra.mxu0 0
      %765 = vmatprep.mubr.bf16.mxu0 %v728
      %766 = vmatmul.mubr.bf16.gmra.mrb[0].mxu0 %v667
      %v767 = vpop.f32.mrb[0].mxu0
      %v768 = vadd.f32 %v665, %v767
      %v769 = vpop.f32.mrb[0].mxu0
      %v770 = vpop.f32.mrb[0].mxu0
      %v771 = vadd.f32 %v665, %v770
      %v772 = vpop.f32.mrb[0].mxu0
      %773 = vmatprep.mubr.bf16.mxu0 %v731
      %774 = vmatmul.mubr.bf16.gmra.mrb[0].mxu0 %v669
      %v775 = vpop.f32.mrb[0].mxu0
      %v776 = vadd.f32 %v665, %v775
      %v777 = vpop.f32.mrb[0].mxu0
      %v778 = vpop.f32.mrb[0].mxu0
      %v779 = vadd.f32 %v665, %v778
      %v780 = vpop.f32.mrb[0].mxu0
      %781 = vdwg.mxu0
      %v782 = vld [vmem:[%s258] sm:$0xf]
      %v783 = vld [vmem:[%s258 + $0x4] sm:$0xf]
      %v784 = vld [vmem:[%s258 + $0x8] sm:$0xf]
      %v785 = vld [vmem:[%s258 + $0xc] sm:$0xf]
      %v786 = vunpack.c.l.bf16 %v782
      %v787 = vunpack.c.l.bf16 %v783
      %v788 = vunpack.c.l.bf16 %v784
      %v789 = vunpack.c.l.bf16 %v785
      %v790 = vadd.f32 %v768, %v786
      %v791 = vadd.f32 %v771, %v787
      %v792 = vadd.f32 %v776, %v788
      %v793 = vadd.f32 %v779, %v789
      %v794 = vmax.f32 %v790, 0.0
      %v795 = vmax.f32 %v791, 0.0
      %v796 = vmax.f32 %v792, 0.0
      %v797 = vmax.f32 %v793, 0.0
      %v798 = vpack.c.bf16 %v795, %v794
      %v799 = vpack.c.bf16 %v797, %v796
      %v802 = vunpack.c.l.b16 %v798
      %v803 = vunpack.c.h.b16 %v798
      %v804 = vunpack.c.l.b16 %v799
      %v805 = vunpack.c.h.b16 %v799
      %v806 = vpack.c.b16 %v802, %v802
      %v807 = vpack.c.b16 %v803, %v803
      %v808 = vpack.c.b16 %v804, %v804
      %v809 = vpack.c.b16 %v805, %v805
      %vm814 = vcmask 125952
      %815 = vst.msk [vmem:[%s267] sm:$0xf] %vm814, %v806
      %816 = vst.msk [vmem:[%s267 + $0x4] sm:$0xf] %vm814, %v807
      %817 = vst.msk [vmem:[%s267 + $0x8] sm:$0xf] %vm814, %v808
      %818 = vst.msk [vmem:[%s267 + $0xc] sm:$0xf] %vm814, %v809
      %p819 = scmp.lt.s32.totalorder %s19, 1
      %s820 = scalar_select %p819, %s19, 1
      %p821 = scmp.lt.s32.totalorder %s20, 1
      %s822 = scalar_select %p821, %s20, 1
      %s823 = smul.addr %s822, 4
      %s824 = smul.addr %s820, 8
      %s825 = sadd.s32 %s823, %s824
      %s826 = smul.addr %s825, 4
      %s827 = scalar_lea.vmem %s4, %s826
      // Predicated region
      $region37: #{_lambda_.7} parent=35 // pred_check
        %p828 = pneg %p145
      $region38: #{_lambda_.7} parent=35 // pred_check_branch
        %830 = sbr.rel (%p828) target = $region40
      $region39: #{_lambda_.7} parent=35 // pred_region
        _
      $region40: #{_lambda_.7} parent=35 // pred_fallthru
        _
    $region36: #{_lambda_.7} parent=5 // pred_fallthru
      _
    %p831 = scmp.le.s32.totalorder 2, %s10
    // Predicated region
    $region41: #{_lambda_.7} parent=5 // pred_check
      %p832 = pneg %p831
    $region42: #{_lambda_.7} parent=5 // pred_check_branch
      %834 = sbr.rel (%p832) target = $region44
    $region43: #{_lambda_.7} parent=5 // pred_region
      %s835 = ssub.s32 %s10, 2
      // Predicated region
      $region45: #{_lambda_.7} parent=43 // pred_check
        %p836 = pneg %p151
      $region46: #{_lambda_.7} parent=43 // pred_check_branch
        %838 = sbr.rel (%p836) target = $region48
      $region47: #{_lambda_.7} parent=43 // pred_region
        %p839 = scmp.lt.s32.totalorder %s21, 1
        %s840 = scalar_select %p839, %s21, 1
        %p841 = scmp.lt.s32.totalorder %s22, 1
        %s842 = scalar_select %p841, %s22, 1
        %s843 = smul.addr %s842, 4
        %s844 = smul.addr %s840, 8
        %s845 = sadd.s32 %s843, %s844
        %s846 = smul.addr %s845, 4
        %s847 = scalar_lea.vmem %s4, %s846
      $region48: #{_lambda_.7} parent=43 // pred_fallthru
        _
    $region44: #{_lambda_.7} parent=5 // pred_fallthru
      _
  $region6: #{_lambda_.7} parent=0 // loop_footer
    %s14 = sadd.s32 1, %s10
  $region7: #{_lambda_.7} parent=0 // loop_footer_branch
    %9 = sbr.rel target = $region3
  $region8: #{_lambda_.7} parent=0 // loop_exit
    _

// kernel: _lambda_.6
$region0: #{_lambda_.6}
  #allocation0 [shape = 'u32[]', space=smem, size = 0x4, offset = 0x4, fixed_abs, tag = 'smem constant byte address 0x4 - core index']
  #allocation1 [shape = 'u32[144,128]{1,0:T(1,128)}', space=vmem, size = 0x12000, scoped, tag = 'internal scratch']
  %s0 = inlined_call_operand.vmem [shape: bf16[2,2,6,10,16], index: 0, kind: input, shape index: {}]
  %s1 = inlined_call_operand.vmem [shape: bf16[144,16], index: 1, kind: input, shape index: {}]
  %s2 = inlined_call_operand.vmem [shape: f32[1,16], index: 2, kind: input, shape index: {}]
  %s3 = inlined_call_operand.vmem [shape: bf16[2,2,32,16], index: 3, kind: output, shape index: {}]
  %s4 = sld [smem:[#allocation0]]
  $region45: #{_lambda_.6} parent=0
    _
  %s6 = ssub.s32 1, %s4
  %s7 = scalar_select 0, %s6, %s4
  loop: start=0, step=1, limit=6
  $region2: #{_lambda_.6} parent=0 // loop_pre_header
    _
  $region3: #{_lambda_.6} parent=0 // loop_header
    %s9 = sphi 0, %s13
    %p10 = scmp.ge.s32.totalorder %s9, 6
    %s16 = sphi 0, %s28
    %s17 = sphi 0, %s24
    %s18 = sphi 0, %s16
    %s19 = sphi 0, %s17
    %s20 = sphi 0, %s18
    %s21 = sphi 0, %s19
    %s33 = sphi 0, %s35
    %s36 = sphi 0, %s33
    %s37 = sphi 0, %s36
    %s53 = sphi 0, %s37
    %s57 = sphi 0, %s57
    %s59 = sphi 0, %s57
    %s60 = sphi 0, %s59
    %s74 = sphi 0, %s60
    %s78 = sphi 0, %s78
    %s80 = sphi 0, %s78
    %s81 = sphi 0, %s80
    %s95 = sphi 0, %s81
    %s103 = sphi 0, %s105
    %s106 = sphi 0, %s103
    %s107 = sphi 0, %s106
    %s123 = sphi 0, %s107
  $region4: #{_lambda_.6} parent=0 // loop_header_branch
    %12 = sbr.rel (%p10) target = $region8
  $region5: #{_lambda_.6} parent=0 // loop_body
    %s14 = ssub.s32 %s9, 1
    %s15 = ssub.s32 %s9, 2
    %s22 = sadd.s32 1, %s17
    %p23 = scmp.ge.s32.totalorder %s22, 2
    %s24 = scalar_select %p23, 0, %s22
    %s25 = sadd.s32 1, %s16
    %s26 = scalar_select %p23, %s25, %s16
    %p27 = scmp.ge.s32.totalorder %s26, 2
    %s28 = scalar_select %p27, 0, %s26
    %s29 = ssub.s32 %s16, %s28
    %s30 = ssub.s32 %s17, %s24
    %s31 = sor.u32 %s29, %s30
    %p32 = scmp.eq.s32.totalorder %s31, 0
    %s34 = sadd.s32 %s33, 1
    %s35 = scalar_select %p32, %s33, %s34
    %p38 = pneg %p32
    %p39 = scmp.eq.s32.totalorder %s9, 3
    %p40 = por %p38, %p39
    %p41 = scmp.ne.s32.totalorder %s33, %s36
    %p42 = scmp.eq.s32.totalorder %s9, 0
    %p43 = por %p41, %p42
    %p44 = scmp.ne.s32.totalorder %s33, %s36
    %p45 = scmp.eq.s32.totalorder %s14, 3
    %p46 = por %p44, %p45
    %p47 = scmp.ne.s32.totalorder %s36, %s37
    %p48 = scmp.eq.s32.totalorder %s14, 0
    %p49 = por %p47, %p48
    %p50 = scmp.ne.s32.totalorder %s36, %s37
    %p51 = scmp.eq.s32.totalorder %s15, 3
    %p52 = por %p50, %p51
    %p54 = scmp.ne.s32.totalorder %s37, %s53
    %p55 = scmp.eq.s32.totalorder %s15, 0
    %p56 = por %p54, %p55
    %s58 = sadd.s32 %s57, 1
    %p61 = scmp.eq.s32.totalorder %s9, 3
    %p62 = scmp.ne.s32.totalorder %s57, %s59
    %p63 = scmp.eq.s32.totalorder %s9, 0
    %p64 = por %p62, %p63
    %p65 = scmp.ne.s32.totalorder %s57, %s59
    %p66 = scmp.eq.s32.totalorder %s14, 3
    %p67 = por %p65, %p66
    %p68 = scmp.ne.s32.totalorder %s59, %s60
    %p69 = scmp.eq.s32.totalorder %s14, 0
    %p70 = por %p68, %p69
    %p71 = scmp.ne.s32.totalorder %s59, %s60
    %p72 = scmp.eq.s32.totalorder %s15, 3
    %p73 = por %p71, %p72
    %p75 = scmp.ne.s32.totalorder %s60, %s74
    %p76 = scmp.eq.s32.totalorder %s15, 0
    %p77 = por %p75, %p76
    %s79 = sadd.s32 %s78, 1
    %p82 = scmp.eq.s32.totalorder %s9, 3
    %p83 = scmp.ne.s32.totalorder %s78, %s80
    %p84 = scmp.eq.s32.totalorder %s9, 0
    %p85 = por %p83, %p84
    %p86 = scmp.ne.s32.totalorder %s78, %s80
    %p87 = scmp.eq.s32.totalorder %s14, 3
    %p88 = por %p86, %p87
    %p89 = scmp.ne.s32.totalorder %s80, %s81
    %p90 = scmp.eq.s32.totalorder %s14, 0
    %p91 = por %p89, %p90
    %p92 = scmp.ne.s32.totalorder %s80, %s81
    %p93 = scmp.eq.s32.totalorder %s15, 3
    %p94 = por %p92, %p93
    %p96 = scmp.ne.s32.totalorder %s81, %s95
    %p97 = scmp.eq.s32.totalorder %s15, 0
    %p98 = por %p96, %p97
    %s99 = ssub.s32 %s16, %s28
    %s100 = ssub.s32 %s17, %s24
    %s101 = sor.u32 %s99, %s100
    %p102 = scmp.eq.s32.totalorder %s101, 0
    %s104 = sadd.s32 %s103, 1
    %s105 = scalar_select %p102, %s103, %s104
    %p108 = pneg %p102
    %p109 = scmp.eq.s32.totalorder %s9, 3
    %p110 = por %p108, %p109
    %p111 = scmp.ne.s32.totalorder %s103, %s106
    %p112 = scmp.eq.s32.totalorder %s9, 0
    %p113 = por %p111, %p112
    %p114 = scmp.ne.s32.totalorder %s103, %s106
    %p115 = scmp.eq.s32.totalorder %s14, 3
    %p116 = por %p114, %p115
    %p117 = scmp.ne.s32.totalorder %s106, %s107
    %p118 = scmp.eq.s32.totalorder %s14, 0
    %p119 = por %p117, %p118
    %p120 = scmp.ne.s32.totalorder %s106, %s107
    %p121 = scmp.eq.s32.totalorder %s15, 3
    %p122 = por %p120, %p121
    %p124 = scmp.ne.s32.totalorder %s107, %s123
    %p125 = scmp.eq.s32.totalorder %s15, 0
    %p126 = por %p124, %p125
    %p127 = scmp.le.s32.totalorder 1, %s9
    %p128 = scmp.lt.s32.totalorder %s9, 5
    %p129 = pnand %p127, %p128
    %p130 = pneg %p129
    // Predicated region
    $region9: #{_lambda_.6} parent=5 // pred_check
      _
    $region10: #{_lambda_.6} parent=5 // pred_check_branch
      %132 = sbr.rel (%p129) target = $region12
    $region11: #{_lambda_.6} parent=5 // pred_region
      %s133 = ssub.s32 %s9, 1
      // Predicated region
      $region13: #{_lambda_.6} parent=11 // pred_check
        %p134 = pneg %p70
      $region14: #{_lambda_.6} parent=11 // pred_check_branch
        %136 = sbr.rel (%p134) target = $region16
      $region15: #{_lambda_.6} parent=11 // pred_region
        _
      $region16: #{_lambda_.6} parent=11 // pred_fallthru
        _
      // Predicated region
      $region17: #{_lambda_.6} parent=11 // pred_check
        %p137 = pneg %p91
      $region18: #{_lambda_.6} parent=11 // pred_check_branch
        %139 = sbr.rel (%p137) target = $region20
      $region19: #{_lambda_.6} parent=11 // pred_region
        _
      $region20: #{_lambda_.6} parent=11 // pred_fallthru
        _
    $region12: #{_lambda_.6} parent=5 // pred_fallthru
      _
    %p140 = scmp.lt.s32.totalorder %s9, 4
    // Predicated region
    $region21: #{_lambda_.6} parent=5 // pred_check
      %p141 = pneg %p140
    $region22: #{_lambda_.6} parent=5 // pred_check_branch
      %143 = sbr.rel (%p141) target = $region24
    $region23: #{_lambda_.6} parent=5 // pred_region
      // Predicated region
      $region25: #{_lambda_.6} parent=23 // pred_check
        %p144 = pneg %p43
      $region26: #{_lambda_.6} parent=23 // pred_check_branch
        %146 = sbr.rel (%p144) target = $region28
      $region27: #{_lambda_.6} parent=23 // pred_region
        %p147 = scmp.lt.s32.totalorder %s16, 1
        %s148 = scalar_select %p147, %s16, 1
        %p149 = scmp.lt.s32.totalorder %s17, 1
        %s150 = scalar_select %p149, %s17, 1
        %s151 = smul.addr %s150, 12
        %s152 = smul.addr %s148, 24
        %s153 = sadd.s32 %s151, %s152
        %s154 = smul.addr %s153, 4
        %s155 = scalar_lea.vmem %s0, %s154
      $region28: #{_lambda_.6} parent=23 // pred_fallthru
        _
    $region24: #{_lambda_.6} parent=5 // pred_fallthru
      _
    %p156 = scmp.le.s32.totalorder 1, %s9
    %p157 = scmp.lt.s32.totalorder %s9, 5
    %p158 = pnand %p156, %p157
    %p159 = pneg %p158
    // Predicated region
    $region29: #{_lambda_.6} parent=5 // pred_check
      _
    $region30: #{_lambda_.6} parent=5 // pred_check_branch
      %161 = sbr.rel (%p158) target = $region32
    $region31: #{_lambda_.6} parent=5 // pred_region
      %s162 = ssub.s32 %s9, 1
      %p163 = scmp.lt.s32.totalorder %s18, 1
      %s164 = scalar_select %p163, %s18, 1
      %p165 = scmp.lt.s32.totalorder %s19, 1
      %s166 = scalar_select %p165, %s19, 1
      %s167 = smul.addr %s166, 12
      %s168 = smul.addr %s164, 24
      %s169 = sadd.s32 %s167, %s168
      %s170 = smul.addr %s169, 4
      %s171 = scalar_lea.vmem %s0, %s170
      %p172 = pneg %p49
      %p173 = pneg %p46
      %p174 = pneg %p70
      %p175 = pneg %p67
      %p176 = pneg %p91
      %p177 = pneg %p88
      %p178 = pneg %p119
      %p179 = pneg %p116
      %p180 = scmp.lt.s32.totalorder %s18, 1
      %s181 = scalar_select %p180, %s18, 1
      %p182 = scmp.lt.s32.totalorder %s19, 1
      %s183 = scalar_select %p182, %s19, 1
      %s184 = smul.addr %s183, 4
      %s185 = smul.addr %s181, 8
      %s186 = sadd.s32 %s184, %s185
      %s187 = smul.addr %s186, 4
      %s188 = scalar_lea.vmem %s3, %s187
      %p189 = scmp.lt.s32.totalorder %s18, 1
      %s190 = scalar_select %p189, %s18, 1
      %p191 = scmp.lt.s32.totalorder %s19, 1
      %s192 = scalar_select %p191, %s19, 1
      %s193 = smul.addr %s192, 12
      %s194 = smul.addr %s190, 24
      %s195 = sadd.s32 %s193, %s194
      %s196 = smul.addr %s195, 4
      %s197 = scalar_lea.vmem %s0, %s196
      %p198 = scmp.lt.s32.totalorder %s18, 1
      %s199 = scalar_select %p198, %s18, 1
      %p200 = scmp.lt.s32.totalorder %s19, 1
      %s201 = scalar_select %p200, %s19, 1
      %s202 = smul.addr %s201, 4
      %s203 = smul.addr %s199, 8
      %s204 = sadd.s32 %s202, %s203
      %s205 = smul.addr %s204, 4
      %s206 = scalar_lea.vmem %s3, %s205
      %v208 = vld [vmem:[%s197] sm:$0xf]
      %v209 = vld [vmem:[%s197 + $0x8] sm:$0xf]
      %v210 = vld [vmem:[%s197 + $0x10] sm:$0xf]
      %v211 = vld [vmem:[%s197 + $0x18] sm:$0xf]
      %v212 = vld [vmem:[%s197 + $0x4] sm:$0x1]
      %v213 = vld [vmem:[%s197 + $0xc] sm:$0x1]
      %v214 = vld [vmem:[%s197 + $0x14] sm:$0x1]
      %v215 = vld [vmem:[%s197 + $0x1c] sm:$0x1]
      %v216 = vld [vmem:[%s197] sm:$0xe]
      %v217 = vld [vmem:[%s197 + $0x8] sm:$0xe]
      %v218 = vld [vmem:[%s197 + $0x10] sm:$0xe]
      %v219 = vld [vmem:[%s197 + $0x18] sm:$0xe]
      %s220 = scalar_lea.vmem %s197, 8
      %v221 = vld [vmem:[%s220] sm:$0xf]
      %v222 = vld [vmem:[%s220 + $0x8] sm:$0xf]
      %v223 = vld [vmem:[%s220 + $0x10] sm:$0xf]
      %v224 = vld [vmem:[%s220 + $0x18] sm:$0xf]
      %v225 = vld [vmem:[%s220 + $0x4] sm:$0x1]
      %v226 = vld [vmem:[%s220 + $0xc] sm:$0x1]
      %v227 = vld [vmem:[%s220 + $0x14] sm:$0x1]
      %v228 = vld [vmem:[%s220 + $0x1c] sm:$0x1]
      %v229 = vld [vmem:[%s220] sm:$0xe]
      %v230 = vld [vmem:[%s220 + $0x8] sm:$0xe]
      %v231 = vld [vmem:[%s220 + $0x10] sm:$0xe]
      %v232 = vld [vmem:[%s220 + $0x18] sm:$0xe]
      %s233 = scalar_lea.vmem %s197, 16
      %v234 = vld [vmem:[%s233] sm:$0xf]
      %v235 = vld [vmem:[%s233 + $0x8] sm:$0xf]
      %v236 = vld [vmem:[%s233 + $0x10] sm:$0xf]
      %v237 = vld [vmem:[%s233 + $0x18] sm:$0xf]
      %v238 = vld [vmem:[%s233 + $0x4] sm:$0x1]
      %v239 = vld [vmem:[%s233 + $0xc] sm:$0x1]
      %v240 = vld [vmem:[%s233 + $0x14] sm:$0x1]
      %v241 = vld [vmem:[%s233 + $0x1c] sm:$0x1]
      %v242 = vld [vmem:[%s233] sm:$0xe]
      %v243 = vld [vmem:[%s233 + $0x8] sm:$0xe]
      %v244 = vld [vmem:[%s233 + $0x10] sm:$0xe]
      %v245 = vld [vmem:[%s233 + $0x18] sm:$0xe]
      %v254 = vunpack.c.l.b16 %v208
      %v255 = vunpack.c.l.b16 %v212
      %v256 = vunpack.c.l.b16 %v209
      %v257 = vunpack.c.l.b16 %v213
      %v258 = vunpack.c.l.b16 %v210
      %v259 = vunpack.c.l.b16 %v214
      %v260 = vunpack.c.l.b16 %v211
      %v261 = vunpack.c.l.b16 %v215
      %v262 = vpack.c.b16 %v255, %v254
      %v263 = vpack.c.b16 %v257, %v256
      %v264 = vpack.c.b16 %v259, %v258
      %v265 = vpack.c.b16 %v261, %v260
      %v267 = vshrl.u32 %v262, 16
      %v269 = vshll.u32 %v262, 16
      %v271 = vrot.slane %v269, 1
      %v272 = vor.u32 %v267, %v271
      %v274 = vshrl.u32 %v263, 16
      %v276 = vshll.u32 %v263, 16
      %v278 = vrot.slane %v276, 1
      %v279 = vor.u32 %v274, %v278
      %v281 = vshrl.u32 %v264, 16
      %v283 = vshll.u32 %v264, 16
      %v285 = vrot.slane %v283, 1
      %v286 = vor.u32 %v281, %v285
      %v288 = vshrl.u32 %v265, 16
      %v290 = vshll.u32 %v265, 16
      %v292 = vrot.slane %v290, 1
      %v293 = vor.u32 %v288, %v292
      %294 = vrot.lane.b32.xlu0 %v272, 16
      %v295 = vpop.permute.xlu0 %294
      %296 = vrot.lane.b32.xlu0 %v279, 16
      %v297 = vpop.permute.xlu0 %296
      %298 = vrot.lane.b32.xlu0 %v286, 16
      %v299 = vpop.permute.xlu0 %298
      %300 = vrot.lane.b32.xlu0 %v293, 16
      %v301 = vpop.permute.xlu0 %300
      %v306 = vunpack.c.l.b16 %v216
      %v307 = vunpack.c.l.b16 %v217
      %v308 = vunpack.c.l.b16 %v218
      %v309 = vunpack.c.l.b16 %v219
      %v310 = vpack.c.b16 %v255, %v306
      %v311 = vpack.c.b16 %v257, %v307
      %v312 = vpack.c.b16 %v259, %v308
      %v313 = vpack.c.b16 %v261, %v309
      %v314 = vrot.slane %v310, 1
      %v315 = vrot.slane %v311, 1
      %v316 = vrot.slane %v312, 1
      %v317 = vrot.slane %v313, 1
      %318 = vrot.lane.b32.xlu0 %v314, 32
      %v319 = vpop.permute.xlu0 %318
      %320 = vrot.lane.b32.xlu0 %v315, 32
      %v321 = vpop.permute.xlu0 %320
      %322 = vrot.lane.b32.xlu0 %v316, 32
      %v323 = vpop.permute.xlu0 %322
      %324 = vrot.lane.b32.xlu0 %v317, 32
      %v325 = vpop.permute.xlu0 %324
      %v330 = vunpack.c.l.b16 %v221
      %v331 = vunpack.c.l.b16 %v222
      %v332 = vunpack.c.l.b16 %v223
      %v333 = vunpack.c.l.b16 %v224
      %v334 = vpack.c.b16 %v330, %v330
      %v335 = vpack.c.b16 %v331, %v331
      %v336 = vpack.c.b16 %v332, %v332
      %v337 = vpack.c.b16 %v333, %v333
      %338 = vrot.lane.b32.xlu0 %v334, 48
      %v339 = vpop.permute.xlu0 %338
      %340 = vrot.lane.b32.xlu0 %v335, 48
      %v341 = vpop.permute.xlu0 %340
      %342 = vrot.lane.b32.xlu0 %v336, 48
      %v343 = vpop.permute.xlu0 %342
      %344 = vrot.lane.b32.xlu0 %v337, 48
      %v345 = vpop.permute.xlu0 %344
      %v350 = vunpack.c.l.b16 %v225
      %v351 = vunpack.c.l.b16 %v226
      %v352 = vunpack.c.l.b16 %v227
      %v353 = vunpack.c.l.b16 %v228
      %v354 = vpack.c.b16 %v350, %v330
      %v355 = vpack.c.b16 %v351, %v331
      %v356 = vpack.c.b16 %v352, %v332
      %v357 = vpack.c.b16 %v353, %v333
      %v359 = vshrl.u32 %v354, 16
      %v361 = vshll.u32 %v354, 16
      %v363 = vrot.slane %v361, 1
      %v364 = vor.u32 %v359, %v363
      %v366 = vshrl.u32 %v355, 16
      %v368 = vshll.u32 %v355, 16
      %v370 = vrot.slane %v368, 1
      %v371 = vor.u32 %v366, %v370
      %v373 = vshrl.u32 %v356, 16
      %v375 = vshll.u32 %v356, 16
      %v377 = vrot.slane %v375, 1
      %v378 = vor.u32 %v373, %v377
      %v380 = vshrl.u32 %v357, 16
      %v382 = vshll.u32 %v357, 16
      %v384 = vrot.slane %v382, 1
      %v385 = vor.u32 %v380, %v384
      %386 = vrot.lane.b32.xlu0 %v364, 64
      %v387 = vpop.permute.xlu0 %386
      %388 = vrot.lane.b32.xlu0 %v371, 64
      %v389 = vpop.permute.xlu0 %388
      %390 = vrot.lane.b32.xlu0 %v378, 64
      %v391 = vpop.permute.xlu0 %390
      %392 = vrot.lane.b32.xlu0 %v385, 64
      %v393 = vpop.permute.xlu0 %392
      %v398 = vunpack.c.l.b16 %v229
      %v399 = vunpack.c.l.b16 %v230
      %v400 = vunpack.c.l.b16 %v231
      %v401 = vunpack.c.l.b16 %v232
      %v402 = vpack.c.b16 %v350, %v398
      %v403 = vpack.c.b16 %v351, %v399
      %v404 = vpack.c.b16 %v352, %v400
      %v405 = vpack.c.b16 %v353, %v401
      %v406 = vrot.slane %v402, 1
      %v407 = vrot.slane %v403, 1
      %v408 = vrot.slane %v404, 1
      %v409 = vrot.slane %v405, 1
      %410 = vrot.lane.b32.xlu0 %v406, 80
      %v411 = vpop.permute.xlu0 %410
      %412 = vrot.lane.b32.xlu0 %v407, 80
      %v413 = vpop.permute.xlu0 %412
      %414 = vrot.lane.b32.xlu0 %v408, 80
      %v415 = vpop.permute.xlu0 %414
      %416 = vrot.lane.b32.xlu0 %v409, 80
      %v417 = vpop.permute.xlu0 %416
      %v422 = vunpack.c.l.b16 %v234
      %v423 = vunpack.c.l.b16 %v235
      %v424 = vunpack.c.l.b16 %v236
      %v425 = vunpack.c.l.b16 %v237
      %v426 = vpack.c.b16 %v422, %v422
      %v427 = vpack.c.b16 %v423, %v423
      %v428 = vpack.c.b16 %v424, %v424
      %v429 = vpack.c.b16 %v425, %v425
      %430 = vrot.lane.b32.xlu0 %v426, 96
      %v431 = vpop.permute.xlu0 %430
      %432 = vrot.lane.b32.xlu0 %v427, 96
      %v433 = vpop.permute.xlu0 %432
      %434 = vrot.lane.b32.xlu0 %v428, 96
      %v435 = vpop.permute.xlu0 %434
      %436 = vrot.lane.b32.xlu0 %v429, 96
      %v437 = vpop.permute.xlu0 %436
      %v442 = vunpack.c.l.b16 %v238
      %v443 = vunpack.c.l.b16 %v239
      %v444 = vunpack.c.l.b16 %v240
      %v445 = vunpack.c.l.b16 %v241
      %v446 = vpack.c.b16 %v442, %v422
      %v447 = vpack.c.b16 %v443, %v423
      %v448 = vpack.c.b16 %v444, %v424
      %v449 = vpack.c.b16 %v445, %v425
      %v451 = vshrl.u32 %v446, 16
      %v453 = vshll.u32 %v446, 16
      %v455 = vrot.slane %v453, 1
      %v456 = vor.u32 %v451, %v455
      %v458 = vshrl.u32 %v447, 16
      %v460 = vshll.u32 %v447, 16
      %v462 = vrot.slane %v460, 1
      %v463 = vor.u32 %v458, %v462
      %v465 = vshrl.u32 %v448, 16
      %v467 = vshll.u32 %v448, 16
      %v469 = vrot.slane %v467, 1
      %v470 = vor.u32 %v465, %v469
      %v472 = vshrl.u32 %v449, 16
      %v474 = vshll.u32 %v449, 16
      %v476 = vrot.slane %v474, 1
      %v477 = vor.u32 %v472, %v476
      %478 = vrot.lane.b32.xlu0 %v456, 112
      %v479 = vpop.permute.xlu0 %478
      %480 = vrot.lane.b32.xlu0 %v463, 112
      %v481 = vpop.permute.xlu0 %480
      %482 = vrot.lane.b32.xlu0 %v470, 112
      %v483 = vpop.permute.xlu0 %482
      %484 = vrot.lane.b32.xlu0 %v477, 112
      %v485 = vpop.permute.xlu0 %484
      %v490 = vunpack.c.l.b16 %v242
      %v491 = vunpack.c.l.b16 %v243
      %v492 = vunpack.c.l.b16 %v244
      %v493 = vunpack.c.l.b16 %v245
      %v494 = vpack.c.b16 %v442, %v490
      %v495 = vpack.c.b16 %v443, %v491
      %v496 = vpack.c.b16 %v444, %v492
      %v497 = vpack.c.b16 %v445, %v493
      %v498 = vrot.slane %v494, 1
      %v499 = vrot.slane %v495, 1
      %v500 = vrot.slane %v496, 1
      %v501 = vrot.slane %v497, 1
      %vm502 = vcmask 130048
      %v505 = vsel %vm502, %v208, %v295
      %v508 = vsel %vm502, %v209, %v297
      %v511 = vsel %vm502, %v210, %v299
      %v514 = vsel %vm502, %v211, %v301
      %vm515 = vcmask 261120
      %v517 = vsel %vm515, %v505, %v319
      %v519 = vsel %vm515, %v508, %v321
      %v521 = vsel %vm515, %v511, %v323
      %v523 = vsel %vm515, %v514, %v325
      %vm524 = vcmask 392192
      %v526 = vsel %vm524, %v517, %v339
      %v528 = vsel %vm524, %v519, %v341
      %v530 = vsel %vm524, %v521, %v343
      %v532 = vsel %vm524, %v523, %v345
      %vm533 = vcmask 523264
      %v535 = vsel %vm533, %v526, %v387
      %v537 = vsel %vm533, %v528, %v389
      %v539 = vsel %vm533, %v530, %v391
      %v541 = vsel %vm533, %v532, %v393
      %vm542 = vcmask 654336
      %v544 = vsel %vm542, %v535, %v411
      %v546 = vsel %vm542, %v537, %v413
      %v548 = vsel %vm542, %v539, %v415
      %v550 = vsel %vm542, %v541, %v417
      %vm551 = vcmask 785408
      %v553 = vsel %vm551, %v544, %v431
      %v555 = vsel %vm551, %v546, %v433
      %v557 = vsel %vm551, %v548, %v435
      %v559 = vsel %vm551, %v550, %v437
      %vm560 = vcmask 916480
      %v562 = vsel %vm560, %v553, %v479
      %v564 = vsel %vm560, %v555, %v481
      %v566 = vsel %vm560, %v557, %v483
      %v568 = vsel %vm560, %v559, %v485
      %v573 = vunpack.c.l.b16 %v562
      %v574 = vunpack.c.l.b16 %v498
      %v575 = vunpack.c.l.b16 %v564
      %v576 = vunpack.c.l.b16 %v499
      %v577 = vunpack.c.l.b16 %v566
      %v578 = vunpack.c.l.b16 %v500
      %v579 = vunpack.c.l.b16 %v568
      %v580 = vunpack.c.l.b16 %v501
      %v581 = vld [vmem:[%s1] sm:$0xf]
      %v582 = vld [vmem:[%s1 + $0x4] sm:$0xf]
      %v583 = vld [vmem:[%s1 + $0x8] sm:$0xf]
      %v584 = vld [vmem:[%s1 + $0xc] sm:$0xf]
      %v585 = vld [vmem:[%s1 + $0x10] sm:$0xf]
      %v586 = vld [vmem:[%s1 + $0x14] sm:$0xf]
      %v587 = vld [vmem:[%s1 + $0x18] sm:$0xf]
      %v588 = vld [vmem:[%s1 + $0x1c] sm:$0xf]
      %v589 = vld [vmem:[%s1 + $0x20] sm:$0xf]
      %v590 = vld [vmem:[%s1 + $0x24] sm:$0xf]
      %v591 = vld [vmem:[%s1 + $0x28] sm:$0xf]
      %v592 = vld [vmem:[%s1 + $0x2c] sm:$0xf]
      %v593 = vld [vmem:[%s1 + $0x30] sm:$0xf]
      %v594 = vld [vmem:[%s1 + $0x34] sm:$0xf]
      %v595 = vld [vmem:[%s1 + $0x38] sm:$0xf]
      %v596 = vld [vmem:[%s1 + $0x3c] sm:$0xf]
      %v597 = vld [vmem:[%s1 + $0x40] sm:$0xf]
      %v598 = vld [vmem:[%s1 + $0x44] sm:$0xf]
      %v599 = vld [vmem:[%s2] sm:$0x1]
      %v601 = vlaneseq
      %v602 = vshrl.u32 %v601, 7
      %v603 = vsub.s32 0, %v602
      %v604 = vrot.slane %v599, %v603
      %v606 = vpack.c.b16 %v575, %v573
      %v607 = vpack.c.b16 %v576, %v574
      %v608 = vpack.c.b16 %v579, %v577
      %v609 = vpack.c.b16 %v580, %v578
      %v630 = vunpack.c.l.b16 %v581
      %v631 = vunpack.c.l.b16 %v582
      %v632 = vunpack.c.l.b16 %v583
      %v633 = vunpack.c.l.b16 %v584
      %v634 = vunpack.c.l.b16 %v585
      %v635 = vunpack.c.l.b16 %v586
      %v636 = vunpack.c.l.b16 %v587
      %v637 = vunpack.c.l.b16 %v588
      %v638 = vunpack.c.l.b16 %v589
      %v639 = vunpack.c.l.b16 %v590
      %v640 = vunpack.c.l.b16 %v591
      %v641 = vunpack.c.l.b16 %v592
      %v642 = vunpack.c.l.b16 %v593
      %v643 = vunpack.c.l.b16 %v594
      %v644 = vunpack.c.l.b16 %v595
      %v645 = vunpack.c.l.b16 %v596
      %v646 = vunpack.c.l.b16 %v597
      %v647 = vunpack.c.l.b16 %v598
      %v648 = vpack.c.b16 %v631, %v630
      %v649 = vpack.c.b16 %v633, %v632
      %v650 = vpack.c.b16 %v635, %v634
      %v651 = vpack.c.b16 %v637, %v636
      %v652 = vpack.c.b16 %v639, %v638
      %v653 = vpack.c.b16 %v641, %v640
      %v654 = vpack.c.b16 %v643, %v642
      %v655 = vpack.c.b16 %v645, %v644
      %v656 = vpack.c.b16 %v647, %v646
      %v667 = vsel %vm502, %v607, 0
      %v670 = vsel %vm502, %v609, 0
      %672 = vmatprep.subr.bf16.mxu0 0
      %673 = vmatpush1.bf16.msra.mxu0 %v648
      %674 = vmatprep.subr.bf16.mxu0 0
      %675 = vmatpush1.bf16.msra.mxu0 %v649
      %676 = vmatprep.subr.bf16.mxu0 0
      %677 = vmatpush1.bf16.msra.mxu0 %v650
      %678 = vmatprep.subr.bf16.mxu0 0
      %679 = vmatpush1.bf16.msra.mxu0 %v651
      %680 = vmatprep.subr.bf16.mxu0 0
      %681 = vmatpush1.bf16.msra.mxu0 %v652
      %682 = vmatprep.subr.bf16.mxu0 0
      %683 = vmatpush1.bf16.msra.mxu0 %v653
      %684 = vmatprep.subr.bf16.mxu0 0
      %685 = vmatpush1.bf16.msra.mxu0 %v654
      %686 = vmatprep.subr.bf16.mxu0 0
      %687 = vmatpush1.bf16.msra.mxu0 %v655
      %688 = vmatprep.subr.bf16.mxu0 0
      %689 = vmatpush1.bf16.msra.mxu0 %v656
      %690 = vmatprep.subr.bf16.mxu0 0
      %691 = vmatpush1.bf16.msra.mxu0 0
      %692 = vmatprep.subr.bf16.mxu0 0
      %693 = vmatpush1.bf16.msra.mxu0 0
      %694 = vmatprep.subr.bf16.mxu0 0
      %695 = vmatpush1.bf16.msra.mxu0 0
      %696 = vmatprep.subr.bf16.mxu0 0
      %697 = vmatpush1.bf16.msra.mxu0 0
      %698 = vmatprep.subr.bf16.mxu0 0
      %699 = vmatpush1.bf16.msra.mxu0 0
      %700 = vmatprep.subr.bf16.mxu0 0
      %701 = vmatpush1.bf16.msra.mxu0 0
      %702 = vmatprep.subr.bf16.mxu0 0
      %703 = vmatpush1.bf16.msra.mxu0 0
      %704 = vmatprep.mubr.bf16.mxu0 %v667
      %705 = vmatmul.mubr.bf16.gmra.mrb[0].mxu0 %v606
      %v706 = vpop.f32.mrb[0].mxu0
      %v707 = vadd.f32 %v604, %v706
      %v708 = vpop.f32.mrb[0].mxu0
      %v709 = vpop.f32.mrb[0].mxu0
      %v710 = vadd.f32 %v604, %v709
      %v711 = vpop.f32.mrb[0].mxu0
      %712 = vmatprep.mubr.bf16.mxu0 %v670
      %713 = vmatmul.mubr.bf16.gmra.mrb[0].mxu0 %v608
      %v714 = vpop.f32.mrb[0].mxu0
      %v715 = vadd.f32 %v604, %v714
      %v716 = vpop.f32.mrb[0].mxu0
      %v717 = vpop.f32.mrb[0].mxu0
      %v718 = vadd.f32 %v604, %v717
      %v719 = vpop.f32.mrb[0].mxu0
      %720 = vdwg.mxu0
      %v721 = vmax.f32 %v707, 0.0
      %v722 = vmax.f32 %v710, 0.0
      %v723 = vmax.f32 %v715, 0.0
      %v724 = vmax.f32 %v718, 0.0
      %v725 = vpack.c.bf16 %v722, %v721
      %v726 = vpack.c.bf16 %v724, %v723
      %v729 = vunpack.c.l.b16 %v725
      %v730 = vunpack.c.h.b16 %v725
      %v731 = vunpack.c.l.b16 %v726
      %v732 = vunpack.c.h.b16 %v726
      %v733 = vpack.c.b16 %v729, %v729
      %v734 = vpack.c.b16 %v730, %v730
      %v735 = vpack.c.b16 %v731, %v731
      %v736 = vpack.c.b16 %v732, %v732
      %vm741 = vcmask 125952
      %742 = vst.msk [vmem:[%s206] sm:$0xf] %vm741, %v733
      %743 = vst.msk [vmem:[%s206 + $0x4] sm:$0xf] %vm741, %v734
      %744 = vst.msk [vmem:[%s206 + $0x8] sm:$0xf] %vm741, %v735
      %745 = vst.msk [vmem:[%s206 + $0xc] sm:$0xf] %vm741, %v736
      %p746 = scmp.lt.s32.totalorder %s18, 1
      %s747 = scalar_select %p746, %s18, 1
      %p748 = scmp.lt.s32.totalorder %s19, 1
      %s749 = scalar_select %p748, %s19, 1
      %s750 = smul.addr %s749, 4
      %s751 = smul.addr %s747, 8
      %s752 = sadd.s32 %s750, %s751
      %s753 = smul.addr %s752, 4
      %s754 = scalar_lea.vmem %s3, %s753
      // Predicated region
      $region33: #{_lambda_.6} parent=31 // pred_check
        %p755 = pneg %p116
      $region34: #{_lambda_.6} parent=31 // pred_check_branch
        %757 = sbr.rel (%p755) target = $region36
      $region35: #{_lambda_.6} parent=31 // pred_region
        _
      $region36: #{_lambda_.6} parent=31 // pred_fallthru
        _
    $region32: #{_lambda_.6} parent=5 // pred_fallthru
      _
    %p758 = scmp.le.s32.totalorder 2, %s9
    // Predicated region
    $region37: #{_lambda_.6} parent=5 // pred_check
      %p759 = pneg %p758
    $region38: #{_lambda_.6} parent=5 // pred_check_branch
      %761 = sbr.rel (%p759) target = $region40
    $region39: #{_lambda_.6} parent=5 // pred_region
      %s762 = ssub.s32 %s9, 2
      // Predicated region
      $region41: #{_lambda_.6} parent=39 // pred_check
        %p763 = pneg %p122
      $region42: #{_lambda_.6} parent=39 // pred_check_branch
        %765 = sbr.rel (%p763) target = $region44
      $region43: #{_lambda_.6} parent=39 // pred_region
        %p766 = scmp.lt.s32.totalorder %s20, 1
        %s767 = scalar_select %p766, %s20, 1
        %p768 = scmp.lt.s32.totalorder %s21, 1
        %s769 = scalar_select %p768, %s21, 1
        %s770 = smul.addr %s769, 4
        %s771 = smul.addr %s767, 8
        %s772 = sadd.s32 %s770, %s771
        %s773 = smul.addr %s772, 4
        %s774 = scalar_lea.vmem %s3, %s773
      $region44: #{_lambda_.6} parent=39 // pred_fallthru
        _
    $region40: #{_lambda_.6} parent=5 // pred_fallthru
      _
  $region6: #{_lambda_.6} parent=0 // loop_footer
    %s13 = sadd.s32 1, %s9
  $region7: #{_lambda_.6} parent=0 // loop_footer_branch
    %8 = sbr.rel target = $region3
  $region8: #{_lambda_.6} parent=0 // loop_exit
    _

// kernel: _lambda_.5
$region0: #{_lambda_.5}
  #allocation0 [shape = 'u32[]', space=smem, size = 0x4, offset = 0x4, fixed_abs, tag = 'smem constant byte address 0x4 - core index']
  #allocation1 [shape = 'u32[144,128]{1,0:T(1,128)}', space=vmem, size = 0x12000, scoped, tag = 'internal scratch']
  %s0 = inlined_call_operand.vmem [shape: bf16[2,2,6,10,16], index: 0, kind: input, shape index: {}]
  %s1 = inlined_call_operand.vmem [shape: bf16[144,16], index: 1, kind: input, shape index: {}]
  %s2 = inlined_call_operand.vmem [shape: f32[1,16], index: 2, kind: input, shape index: {}]
  %s3 = inlined_call_operand.vmem [shape: bf16[2,2,32,4], index: 3, kind: input, shape index: {}]
  %s4 = inlined_call_operand.vmem [shape: bf16[4,16], index: 4, kind: input, shape index: {}]
  %s5 = inlined_call_operand.vmem [shape: bf16[2,2,32,16], index: 5, kind: output, shape index: {}]
  %s6 = sld [smem:[#allocation0]]
  $region53: #{_lambda_.5} parent=0
    _
  %s8 = ssub.s32 1, %s6
  %s9 = scalar_select 0, %s8, %s6
  loop: start=0, step=1, limit=6
  $region2: #{_lambda_.5} parent=0 // loop_pre_header
    _
  $region3: #{_lambda_.5} parent=0 // loop_header
    %s11 = sphi 0, %s15
    %p12 = scmp.ge.s32.totalorder %s11, 6
    %s18 = sphi 0, %s30
    %s19 = sphi 0, %s26
    %s20 = sphi 0, %s18
    %s21 = sphi 0, %s19
    %s22 = sphi 0, %s20
    %s23 = sphi 0, %s21
    %s35 = sphi 0, %s37
    %s38 = sphi 0, %s35
    %s39 = sphi 0, %s38
    %s55 = sphi 0, %s39
    %s59 = sphi 0, %s59
    %s61 = sphi 0, %s59
    %s62 = sphi 0, %s61
    %s76 = sphi 0, %s62
    %s80 = sphi 0, %s80
    %s82 = sphi 0, %s80
    %s83 = sphi 0, %s82
    %s97 = sphi 0, %s83
    %s105 = sphi 0, %s107
    %s108 = sphi 0, %s105
    %s109 = sphi 0, %s108
    %s125 = sphi 0, %s109
    %s129 = sphi 0, %s129
    %s131 = sphi 0, %s129
    %s132 = sphi 0, %s131
    %s146 = sphi 0, %s132
    %s154 = sphi 0, %s156
    %s157 = sphi 0, %s154
    %s158 = sphi 0, %s157
    %s174 = sphi 0, %s158
  $region4: #{_lambda_.5} parent=0 // loop_header_branch
    %14 = sbr.rel (%p12) target = $region8
  $region5: #{_lambda_.5} parent=0 // loop_body
    %s16 = ssub.s32 %s11, 1
    %s17 = ssub.s32 %s11, 2
    %s24 = sadd.s32 1, %s19
    %p25 = scmp.ge.s32.totalorder %s24, 2
    %s26 = scalar_select %p25, 0, %s24
    %s27 = sadd.s32 1, %s18
    %s28 = scalar_select %p25, %s27, %s18
    %p29 = scmp.ge.s32.totalorder %s28, 2
    %s30 = scalar_select %p29, 0, %s28
    %s31 = ssub.s32 %s18, %s30
    %s32 = ssub.s32 %s19, %s26
    %s33 = sor.u32 %s31, %s32
    %p34 = scmp.eq.s32.totalorder %s33, 0
    %s36 = sadd.s32 %s35, 1
    %s37 = scalar_select %p34, %s35, %s36
    %p40 = pneg %p34
    %p41 = scmp.eq.s32.totalorder %s11, 3
    %p42 = por %p40, %p41
    %p43 = scmp.ne.s32.totalorder %s35, %s38
    %p44 = scmp.eq.s32.totalorder %s11, 0
    %p45 = por %p43, %p44
    %p46 = scmp.ne.s32.totalorder %s35, %s38
    %p47 = scmp.eq.s32.totalorder %s16, 3
    %p48 = por %p46, %p47
    %p49 = scmp.ne.s32.totalorder %s38, %s39
    %p50 = scmp.eq.s32.totalorder %s16, 0
    %p51 = por %p49, %p50
    %p52 = scmp.ne.s32.totalorder %s38, %s39
    %p53 = scmp.eq.s32.totalorder %s17, 3
    %p54 = por %p52, %p53
    %p56 = scmp.ne.s32.totalorder %s39, %s55
    %p57 = scmp.eq.s32.totalorder %s17, 0
    %p58 = por %p56, %p57
    %s60 = sadd.s32 %s59, 1
    %p63 = scmp.eq.s32.totalorder %s11, 3
    %p64 = scmp.ne.s32.totalorder %s59, %s61
    %p65 = scmp.eq.s32.totalorder %s11, 0
    %p66 = por %p64, %p65
    %p67 = scmp.ne.s32.totalorder %s59, %s61
    %p68 = scmp.eq.s32.totalorder %s16, 3
    %p69 = por %p67, %p68
    %p70 = scmp.ne.s32.totalorder %s61, %s62
    %p71 = scmp.eq.s32.totalorder %s16, 0
    %p72 = por %p70, %p71
    %p73 = scmp.ne.s32.totalorder %s61, %s62
    %p74 = scmp.eq.s32.totalorder %s17, 3
    %p75 = por %p73, %p74
    %p77 = scmp.ne.s32.totalorder %s62, %s76
    %p78 = scmp.eq.s32.totalorder %s17, 0
    %p79 = por %p77, %p78
    %s81 = sadd.s32 %s80, 1
    %p84 = scmp.eq.s32.totalorder %s11, 3
    %p85 = scmp.ne.s32.totalorder %s80, %s82
    %p86 = scmp.eq.s32.totalorder %s11, 0
    %p87 = por %p85, %p86
    %p88 = scmp.ne.s32.totalorder %s80, %s82
    %p89 = scmp.eq.s32.totalorder %s16, 3
    %p90 = por %p88, %p89
    %p91 = scmp.ne.s32.totalorder %s82, %s83
    %p92 = scmp.eq.s32.totalorder %s16, 0
    %p93 = por %p91, %p92
    %p94 = scmp.ne.s32.totalorder %s82, %s83
    %p95 = scmp.eq.s32.totalorder %s17, 3
    %p96 = por %p94, %p95
    %p98 = scmp.ne.s32.totalorder %s83, %s97
    %p99 = scmp.eq.s32.totalorder %s17, 0
    %p100 = por %p98, %p99
    %s101 = ssub.s32 %s18, %s30
    %s102 = ssub.s32 %s19, %s26
    %s103 = sor.u32 %s101, %s102
    %p104 = scmp.eq.s32.totalorder %s103, 0
    %s106 = sadd.s32 %s105, 1
    %s107 = scalar_select %p104, %s105, %s106
    %p110 = pneg %p104
    %p111 = scmp.eq.s32.totalorder %s11, 3
    %p112 = por %p110, %p111
    %p113 = scmp.ne.s32.totalorder %s105, %s108
    %p114 = scmp.eq.s32.totalorder %s11, 0
    %p115 = por %p113, %p114
    %p116 = scmp.ne.s32.totalorder %s105, %s108
    %p117 = scmp.eq.s32.totalorder %s16, 3
    %p118 = por %p116, %p117
    %p119 = scmp.ne.s32.totalorder %s108, %s109
    %p120 = scmp.eq.s32.totalorder %s16, 0
    %p121 = por %p119, %p120
    %p122 = scmp.ne.s32.totalorder %s108, %s109
    %p123 = scmp.eq.s32.totalorder %s17, 3
    %p124 = por %p122, %p123
    %p126 = scmp.ne.s32.totalorder %s109, %s125
    %p127 = scmp.eq.s32.totalorder %s17, 0
    %p128 = por %p126, %p127
    %s130 = sadd.s32 %s129, 1
    %p133 = scmp.eq.s32.totalorder %s11, 3
    %p134 = scmp.ne.s32.totalorder %s129, %s131
    %p135 = scmp.eq.s32.totalorder %s11, 0
    %p136 = por %p134, %p135
    %p137 = scmp.ne.s32.totalorder %s129, %s131
    %p138 = scmp.eq.s32.totalorder %s16, 3
    %p139 = por %p137, %p138
    %p140 = scmp.ne.s32.totalorder %s131, %s132
    %p141 = scmp.eq.s32.totalorder %s16, 0
    %p142 = por %p140, %p141
    %p143 = scmp.ne.s32.totalorder %s131, %s132
    %p144 = scmp.eq.s32.totalorder %s17, 3
    %p145 = por %p143, %p144
    %p147 = scmp.ne.s32.totalorder %s132, %s146
    %p148 = scmp.eq.s32.totalorder %s17, 0
    %p149 = por %p147, %p148
    %s150 = ssub.s32 %s18, %s30
    %s151 = ssub.s32 %s19, %s26
    %s152 = sor.u32 %s150, %s151
    %p153 = scmp.eq.s32.totalorder %s152, 0
    %s155 = sadd.s32 %s154, 1
    %s156 = scalar_select %p153, %s154, %s155
    %p159 = pneg %p153
    %p160 = scmp.eq.s32.totalorder %s11, 3
    %p161 = por %p159, %p160
    %p162 = scmp.ne.s32.totalorder %s154, %s157
    %p163 = scmp.eq.s32.totalorder %s11, 0
    %p164 = por %p162, %p163
    %p165 = scmp.ne.s32.totalorder %s154, %s157
    %p166 = scmp.eq.s32.totalorder %s16, 3
    %p167 = por %p165, %p166
    %p168 = scmp.ne.s32.totalorder %s157, %s158
    %p169 = scmp.eq.s32.totalorder %s16, 0
    %p170 = por %p168, %p169
    %p171 = scmp.ne.s32.totalorder %s157, %s158
    %p172 = scmp.eq.s32.totalorder %s17, 3
    %p173 = por %p171, %p172
    %p175 = scmp.ne.s32.totalorder %s158, %s174
    %p176 = scmp.eq.s32.totalorder %s17, 0
    %p177 = por %p175, %p176
    %p178 = scmp.le.s32.totalorder 1, %s11
    %p179 = scmp.lt.s32.totalorder %s11, 5
    %p180 = pnand %p178, %p179
    %p181 = pneg %p180
    // Predicated region
    $region9: #{_lambda_.5} parent=5 // pred_check
      _
    $region10: #{_lambda_.5} parent=5 // pred_check_branch
      %183 = sbr.rel (%p180) target = $region12
    $region11: #{_lambda_.5} parent=5 // pred_region
      %s184 = ssub.s32 %s11, 1
      // Predicated region
      $region13: #{_lambda_.5} parent=11 // pred_check
        %p185 = pneg %p72
      $region14: #{_lambda_.5} parent=11 // pred_check_branch
        %187 = sbr.rel (%p185) target = $region16
      $region15: #{_lambda_.5} parent=11 // pred_region
        _
      $region16: #{_lambda_.5} parent=11 // pred_fallthru
        _
      // Predicated region
      $region17: #{_lambda_.5} parent=11 // pred_check
        %p188 = pneg %p93
      $region18: #{_lambda_.5} parent=11 // pred_check_branch
        %190 = sbr.rel (%p188) target = $region20
      $region19: #{_lambda_.5} parent=11 // pred_region
        _
      $region20: #{_lambda_.5} parent=11 // pred_fallthru
        _
      // Predicated region
      $region21: #{_lambda_.5} parent=11 // pred_check
        %p191 = pneg %p142
      $region22: #{_lambda_.5} parent=11 // pred_check_branch
        %193 = sbr.rel (%p191) target = $region24
      $region23: #{_lambda_.5} parent=11 // pred_region
        _
      $region24: #{_lambda_.5} parent=11 // pred_fallthru
        _
    $region12: #{_lambda_.5} parent=5 // pred_fallthru
      _
    %p194 = scmp.lt.s32.totalorder %s11, 4
    // Predicated region
    $region25: #{_lambda_.5} parent=5 // pred_check
      %p195 = pneg %p194
    $region26: #{_lambda_.5} parent=5 // pred_check_branch
      %197 = sbr.rel (%p195) target = $region28
    $region27: #{_lambda_.5} parent=5 // pred_region
      // Predicated region
      $region29: #{_lambda_.5} parent=27 // pred_check
        %p198 = pneg %p45
      $region30: #{_lambda_.5} parent=27 // pred_check_branch
        %200 = sbr.rel (%p198) target = $region32
      $region31: #{_lambda_.5} parent=27 // pred_region
        %p201 = scmp.lt.s32.totalorder %s18, 1
        %s202 = scalar_select %p201, %s18, 1
        %p203 = scmp.lt.s32.totalorder %s19, 1
        %s204 = scalar_select %p203, %s19, 1
        %s205 = smul.addr %s204, 12
        %s206 = smul.addr %s202, 24
        %s207 = sadd.s32 %s205, %s206
        %s208 = smul.addr %s207, 4
        %s209 = scalar_lea.vmem %s0, %s208
      $region32: #{_lambda_.5} parent=27 // pred_fallthru
        _
      // Predicated region
      $region33: #{_lambda_.5} parent=27 // pred_check
        %p210 = pneg %p115
      $region34: #{_lambda_.5} parent=27 // pred_check_branch
        %212 = sbr.rel (%p210) target = $region36
      $region35: #{_lambda_.5} parent=27 // pred_region
        %p213 = scmp.lt.s32.totalorder %s18, 1
        %s214 = scalar_select %p213, %s18, 1
        %p215 = scmp.lt.s32.totalorder %s19, 1
        %s216 = scalar_select %p215, %s19, 1
        %s217 = smul.addr %s216, 4
        %s218 = smul.addr %s214, 8
        %s219 = sadd.s32 %s217, %s218
        %s220 = smul.addr %s219, 4
        %s221 = scalar_lea.vmem %s3, %s220
      $region36: #{_lambda_.5} parent=27 // pred_fallthru
        _
    $region28: #{_lambda_.5} parent=5 // pred_fallthru
      _
    %p222 = scmp.le.s32.totalorder 1, %s11
    %p223 = scmp.lt.s32.totalorder %s11, 5
    %p224 = pnand %p222, %p223
    %p225 = pneg %p224
    // Predicated region
    $region37: #{_lambda_.5} parent=5 // pred_check
      _
    $region38: #{_lambda_.5} parent=5 // pred_check_branch
      %227 = sbr.rel (%p224) target = $region40
    $region39: #{_lambda_.5} parent=5 // pred_region
      %s228 = ssub.s32 %s11, 1
      %p229 = scmp.lt.s32.totalorder %s20, 1
      %s230 = scalar_select %p229, %s20, 1
      %p231 = scmp.lt.s32.totalorder %s21, 1
      %s232 = scalar_select %p231, %s21, 1
      %s233 = smul.addr %s232, 12
      %s234 = smul.addr %s230, 24
      %s235 = sadd.s32 %s233, %s234
      %s236 = smul.addr %s235, 4
      %s237 = scalar_lea.vmem %s0, %s236
      %p238 = pneg %p51
      %p239 = pneg %p48
      %p240 = pneg %p72
      %p241 = pneg %p69
      %p242 = pneg %p93
      %p243 = pneg %p90
      %p244 = scmp.lt.s32.totalorder %s20, 1
      %s245 = scalar_select %p244, %s20, 1
      %p246 = scmp.lt.s32.totalorder %s21, 1
      %s247 = scalar_select %p246, %s21, 1
      %s248 = smul.addr %s247, 4
      %s249 = smul.addr %s245, 8
      %s250 = sadd.s32 %s248, %s249
      %s251 = smul.addr %s250, 4
      %s252 = scalar_lea.vmem %s3, %s251
      %p253 = pneg %p121
      %p254 = pneg %p118
      %p255 = pneg %p142
      %p256 = pneg %p139
      %p257 = pneg %p170
      %p258 = pneg %p167
      %p259 = scmp.lt.s32.totalorder %s20, 1
      %s260 = scalar_select %p259, %s20, 1
      %p261 = scmp.lt.s32.totalorder %s21, 1
      %s262 = scalar_select %p261, %s21, 1
      %s263 = smul.addr %s262, 4
      %s264 = smul.addr %s260, 8
      %s265 = sadd.s32 %s263, %s264
      %s266 = smul.addr %s265, 4
      %s267 = scalar_lea.vmem %s5, %s266
      %p268 = scmp.lt.s32.totalorder %s20, 1
      %s269 = scalar_select %p268, %s20, 1
      %p270 = scmp.lt.s32.totalorder %s21, 1
      %s271 = scalar_select %p270, %s21, 1
      %s272 = smul.addr %s271, 12
      %s273 = smul.addr %s269, 24
      %s274 = sadd.s32 %s272, %s273
      %s275 = smul.addr %s274, 4
      %s276 = scalar_lea.vmem %s0, %s275
      %p277 = scmp.lt.s32.totalorder %s20, 1
      %s278 = scalar_select %p277, %s20, 1
      %p279 = scmp.lt.s32.totalorder %s21, 1
      %s280 = scalar_select %p279, %s21, 1
      %s281 = smul.addr %s280, 4
      %s282 = smul.addr %s278, 8
      %s283 = sadd.s32 %s281, %s282
      %s284 = smul.addr %s283, 4
      %s285 = scalar_lea.vmem %s3, %s284
      %p286 = scmp.lt.s32.totalorder %s20, 1
      %s287 = scalar_select %p286, %s20, 1
      %p288 = scmp.lt.s32.totalorder %s21, 1
      %s289 = scalar_select %p288, %s21, 1
      %s290 = smul.addr %s289, 4
      %s291 = smul.addr %s287, 8
      %s292 = sadd.s32 %s290, %s291
      %s293 = smul.addr %s292, 4
      %s294 = scalar_lea.vmem %s5, %s293
      %v296 = vld [vmem:[%s276] sm:$0xf]
      %v297 = vld [vmem:[%s276 + $0x8] sm:$0xf]
      %v298 = vld [vmem:[%s276 + $0x10] sm:$0xf]
      %v299 = vld [vmem:[%s276 + $0x18] sm:$0xf]
      %v300 = vld [vmem:[%s276 + $0x4] sm:$0x1]
      %v301 = vld [vmem:[%s276 + $0xc] sm:$0x1]
      %v302 = vld [vmem:[%s276 + $0x14] sm:$0x1]
      %v303 = vld [vmem:[%s276 + $0x1c] sm:$0x1]
      %v304 = vld [vmem:[%s276] sm:$0xe]
      %v305 = vld [vmem:[%s276 + $0x8] sm:$0xe]
      %v306 = vld [vmem:[%s276 + $0x10] sm:$0xe]
      %v307 = vld [vmem:[%s276 + $0x18] sm:$0xe]
      %s308 = scalar_lea.vmem %s276, 8
      %v309 = vld [vmem:[%s308] sm:$0xf]
      %v310 = vld [vmem:[%s308 + $0x8] sm:$0xf]
      %v311 = vld [vmem:[%s308 + $0x10] sm:$0xf]
      %v312 = vld [vmem:[%s308 + $0x18] sm:$0xf]
      %v313 = vld [vmem:[%s308 + $0x4] sm:$0x1]
      %v314 = vld [vmem:[%s308 + $0xc] sm:$0x1]
      %v315 = vld [vmem:[%s308 + $0x14] sm:$0x1]
      %v316 = vld [vmem:[%s308 + $0x1c] sm:$0x1]
      %v317 = vld [vmem:[%s308] sm:$0xe]
      %v318 = vld [vmem:[%s308 + $0x8] sm:$0xe]
      %v319 = vld [vmem:[%s308 + $0x10] sm:$0xe]
      %v320 = vld [vmem:[%s308 + $0x18] sm:$0xe]
      %s321 = scalar_lea.vmem %s276, 16
      %v322 = vld [vmem:[%s321] sm:$0xf]
      %v323 = vld [vmem:[%s321 + $0x8] sm:$0xf]
      %v324 = vld [vmem:[%s321 + $0x10] sm:$0xf]
      %v325 = vld [vmem:[%s321 + $0x18] sm:$0xf]
      %v326 = vld [vmem:[%s321 + $0x4] sm:$0x1]
      %v327 = vld [vmem:[%s321 + $0xc] sm:$0x1]
      %v328 = vld [vmem:[%s321 + $0x14] sm:$0x1]
      %v329 = vld [vmem:[%s321 + $0x1c] sm:$0x1]
      %v330 = vld [vmem:[%s321] sm:$0xe]
      %v331 = vld [vmem:[%s321 + $0x8] sm:$0xe]
      %v332 = vld [vmem:[%s321 + $0x10] sm:$0xe]
      %v333 = vld [vmem:[%s321 + $0x18] sm:$0xe]
      %v342 = vunpack.c.l.b16 %v296
      %v343 = vunpack.c.l.b16 %v300
      %v344 = vunpack.c.l.b16 %v297
      %v345 = vunpack.c.l.b16 %v301
      %v346 = vunpack.c.l.b16 %v298
      %v347 = vunpack.c.l.b16 %v302
      %v348 = vunpack.c.l.b16 %v299
      %v349 = vunpack.c.l.b16 %v303
      %v350 = vpack.c.b16 %v343, %v342
      %v351 = vpack.c.b16 %v345, %v344
      %v352 = vpack.c.b16 %v347, %v346
      %v353 = vpack.c.b16 %v349, %v348
      %v355 = vshrl.u32 %v350, 16
      %v357 = vshll.u32 %v350, 16
      %v359 = vrot.slane %v357, 1
      %v360 = vor.u32 %v355, %v359
      %v362 = vshrl.u32 %v351, 16
      %v364 = vshll.u32 %v351, 16
      %v366 = vrot.slane %v364, 1
      %v367 = vor.u32 %v362, %v366
      %v369 = vshrl.u32 %v352, 16
      %v371 = vshll.u32 %v352, 16
      %v373 = vrot.slane %v371, 1
      %v374 = vor.u32 %v369, %v373
      %v376 = vshrl.u32 %v353, 16
      %v378 = vshll.u32 %v353, 16
      %v380 = vrot.slane %v378, 1
      %v381 = vor.u32 %v376, %v380
      %382 = vrot.lane.b32.xlu0 %v360, 16
      %v383 = vpop.permute.xlu0 %382
      %384 = vrot.lane.b32.xlu0 %v367, 16
      %v385 = vpop.permute.xlu0 %384
      %386 = vrot.lane.b32.xlu0 %v374, 16
      %v387 = vpop.permute.xlu0 %386
      %388 = vrot.lane.b32.xlu0 %v381, 16
      %v389 = vpop.permute.xlu0 %388
      %v394 = vunpack.c.l.b16 %v304
      %v395 = vunpack.c.l.b16 %v305
      %v396 = vunpack.c.l.b16 %v306
      %v397 = vunpack.c.l.b16 %v307
      %v398 = vpack.c.b16 %v343, %v394
      %v399 = vpack.c.b16 %v345, %v395
      %v400 = vpack.c.b16 %v347, %v396
      %v401 = vpack.c.b16 %v349, %v397
      %v402 = vrot.slane %v398, 1
      %v403 = vrot.slane %v399, 1
      %v404 = vrot.slane %v400, 1
      %v405 = vrot.slane %v401, 1
      %406 = vrot.lane.b32.xlu0 %v402, 32
      %v407 = vpop.permute.xlu0 %406
      %408 = vrot.lane.b32.xlu0 %v403, 32
      %v409 = vpop.permute.xlu0 %408
      %410 = vrot.lane.b32.xlu0 %v404, 32
      %v411 = vpop.permute.xlu0 %410
      %412 = vrot.lane.b32.xlu0 %v405, 32
      %v413 = vpop.permute.xlu0 %412
      %v418 = vunpack.c.l.b16 %v309
      %v419 = vunpack.c.l.b16 %v310
      %v420 = vunpack.c.l.b16 %v311
      %v421 = vunpack.c.l.b16 %v312
      %v422 = vpack.c.b16 %v418, %v418
      %v423 = vpack.c.b16 %v419, %v419
      %v424 = vpack.c.b16 %v420, %v420
      %v425 = vpack.c.b16 %v421, %v421
      %426 = vrot.lane.b32.xlu0 %v422, 48
      %v427 = vpop.permute.xlu0 %426
      %428 = vrot.lane.b32.xlu0 %v423, 48
      %v429 = vpop.permute.xlu0 %428
      %430 = vrot.lane.b32.xlu0 %v424, 48
      %v431 = vpop.permute.xlu0 %430
      %432 = vrot.lane.b32.xlu0 %v425, 48
      %v433 = vpop.permute.xlu0 %432
      %v438 = vunpack.c.l.b16 %v313
      %v439 = vunpack.c.l.b16 %v314
      %v440 = vunpack.c.l.b16 %v315
      %v441 = vunpack.c.l.b16 %v316
      %v442 = vpack.c.b16 %v438, %v418
      %v443 = vpack.c.b16 %v439, %v419
      %v444 = vpack.c.b16 %v440, %v420
      %v445 = vpack.c.b16 %v441, %v421
      %v447 = vshrl.u32 %v442, 16
      %v449 = vshll.u32 %v442, 16
      %v451 = vrot.slane %v449, 1
      %v452 = vor.u32 %v447, %v451
      %v454 = vshrl.u32 %v443, 16
      %v456 = vshll.u32 %v443, 16
      %v458 = vrot.slane %v456, 1
      %v459 = vor.u32 %v454, %v458
      %v461 = vshrl.u32 %v444, 16
      %v463 = vshll.u32 %v444, 16
      %v465 = vrot.slane %v463, 1
      %v466 = vor.u32 %v461, %v465
      %v468 = vshrl.u32 %v445, 16
      %v470 = vshll.u32 %v445, 16
      %v472 = vrot.slane %v470, 1
      %v473 = vor.u32 %v468, %v472
      %474 = vrot.lane.b32.xlu0 %v452, 64
      %v475 = vpop.permute.xlu0 %474
      %476 = vrot.lane.b32.xlu0 %v459, 64
      %v477 = vpop.permute.xlu0 %476
      %478 = vrot.lane.b32.xlu0 %v466, 64
      %v479 = vpop.permute.xlu0 %478
      %480 = vrot.lane.b32.xlu0 %v473, 64
      %v481 = vpop.permute.xlu0 %480
      %v486 = vunpack.c.l.b16 %v317
      %v487 = vunpack.c.l.b16 %v318
      %v488 = vunpack.c.l.b16 %v319
      %v489 = vunpack.c.l.b16 %v320
      %v490 = vpack.c.b16 %v438, %v486
      %v491 = vpack.c.b16 %v439, %v487
      %v492 = vpack.c.b16 %v440, %v488
      %v493 = vpack.c.b16 %v441, %v489
      %v494 = vrot.slane %v490, 1
      %v495 = vrot.slane %v491, 1
      %v496 = vrot.slane %v492, 1
      %v497 = vrot.slane %v493, 1
      %498 = vrot.lane.b32.xlu0 %v494, 80
      %v499 = vpop.permute.xlu0 %498
      %500 = vrot.lane.b32.xlu0 %v495, 80
      %v501 = vpop.permute.xlu0 %500
      %502 = vrot.lane.b32.xlu0 %v496, 80
      %v503 = vpop.permute.xlu0 %502
      %504 = vrot.lane.b32.xlu0 %v497, 80
      %v505 = vpop.permute.xlu0 %504
      %v510 = vunpack.c.l.b16 %v322
      %v511 = vunpack.c.l.b16 %v323
      %v512 = vunpack.c.l.b16 %v324
      %v513 = vunpack.c.l.b16 %v325
      %v514 = vpack.c.b16 %v510, %v510
      %v515 = vpack.c.b16 %v511, %v511
      %v516 = vpack.c.b16 %v512, %v512
      %v517 = vpack.c.b16 %v513, %v513
      %518 = vrot.lane.b32.xlu0 %v514, 96
      %v519 = vpop.permute.xlu0 %518
      %520 = vrot.lane.b32.xlu0 %v515, 96
      %v521 = vpop.permute.xlu0 %520
      %522 = vrot.lane.b32.xlu0 %v516, 96
      %v523 = vpop.permute.xlu0 %522
      %524 = vrot.lane.b32.xlu0 %v517, 96
      %v525 = vpop.permute.xlu0 %524
      %v530 = vunpack.c.l.b16 %v326
      %v531 = vunpack.c.l.b16 %v327
      %v532 = vunpack.c.l.b16 %v328
      %v533 = vunpack.c.l.b16 %v329
      %v534 = vpack.c.b16 %v530, %v510
      %v535 = vpack.c.b16 %v531, %v511
      %v536 = vpack.c.b16 %v532, %v512
      %v537 = vpack.c.b16 %v533, %v513
      %v539 = vshrl.u32 %v534, 16
      %v541 = vshll.u32 %v534, 16
      %v543 = vrot.slane %v541, 1
      %v544 = vor.u32 %v539, %v543
      %v546 = vshrl.u32 %v535, 16
      %v548 = vshll.u32 %v535, 16
      %v550 = vrot.slane %v548, 1
      %v551 = vor.u32 %v546, %v550
      %v553 = vshrl.u32 %v536, 16
      %v555 = vshll.u32 %v536, 16
      %v557 = vrot.slane %v555, 1
      %v558 = vor.u32 %v553, %v557
      %v560 = vshrl.u32 %v537, 16
      %v562 = vshll.u32 %v537, 16
      %v564 = vrot.slane %v562, 1
      %v565 = vor.u32 %v560, %v564
      %566 = vrot.lane.b32.xlu0 %v544, 112
      %v567 = vpop.permute.xlu0 %566
      %568 = vrot.lane.b32.xlu0 %v551, 112
      %v569 = vpop.permute.xlu0 %568
      %570 = vrot.lane.b32.xlu0 %v558, 112
      %v571 = vpop.permute.xlu0 %570
      %572 = vrot.lane.b32.xlu0 %v565, 112
      %v573 = vpop.permute.xlu0 %572
      %v578 = vunpack.c.l.b16 %v330
      %v579 = vunpack.c.l.b16 %v331
      %v580 = vunpack.c.l.b16 %v332
      %v581 = vunpack.c.l.b16 %v333
      %v582 = vpack.c.b16 %v530, %v578
      %v583 = vpack.c.b16 %v531, %v579
      %v584 = vpack.c.b16 %v532, %v580
      %v585 = vpack.c.b16 %v533, %v581
      %v586 = vrot.slane %v582, 1
      %v587 = vrot.slane %v583, 1
      %v588 = vrot.slane %v584, 1
      %v589 = vrot.slane %v585, 1
      %vm590 = vcmask 130048
      %v593 = vsel %vm590, %v296, %v383
      %v596 = vsel %vm590, %v297, %v385
      %v599 = vsel %vm590, %v298, %v387
      %v602 = vsel %vm590, %v299, %v389
      %vm603 = vcmask 261120
      %v605 = vsel %vm603, %v593, %v407
      %v607 = vsel %vm603, %v596, %v409
      %v609 = vsel %vm603, %v599, %v411
      %v611 = vsel %vm603, %v602, %v413
      %vm612 = vcmask 392192
      %v614 = vsel %vm612, %v605, %v427
      %v616 = vsel %vm612, %v607, %v429
      %v618 = vsel %vm612, %v609, %v431
      %v620 = vsel %vm612, %v611, %v433
      %vm621 = vcmask 523264
      %v623 = vsel %vm621, %v614, %v475
      %v625 = vsel %vm621, %v616, %v477
      %v627 = vsel %vm621, %v618, %v479
      %v629 = vsel %vm621, %v620, %v481
      %vm630 = vcmask 654336
      %v632 = vsel %vm630, %v623, %v499
      %v634 = vsel %vm630, %v625, %v501
      %v636 = vsel %vm630, %v627, %v503
      %v638 = vsel %vm630, %v629, %v505
      %vm639 = vcmask 785408
      %v641 = vsel %vm639, %v632, %v519
      %v643 = vsel %vm639, %v634, %v521
      %v645 = vsel %vm639, %v636, %v523
      %v647 = vsel %vm639, %v638, %v525
      %vm648 = vcmask 916480
      %v650 = vsel %vm648, %v641, %v567
      %v652 = vsel %vm648, %v643, %v569
      %v654 = vsel %vm648, %v645, %v571
      %v656 = vsel %vm648, %v647, %v573
      %v661 = vunpack.c.l.b16 %v650
      %v662 = vunpack.c.l.b16 %v586
      %v663 = vunpack.c.l.b16 %v652
      %v664 = vunpack.c.l.b16 %v587
      %v665 = vunpack.c.l.b16 %v654
      %v666 = vunpack.c.l.b16 %v588
      %v667 = vunpack.c.l.b16 %v656
      %v668 = vunpack.c.l.b16 %v589
      %v669 = vld [vmem:[%s1] sm:$0xf]
      %v670 = vld [vmem:[%s1 + $0x4] sm:$0xf]
      %v671 = vld [vmem:[%s1 + $0x8] sm:$0xf]
      %v672 = vld [vmem:[%s1 + $0xc] sm:$0xf]
      %v673 = vld [vmem:[%s1 + $0x10] sm:$0xf]
      %v674 = vld [vmem:[%s1 + $0x14] sm:$0xf]
      %v675 = vld [vmem:[%s1 + $0x18] sm:$0xf]
      %v676 = vld [vmem:[%s1 + $0x1c] sm:$0xf]
      %v677 = vld [vmem:[%s1 + $0x20] sm:$0xf]
      %v678 = vld [vmem:[%s1 + $0x24] sm:$0xf]
      %v679 = vld [vmem:[%s1 + $0x28] sm:$0xf]
      %v680 = vld [vmem:[%s1 + $0x2c] sm:$0xf]
      %v681 = vld [vmem:[%s1 + $0x30] sm:$0xf]
      %v682 = vld [vmem:[%s1 + $0x34] sm:$0xf]
      %v683 = vld [vmem:[%s1 + $0x38] sm:$0xf]
      %v684 = vld [vmem:[%s1 + $0x3c] sm:$0xf]
      %v685 = vld [vmem:[%s1 + $0x40] sm:$0xf]
      %v686 = vld [vmem:[%s1 + $0x44] sm:$0xf]
      %v687 = vld [vmem:[%s2] sm:$0x1]
      %v689 = vlaneseq
      %v690 = vshrl.u32 %v689, 7
      %v691 = vsub.s32 0, %v690
      %v692 = vrot.slane %v687, %v691
      %v694 = vpack.c.b16 %v663, %v661
      %v695 = vpack.c.b16 %v664, %v662
      %v696 = vpack.c.b16 %v667, %v665
      %v697 = vpack.c.b16 %v668, %v666
      %v718 = vunpack.c.l.b16 %v669
      %v719 = vunpack.c.l.b16 %v670
      %v720 = vunpack.c.l.b16 %v671
      %v721 = vunpack.c.l.b16 %v672
      %v722 = vunpack.c.l.b16 %v673
      %v723 = vunpack.c.l.b16 %v674
      %v724 = vunpack.c.l.b16 %v675
      %v725 = vunpack.c.l.b16 %v676
      %v726 = vunpack.c.l.b16 %v677
      %v727 = vunpack.c.l.b16 %v678
      %v728 = vunpack.c.l.b16 %v679
      %v729 = vunpack.c.l.b16 %v680
      %v730 = vunpack.c.l.b16 %v681
      %v731 = vunpack.c.l.b16 %v682
      %v732 = vunpack.c.l.b16 %v683
      %v733 = vunpack.c.l.b16 %v684
      %v734 = vunpack.c.l.b16 %v685
      %v735 = vunpack.c.l.b16 %v686
      %v736 = vpack.c.b16 %v719, %v718
      %v737 = vpack.c.b16 %v721, %v720
      %v738 = vpack.c.b16 %v723, %v722
      %v739 = vpack.c.b16 %v725, %v724
      %v740 = vpack.c.b16 %v727, %v726
      %v741 = vpack.c.b16 %v729, %v728
      %v742 = vpack.c.b16 %v731, %v730
      %v743 = vpack.c.b16 %v733, %v732
      %v744 = vpack.c.b16 %v735, %v734
      %v755 = vsel %vm590, %v695, 0
      %v758 = vsel %vm590, %v697, 0
      %760 = vmatprep.subr.bf16.mxu0 0
      %761 = vmatpush1.bf16.msra.mxu0 %v736
      %762 = vmatprep.subr.bf16.mxu0 0
      %763 = vmatpush1.bf16.msra.mxu0 %v737
      %764 = vmatprep.subr.bf16.mxu0 0
      %765 = vmatpush1.bf16.msra.mxu0 %v738
      %766 = vmatprep.subr.bf16.mxu0 0
      %767 = vmatpush1.bf16.msra.mxu0 %v739
      %768 = vmatprep.subr.bf16.mxu0 0
      %769 = vmatpush1.bf16.msra.mxu0 %v740
      %770 = vmatprep.subr.bf16.mxu0 0
      %771 = vmatpush1.bf16.msra.mxu0 %v741
      %772 = vmatprep.subr.bf16.mxu0 0
      %773 = vmatpush1.bf16.msra.mxu0 %v742
      %774 = vmatprep.subr.bf16.mxu0 0
      %775 = vmatpush1.bf16.msra.mxu0 %v743
      %776 = vmatprep.subr.bf16.mxu0 0
      %777 = vmatpush1.bf16.msra.mxu0 %v744
      %778 = vmatprep.subr.bf16.mxu0 0
      %779 = vmatpush1.bf16.msra.mxu0 0
      %780 = vmatprep.subr.bf16.mxu0 0
      %781 = vmatpush1.bf16.msra.mxu0 0
      %782 = vmatprep.subr.bf16.mxu0 0
      %783 = vmatpush1.bf16.msra.mxu0 0
      %784 = vmatprep.subr.bf16.mxu0 0
      %785 = vmatpush1.bf16.msra.mxu0 0
      %786 = vmatprep.subr.bf16.mxu0 0
      %787 = vmatpush1.bf16.msra.mxu0 0
      %788 = vmatprep.subr.bf16.mxu0 0
      %789 = vmatpush1.bf16.msra.mxu0 0
      %790 = vmatprep.subr.bf16.mxu0 0
      %791 = vmatpush1.bf16.msra.mxu0 0
      %792 = vmatprep.mubr.bf16.mxu0 %v755
      %793 = vmatmul.mubr.bf16.gmra.mrb[0].mxu0 %v694
      %v794 = vpop.f32.mrb[0].mxu0
      %v795 = vadd.f32 %v692, %v794
      %v796 = vpop.f32.mrb[0].mxu0
      %v797 = vpop.f32.mrb[0].mxu0
      %v798 = vadd.f32 %v692, %v797
      %v799 = vpop.f32.mrb[0].mxu0
      %800 = vmatprep.mubr.bf16.mxu0 %v758
      %801 = vmatmul.mubr.bf16.gmra.mrb[0].mxu0 %v696
      %v802 = vpop.f32.mrb[0].mxu0
      %v803 = vadd.f32 %v692, %v802
      %v804 = vpop.f32.mrb[0].mxu0
      %v805 = vpop.f32.mrb[0].mxu0
      %v806 = vadd.f32 %v692, %v805
      %v807 = vpop.f32.mrb[0].mxu0
      %808 = vdwg.mxu0
      %v809 = vld [vmem:[%s285] sm:$0xf]
      %v810 = vld [vmem:[%s285 + $0x4] sm:$0xf]
      %v811 = vld [vmem:[%s285 + $0x8] sm:$0xf]
      %v812 = vld [vmem:[%s285 + $0xc] sm:$0xf]
      %v813 = vld [vmem:[%s4] sm:$0x3]
      %v818 = vunpack.c.l.b16 %v809
      %v819 = vunpack.c.l.b16 %v810
      %v820 = vunpack.c.l.b16 %v811
      %v821 = vunpack.c.l.b16 %v812
      %v822 = vpack.c.b16 %v819, %v818
      %v823 = vpack.c.b16 %v821, %v820
      %vm824 = vcmask 31744
      %v826 = vsel %vm824, %v822, 0
      %v829 = vsel %vm824, %v823, 0
      %vm831 = vcmask 1041408
      %v833 = vsel %vm831, %v813, 0
      %835 = vmatprep.subr.bf16.mxu0 0
      %836 = vmatpush1.bf16.msra.mxu0 %v833
      %837 = vmatprep.subr.bf16.mxu0 0
      %838 = vmatpush1.bf16.msra.mxu0 0
      %839 = vmatprep.subr.bf16.mxu0 0
      %840 = vmatpush1.bf16.msra.mxu0 0
      %841 = vmatprep.subr.bf16.mxu0 0
      %842 = vmatpush1.bf16.msra.mxu0 0
      %843 = vmatprep.subr.bf16.mxu0 0
      %844 = vmatpush1.bf16.msra.mxu0 0
      %845 = vmatprep.subr.bf16.mxu0 0
      %846 = vmatpush1.bf16.msra.mxu0 0
      %847 = vmatprep.subr.bf16.mxu0 0
      %848 = vmatpush1.bf16.msra.mxu0 0
      %849 = vmatprep.subr.bf16.mxu0 0
      %850 = vmatpush1.bf16.msra.mxu0 0
      %851 = vmatprep.subr.bf16.mxu0 0
      %852 = vmatpush1.bf16.msra.mxu0 0
      %853 = vmatprep.subr.bf16.mxu0 0
      %854 = vmatpush1.bf16.msra.mxu0 0
      %855 = vmatprep.subr.bf16.mxu0 0
      %856 = vmatpush1.bf16.msra.mxu0 0
      %857 = vmatprep.subr.bf16.mxu0 0
      %858 = vmatpush1.bf16.msra.mxu0 0
      %859 = vmatprep.subr.bf16.mxu0 0
      %860 = vmatpush1.bf16.msra.mxu0 0
      %861 = vmatprep.subr.bf16.mxu0 0
      %862 = vmatpush1.bf16.msra.mxu0 0
      %863 = vmatprep.subr.bf16.mxu0 0
      %864 = vmatpush1.bf16.msra.mxu0 0
      %865 = vmatprep.subr.bf16.mxu0 0
      %866 = vmatpush1.bf16.msra.mxu0 0
      %867 = vmatprep.mubr.bf16.mxu0 0
      %868 = vmatmul.mubr.bf16.gmra.mrb[0].mxu0 %v826
      %v869 = vpop.f32.mrb[0].mxu0
      %v870 = vadd.f32 0.0, %v869
      %v871 = vpop.f32.mrb[0].mxu0
      %v872 = vpop.f32.mrb[0].mxu0
      %v873 = vadd.f32 0.0, %v872
      %v874 = vpop.f32.mrb[0].mxu0
      %875 = vmatprep.mubr.bf16.mxu0 0
      %876 = vmatmul.mubr.bf16.gmra.mrb[0].mxu0 %v829
      %v877 = vpop.f32.mrb[0].mxu0
      %v878 = vadd.f32 0.0, %v877
      %v879 = vpop.f32.mrb[0].mxu0
      %v880 = vpop.f32.mrb[0].mxu0
      %v881 = vadd.f32 0.0, %v880
      %v882 = vpop.f32.mrb[0].mxu0
      %883 = vdwg.mxu0
      %v884 = vadd.f32 %v795, %v870
      %v885 = vadd.f32 %v798, %v873
      %v886 = vadd.f32 %v803, %v878
      %v887 = vadd.f32 %v806, %v881
      %v888 = vmax.f32 %v884, 0.0
      %v889 = vmax.f32 %v885, 0.0
      %v890 = vmax.f32 %v886, 0.0
      %v891 = vmax.f32 %v887, 0.0
      %v892 = vpack.c.bf16 %v889, %v888
      %v893 = vpack.c.bf16 %v891, %v890
      %v896 = vunpack.c.l.b16 %v892
      %v897 = vunpack.c.h.b16 %v892
      %v898 = vunpack.c.l.b16 %v893
      %v899 = vunpack.c.h.b16 %v893
      %v900 = vpack.c.b16 %v896, %v896
      %v901 = vpack.c.b16 %v897, %v897
      %v902 = vpack.c.b16 %v898, %v898
      %v903 = vpack.c.b16 %v899, %v899
      %vm908 = vcmask 125952
      %909 = vst.msk [vmem:[%s294] sm:$0xf] %vm908, %v900
      %910 = vst.msk [vmem:[%s294 + $0x4] sm:$0xf] %vm908, %v901
      %911 = vst.msk [vmem:[%s294 + $0x8] sm:$0xf] %vm908, %v902
      %912 = vst.msk [vmem:[%s294 + $0xc] sm:$0xf] %vm908, %v903
      %p913 = scmp.lt.s32.totalorder %s20, 1
      %s914 = scalar_select %p913, %s20, 1
      %p915 = scmp.lt.s32.totalorder %s21, 1
      %s916 = scalar_select %p915, %s21, 1
      %s917 = smul.addr %s916, 4
      %s918 = smul.addr %s914, 8
      %s919 = sadd.s32 %s917, %s918
      %s920 = smul.addr %s919, 4
      %s921 = scalar_lea.vmem %s5, %s920
      // Predicated region
      $region41: #{_lambda_.5} parent=39 // pred_check
        %p922 = pneg %p167
      $region42: #{_lambda_.5} parent=39 // pred_check_branch
        %924 = sbr.rel (%p922) target = $region44
      $region43: #{_lambda_.5} parent=39 // pred_region
        _
      $region44: #{_lambda_.5} parent=39 // pred_fallthru
        _
    $region40: #{_lambda_.5} parent=5 // pred_fallthru
      _
    %p925 = scmp.le.s32.totalorder 2, %s11
    // Predicated region
    $region45: #{_lambda_.5} parent=5 // pred_check
      %p926 = pneg %p925
    $region46: #{_lambda_.5} parent=5 // pred_check_branch
      %928 = sbr.rel (%p926) target = $region48
    $region47: #{_lambda_.5} parent=5 // pred_region
      %s929 = ssub.s32 %s11, 2
      // Predicated region
      $region49: #{_lambda_.5} parent=47 // pred_check
        %p930 = pneg %p173
      $region50: #{_lambda_.5} parent=47 // pred_check_branch
        %932 = sbr.rel (%p930) target = $region52
      $region51: #{_lambda_.5} parent=47 // pred_region
        %p933 = scmp.lt.s32.totalorder %s22, 1
        %s934 = scalar_select %p933, %s22, 1
        %p935 = scmp.lt.s32.totalorder %s23, 1
        %s936 = scalar_select %p935, %s23, 1
        %s937 = smul.addr %s936, 4
        %s938 = smul.addr %s934, 8
        %s939 = sadd.s32 %s937, %s938
        %s940 = smul.addr %s939, 4
        %s941 = scalar_lea.vmem %s5, %s940
      $region52: #{_lambda_.5} parent=47 // pred_fallthru
        _
    $region48: #{_lambda_.5} parent=5 // pred_fallthru
      _
  $region6: #{_lambda_.5} parent=0 // loop_footer
    %s15 = sadd.s32 1, %s11
  $region7: #{_lambda_.5} parent=0 // loop_footer_branch
    %10 = sbr.rel target = $region3
  $region8: #{_lambda_.5} parent=0 // loop_exit
    _

</llo_original>
